<compile_context>
chip_gen: v7x
topology: tpu7x:2x2x1
jax: 0.10.0
libtpu: 0.0.40
codegen_flags: <defaults>
</compile_context>

<pallas_src>
import jax
import jax.numpy as jnp
from jax.experimental import pallas as pl
from jax.experimental.pallas import tpu as pltpu

# ---- module hyper-parameters (defaults of QImageDFRSystem) ----
N_HIDDEN = 10          # n_hidden
NUM_DFR = 6            # num_DFR
N_FC1 = 8              # fc1 output width
N_OUT = 10             # fc2 output width
N_IN = 14 * 14         # flattened input features
N_PIX = 7 * 7          # fc_p1 output == number of recurrent timesteps

# DFR cell constants (QParallelDFRCell internals unknown -- see TODO above).
ETA = 0.5              # input gain
GAMMA = 0.4            # feedback gain

# Input quantization range (registered buffer in_min_max) + assumed 8-bit grid.
QMIN = -0.45
QMAX = 3.55
QLEVELS = 255.0
QSCALE = (QMAX - QMIN) / QLEVELS
INV_QSCALE = QLEVELS / (QMAX - QMIN)

B_TILE = 128           # lane-dense batch tile


def _fake_quantize(x):
    """clamp + uniform fake-quant (identical formula in kernel & reference)."""
    x = jnp.clip(x, QMIN, QMAX)
    return jnp.floor((x - QMIN) * INV_QSCALE + 0.5) * QSCALE + QMIN


def qimage_dfr_kernel(xt_ref, wp1_ref, bp1_ref, masks_ref, cell_in_ref,
                      w1_ref, w2_ref, b2_ref,
                      out_ref, cell_out_ref,
                      xp_ref):
    num_dfr = cell_in_ref.shape[0]
    hidden = cell_in_ref.shape[1]
    bt = cell_in_ref.shape[2]
    n_steps = xp_ref.shape[0]

    # ---- Quantize flattened input (feature-major: (196, Bt)) ----
    xq = _fake_quantize(xt_ref[...])

    # ---- fc_p1: (49,196) @ (196,Bt) + (49,1) -> (49,Bt), time-major ----
    xp_ref[...] = jnp.dot(wp1_ref[...], xq,
                          preferred_element_type=jnp.float32) + bp1_ref[...]

    # ETA-pre-scaled, lane-broadcast input masks -- hoisted once (one-time
    # XLU/VALU cost, removes per-step multiplies/broadcasts from the chain).
    em = [jnp.broadcast_to(ETA * masks_ref[i], (hidden, bt))
          for i in range(num_dfr)]

    # ---- recurrent reservoir: vreg-resident state, fully unrolled in time ----
    cells = [cell_in_ref[i] for i in range(num_dfr)]        # each (H, Bt)

    for t in range(n_steps):                                # static unroll (49)
        pix = xp_ref[pl.ds(t, 1), :]                        # (1, Bt), static offset
        c = jnp.tanh(em[0] * pix + GAMMA * cells[0])
        cells[0] = c
        for i in range(1, num_dfr):                         # static unroll (6)
            c = jnp.tanh(em[i] * c + GAMMA * cells[i])
            cells[i] = c

    # Store final states exactly once.
    for i in range(num_dfr):
        cell_out_ref[i] = cells[i]

    # ---- readout: fc1 (no bias) + ReLU, then fc2 (+ bias) ----
    h = jnp.maximum(
        jnp.dot(w1_ref[...], cells[num_dfr - 1],
                preferred_element_type=jnp.float32), 0.0)
    out_ref[...] = jnp.dot(w2_ref[...], h,
                           preferred_element_type=jnp.float32) + b2_ref[...]


@jax.jit
def qimage_dfr_system(x, cell_in, wp1, bp1, masks, w1, w2, b2):
    """Functional forward of QImageDFRSystem.

    x      : (B, 1, 14, 14) float32
    cell_in: (NUM_DFR, B, H) initial reservoir states
    wp1/bp1: fc_p1 params (49, 196) / (49,)
    masks  : (NUM_DFR, H) fixed DFR input masks
    w1     : fc1 weight (8, H), no bias
    w2/b2  : fc2 params (10, 8) / (10,)
    Returns (output (B, 10), cell_out (NUM_DFR, B, H)).
    """
    B = x.shape[0]
    num_dfr, _, H = cell_in.shape
    T, n_in = wp1.shape
    n_out = w2.shape[0]

    # Pad batch to a multiple of 128 so the lane axis is fully dense.
    n_tiles = pl.cdiv(B, B_TILE)
    Bp = n_tiles * B_TILE

    # Batch-on-lanes layout for the kernel (no in-kernel transposes needed).
    x_t = x.reshape(B, -1).T                        # (196, B)
    cell_in_t = jnp.transpose(cell_in, (0, 2, 1))   # (NUM_DFR, H, B)
    if Bp != B:
        x_t = jnp.pad(x_t, ((0, 0), (0, Bp - B)))
        cell_in_t = jnp.pad(cell_in_t, ((0, 0), (0, 0), (0, Bp - B)))
    masks3 = masks[:, :, None]                      # (NUM_DFR, H, 1)
    bp1c = bp1.reshape(-1, 1)                       # (49, 1)
    b2c = b2.reshape(-1, 1)                         # (10, 1)

    # Advisory cost hint (tanh-dominated, tiny bandwidth).
    flops = (2 * T * n_in * Bp                      # fc_p1
             + 4 * T * num_dfr * H * Bp             # recurrence elementwise
             + 2 * (N_FC1 * H + n_out * N_FC1) * Bp)
    transc = T * num_dfr * H * Bp
    bytes_acc = 4 * (x_t.size + wp1.size + bp1c.size + masks3.size
                     + cell_in_t.size * 2 + w1.size + w2.size + b2c.size
                     + n_out * Bp)

    out_t, cell_out_t = pl.pallas_call(
        qimage_dfr_kernel,
        out_shape=(
            jax.ShapeDtypeStruct((n_out, Bp), jnp.float32),
            jax.ShapeDtypeStruct((num_dfr, H, Bp), jnp.float32),
        ),
        grid=(n_tiles,),
        in_specs=[
            pl.BlockSpec((n_in, B_TILE), lambda i: (0, i)),          # x_t
            pl.BlockSpec(wp1.shape, lambda i: (0, 0)),               # wp1
            pl.BlockSpec(bp1c.shape, lambda i: (0, 0)),              # bp1
            pl.BlockSpec(masks3.shape, lambda i: (0, 0, 0)),         # masks
            pl.BlockSpec((num_dfr, H, B_TILE), lambda i: (0, 0, i)), # cell_in
            pl.BlockSpec(w1.shape, lambda i: (0, 0)),                # w1
            pl.BlockSpec(w2.shape, lambda i: (0, 0)),                # w2
            pl.BlockSpec(b2c.shape, lambda i: (0, 0)),               # b2
        ],
        out_specs=(
            pl.BlockSpec((n_out, B_TILE), lambda i: (0, i)),
            pl.BlockSpec((num_dfr, H, B_TILE), lambda i: (0, 0, i)),
        ),
        scratch_shapes=[
            pltpu.VMEM((T, B_TILE), jnp.float32),    # fc_p1 output, time-major
        ],
        compiler_params=pltpu.CompilerParams(
            dimension_semantics=("parallel",)),
        cost_estimate=pl.CostEstimate(
            flops=int(flops), transcendentals=int(transc),
            bytes_accessed=int(bytes_acc)),
    )(x_t, wp1, bp1c, masks3, cell_in_t, w1, w2, b2c)

    # Drop batch padding and go back to the module's row-major conventions.
    out = out_t[:, :B].T
    cell_out = jnp.transpose(cell_out_t[:, :, :B], (0, 2, 1))
    return out, cell_out


def reference_forward(x, cell_in, wp1, bp1, masks, w1, w2, b2):
    """Pure-JAX reference in the original row-major PyTorch formulation."""
    hi = jax.lax.Precision.HIGHEST
    B = x.shape[0]
    xq = _fake_quantize(x.reshape(B, -1))
    xp = jnp.dot(xq, wp1.T, precision=hi) + bp1[None, :]          # (B, 49)
    cells = [cell_in[i] for i in range(cell_in.shape[0])]
    for t in range(xp.shape[1]):
        pix = xp[:, t:t + 1]                                      # (B, 1)
        cells[0] = jnp.tanh(ETA * pix * masks[0][None, :] + GAMMA * cells[0])
        for i in range(1, len(cells)):
            cells[i] = jnp.tanh(ETA * cells[i - 1] * masks[i][None, :]
                                + GAMMA * cells[i])
    h = jnp.maximum(jnp.dot(cells[-1], w1.T, precision=hi), 0.0)
    out = jnp.dot(h, w2.T, precision=hi) + b2[None, :]
    return out, jnp.stack(cells)


if __name__ == "__main__":
    key = jax.random.PRNGKey(0)
    ks = jax.random.split(key, 8)
    B = 8

    # Deterministic synthetic inputs / parameters (no checkpoint load).
    x = jax.random.uniform(ks[0], (B, 1, 14, 14), jnp.float32,
                           minval=-0.45, maxval=3.55)
    cell_in = 0.1 * jax.random.normal(ks[1], (NUM_DFR, B, N_HIDDEN), jnp.float32)
    wp1 = jax.random.normal(ks[2], (N_PIX, N_IN), jnp.float32) / jnp.sqrt(float(N_IN))
    bp1 = 0.1 * jax.random.normal(ks[3], (N_PIX,), jnp.float32)
    masks = jax.random.uniform(ks[4], (NUM_DFR, N_HIDDEN), jnp.float32,
                               minval=-1.0, maxval=1.0)
    w1 = jax.random.normal(ks[5], (N_FC1, N_HIDDEN), jnp.float32) / jnp.sqrt(float(N_HIDDEN))
    w2 = jax.random.normal(ks[6], (N_OUT, N_FC1), jnp.float32) / jnp.sqrt(float(N_FC1))
    b2 = 0.1 * jax.random.normal(ks[7], (N_OUT,), jnp.float32)

    output, cell_out = qimage_dfr_system(x, cell_in, wp1, bp1, masks, w1, w2, b2)
    jax.block_until_ready((output, cell_out))

    out_ref, cell_ref = reference_forward(x, cell_in, wp1, bp1, masks, w1, w2, b2)

    assert output.shape == (B, N_OUT)
    assert cell_out.shape == (NUM_DFR, B, N_HIDDEN)
    assert jnp.allclose(cell_out, cell_ref, atol=1e-3), \
        float(jnp.max(jnp.abs(cell_out - cell_ref)))
    assert jnp.allclose(output, out_ref, atol=1e-3), \
        float(jnp.max(jnp.abs(output - out_ref)))
    print("KERNEL_OK")
</pallas_src>

<mosaic_0001>
module attributes {stable_mosaic.version = 11 : i64} {
  func.func @qimage_dfr_kernel(%arg0: i32, %arg1: memref<196x128xf32, #tpu.memory_space<vmem>>, %arg2: memref<49x196xf32, #tpu.memory_space<vmem>>, %arg3: memref<49x1xf32, #tpu.memory_space<vmem>>, %arg4: memref<6x10x1xf32, #tpu.memory_space<vmem>>, %arg5: memref<6x10x128xf32, #tpu.memory_space<vmem>>, %arg6: memref<8x10xf32, #tpu.memory_space<vmem>>, %arg7: memref<10x8xf32, #tpu.memory_space<vmem>>, %arg8: memref<10x1xf32, #tpu.memory_space<vmem>>, %arg9: memref<10x128xf32, #tpu.memory_space<vmem>>, %arg10: memref<6x10x128xf32, #tpu.memory_space<vmem>>, %arg11: memref<49x128xf32, #tpu.memory_space<vmem>>) attributes {dimension_semantics = [#tpu.dimension_semantics<parallel>], iteration_bounds = array<i64: 1>, scalar_prefetch = 0 : i64, scratch_operands = 1 : i64, tpu.core_type = #tpu.core_type<tc>, window_params = [{transform_indices = @transform_0, window_bounds = array<i64: 196, 128>}, {pipeline_mode = #tpu.pipeline_mode<synchronous>, transform_indices = @transform_1, window_bounds = array<i64: 49, 196>}, {pipeline_mode = #tpu.pipeline_mode<synchronous>, transform_indices = @transform_2, window_bounds = array<i64: 49, 1>}, {pipeline_mode = #tpu.pipeline_mode<synchronous>, transform_indices = @transform_3, window_bounds = array<i64: 6, 10, 1>}, {transform_indices = @transform_4, window_bounds = array<i64: 6, 10, 128>}, {pipeline_mode = #tpu.pipeline_mode<synchronous>, transform_indices = @transform_5, window_bounds = array<i64: 8, 10>}, {pipeline_mode = #tpu.pipeline_mode<synchronous>, transform_indices = @transform_6, window_bounds = array<i64: 10, 8>}, {pipeline_mode = #tpu.pipeline_mode<synchronous>, transform_indices = @transform_7, window_bounds = array<i64: 10, 1>}, {transform_indices = @transform_8, window_bounds = array<i64: 10, 128>}, {transform_indices = @transform_9, window_bounds = array<i64: 6, 10, 128>}]} {
    %c0 = arith.constant 0 : index
    %c0_0 = arith.constant 0 : index
    %0 = vector.load %arg1[%c0, %c0_0] : memref<196x128xf32, #tpu.memory_space<vmem>>, vector<196x128xf32>
    %cst = arith.constant -4.500000e-01 : f32
    %cst_1 = arith.constant 3.550000e+00 : f32
    %1 = vector.broadcast %cst : f32 to vector<196x128xf32>
    %2 = arith.maximumf %1, %0 : vector<196x128xf32>
    %3 = vector.broadcast %cst_1 : f32 to vector<196x128xf32>
    %4 = arith.minimumf %3, %2 : vector<196x128xf32>
    %cst_2 = arith.constant -4.500000e-01 : f32
    %5 = vector.broadcast %cst_2 : f32 to vector<196x128xf32>
    %6 = arith.subf %4, %5 : vector<196x128xf32>
    %cst_3 = arith.constant 6.375000e+01 : f32
    %7 = vector.broadcast %cst_3 : f32 to vector<196x128xf32>
    %8 = arith.mulf %6, %7 : vector<196x128xf32>
    %cst_4 = arith.constant 5.000000e-01 : f32
    %9 = vector.broadcast %cst_4 : f32 to vector<196x128xf32>
    %10 = arith.addf %8, %9 : vector<196x128xf32>
    %11 = math.floor %10 : vector<196x128xf32>
    %cst_5 = arith.constant 0.0156862754 : f32
    %12 = vector.broadcast %cst_5 : f32 to vector<196x128xf32>
    %13 = arith.mulf %11, %12 : vector<196x128xf32>
    %cst_6 = arith.constant -4.500000e-01 : f32
    %14 = vector.broadcast %cst_6 : f32 to vector<196x128xf32>
    %15 = arith.addf %13, %14 : vector<196x128xf32>
    %c0_7 = arith.constant 0 : index
    %c0_8 = arith.constant 0 : index
    %16 = vector.load %arg2[%c0_7, %c0_8] : memref<49x196xf32, #tpu.memory_space<vmem>>, vector<49x196xf32>
    %cst_9 = arith.constant dense<0.000000e+00> : vector<49x128xf32>
    %17 = tpu.matmul %16, %15, %cst_9 {dimension_numbers = #tpu.dot_dimension_numbers<[1], [0], [0], [1], [0, 0, 1, 1], [], []>} : vector<49x196xf32>, vector<196x128xf32>, vector<49x128xf32> -> vector<49x128xf32>
    %c0_10 = arith.constant 0 : index
    %c0_11 = arith.constant 0 : index
    %18 = vector.load %arg3[%c0_10, %c0_11] : memref<49x1xf32, #tpu.memory_space<vmem>>, vector<49x1xf32>
    %19 = vector.broadcast %18 : vector<49x1xf32> to vector<49x128xf32>
    %20 = arith.addf %17, %19 : vector<49x128xf32>
    %c0_12 = arith.constant 0 : index
    %c0_13 = arith.constant 0 : index
    %21 = vector.load %arg11[%c0_12, %c0_13] : memref<49x128xf32, #tpu.memory_space<vmem>>, vector<49x128xf32>
    tpu.vector_store %arg11[%c0_12, %c0_13], %20 {strides = array<i32>} : memref<49x128xf32, #tpu.memory_space<vmem>>, vector<49x128xf32>,
    %c0_14 = arith.constant 0 : index
    %c0_15 = arith.constant 0 : index
    %c0_16 = arith.constant 0 : index
    %22 = vector.load %arg4[%c0_14, %c0_15, %c0_16] : memref<6x10x1xf32, #tpu.memory_space<vmem>>, vector<1x10x1xf32>
    %23 = vector.shape_cast %22 : vector<1x10x1xf32> to vector<10x1xf32>
    %cst_17 = arith.constant 5.000000e-01 : f32
    %24 = vector.broadcast %cst_17 : f32 to vector<10x1xf32>
    %25 = arith.mulf %24, %23 : vector<10x1xf32>
    %26 = vector.shape_cast %25 : vector<10x1xf32> to vector<10x1xf32>
    %27 = vector.broadcast %26 : vector<10x1xf32> to vector<10x128xf32>
    %c1 = arith.constant 1 : index
    %c0_18 = arith.constant 0 : index
    %c0_19 = arith.constant 0 : index
    %28 = vector.load %arg4[%c1, %c0_18, %c0_19] : memref<6x10x1xf32, #tpu.memory_space<vmem>>, vector<1x10x1xf32>
    %29 = vector.shape_cast %28 : vector<1x10x1xf32> to vector<10x1xf32>
    %cst_20 = arith.constant 5.000000e-01 : f32
    %30 = vector.broadcast %cst_20 : f32 to vector<10x1xf32>
    %31 = arith.mulf %30, %29 : vector<10x1xf32>
    %32 = vector.shape_cast %31 : vector<10x1xf32> to vector<10x1xf32>
    %33 = vector.broadcast %32 : vector<10x1xf32> to vector<10x128xf32>
    %c2 = arith.constant 2 : index
    %c0_21 = arith.constant 0 : index
    %c0_22 = arith.constant 0 : index
    %34 = vector.load %arg4[%c2, %c0_21, %c0_22] : memref<6x10x1xf32, #tpu.memory_space<vmem>>, vector<1x10x1xf32>
    %35 = vector.shape_cast %34 : vector<1x10x1xf32> to vector<10x1xf32>
    %cst_23 = arith.constant 5.000000e-01 : f32
    %36 = vector.broadcast %cst_23 : f32 to vector<10x1xf32>
    %37 = arith.mulf %36, %35 : vector<10x1xf32>
    %38 = vector.shape_cast %37 : vector<10x1xf32> to vector<10x1xf32>
    %39 = vector.broadcast %38 : vector<10x1xf32> to vector<10x128xf32>
    %c3 = arith.constant 3 : index
    %c0_24 = arith.constant 0 : index
    %c0_25 = arith.constant 0 : index
    %40 = vector.load %arg4[%c3, %c0_24, %c0_25] : memref<6x10x1xf32, #tpu.memory_space<vmem>>, vector<1x10x1xf32>
    %41 = vector.shape_cast %40 : vector<1x10x1xf32> to vector<10x1xf32>
    %cst_26 = arith.constant 5.000000e-01 : f32
    %42 = vector.broadcast %cst_26 : f32 to vector<10x1xf32>
    %43 = arith.mulf %42, %41 : vector<10x1xf32>
    %44 = vector.shape_cast %43 : vector<10x1xf32> to vector<10x1xf32>
    %45 = vector.broadcast %44 : vector<10x1xf32> to vector<10x128xf32>
    %c4 = arith.constant 4 : index
    %c0_27 = arith.constant 0 : index
    %c0_28 = arith.constant 0 : index
    %46 = vector.load %arg4[%c4, %c0_27, %c0_28] : memref<6x10x1xf32, #tpu.memory_space<vmem>>, vector<1x10x1xf32>
    %47 = vector.shape_cast %46 : vector<1x10x1xf32> to vector<10x1xf32>
    %cst_29 = arith.constant 5.000000e-01 : f32
    %48 = vector.broadcast %cst_29 : f32 to vector<10x1xf32>
    %49 = arith.mulf %48, %47 : vector<10x1xf32>
    %50 = vector.shape_cast %49 : vector<10x1xf32> to vector<10x1xf32>
    %51 = vector.broadcast %50 : vector<10x1xf32> to vector<10x128xf32>
    %c5 = arith.constant 5 : index
    %c0_30 = arith.constant 0 : index
    %c0_31 = arith.constant 0 : index
    %52 = vector.load %arg4[%c5, %c0_30, %c0_31] : memref<6x10x1xf32, #tpu.memory_space<vmem>>, vector<1x10x1xf32>
    %53 = vector.shape_cast %52 : vector<1x10x1xf32> to vector<10x1xf32>
    %cst_32 = arith.constant 5.000000e-01 : f32
    %54 = vector.broadcast %cst_32 : f32 to vector<10x1xf32>
    %55 = arith.mulf %54, %53 : vector<10x1xf32>
    %56 = vector.shape_cast %55 : vector<10x1xf32> to vector<10x1xf32>
    %57 = vector.broadcast %56 : vector<10x1xf32> to vector<10x128xf32>
    %c0_33 = arith.constant 0 : index
    %c0_34 = arith.constant 0 : index
    %c0_35 = arith.constant 0 : index
    %58 = vector.load %arg5[%c0_33, %c0_34, %c0_35] : memref<6x10x128xf32, #tpu.memory_space<vmem>>, vector<1x10x128xf32>
    %59 = vector.shape_cast %58 : vector<1x10x128xf32> to vector<10x128xf32>
    %c1_36 = arith.constant 1 : index
    %c0_37 = arith.constant 0 : index
    %c0_38 = arith.constant 0 : index
    %60 = vector.load %arg5[%c1_36, %c0_37, %c0_38] : memref<6x10x128xf32, #tpu.memory_space<vmem>>, vector<1x10x128xf32>
    %61 = vector.shape_cast %60 : vector<1x10x128xf32> to vector<10x128xf32>
    %c2_39 = arith.constant 2 : index
    %c0_40 = arith.constant 0 : index
    %c0_41 = arith.constant 0 : index
    %62 = vector.load %arg5[%c2_39, %c0_40, %c0_41] : memref<6x10x128xf32, #tpu.memory_space<vmem>>, vector<1x10x128xf32>
    %63 = vector.shape_cast %62 : vector<1x10x128xf32> to vector<10x128xf32>
    %c3_42 = arith.constant 3 : index
    %c0_43 = arith.constant 0 : index
    %c0_44 = arith.constant 0 : index
    %64 = vector.load %arg5[%c3_42, %c0_43, %c0_44] : memref<6x10x128xf32, #tpu.memory_space<vmem>>, vector<1x10x128xf32>
    %65 = vector.shape_cast %64 : vector<1x10x128xf32> to vector<10x128xf32>
    %c4_45 = arith.constant 4 : index
    %c0_46 = arith.constant 0 : index
    %c0_47 = arith.constant 0 : index
    %66 = vector.load %arg5[%c4_45, %c0_46, %c0_47] : memref<6x10x128xf32, #tpu.memory_space<vmem>>, vector<1x10x128xf32>
    %67 = vector.shape_cast %66 : vector<1x10x128xf32> to vector<10x128xf32>
    %c5_48 = arith.constant 5 : index
    %c0_49 = arith.constant 0 : index
    %c0_50 = arith.constant 0 : index
    %68 = vector.load %arg5[%c5_48, %c0_49, %c0_50] : memref<6x10x128xf32, #tpu.memory_space<vmem>>, vector<1x10x128xf32>
    %69 = vector.shape_cast %68 : vector<1x10x128xf32> to vector<10x128xf32>
    %c0_51 = arith.constant 0 : index
    %c0_52 = arith.constant 0 : index
    %70 = vector.load %arg11[%c0_51, %c0_52] : memref<49x128xf32, #tpu.memory_space<vmem>>, vector<1x128xf32>
    %71 = vector.broadcast %70 : vector<1x128xf32> to vector<10x128xf32>
    %72 = arith.mulf %27, %71 : vector<10x128xf32>
    %cst_53 = arith.constant 4.000000e-01 : f32
    %73 = vector.broadcast %cst_53 : f32 to vector<10x128xf32>
    %74 = arith.mulf %73, %59 : vector<10x128xf32>
    %75 = arith.addf %72, %74 : vector<10x128xf32>
    %76 = math.tanh %75 : vector<10x128xf32>
    %77 = arith.mulf %33, %76 : vector<10x128xf32>
    %cst_54 = arith.constant 4.000000e-01 : f32
    %78 = vector.broadcast %cst_54 : f32 to vector<10x128xf32>
    %79 = arith.mulf %78, %61 : vector<10x128xf32>
    %80 = arith.addf %77, %79 : vector<10x128xf32>
    %81 = math.tanh %80 : vector<10x128xf32>
    %82 = arith.mulf %39, %81 : vector<10x128xf32>
    %cst_55 = arith.constant 4.000000e-01 : f32
    %83 = vector.broadcast %cst_55 : f32 to vector<10x128xf32>
    %84 = arith.mulf %83, %63 : vector<10x128xf32>
    %85 = arith.addf %82, %84 : vector<10x128xf32>
    %86 = math.tanh %85 : vector<10x128xf32>
    %87 = arith.mulf %45, %86 : vector<10x128xf32>
    %cst_56 = arith.constant 4.000000e-01 : f32
    %88 = vector.broadcast %cst_56 : f32 to vector<10x128xf32>
    %89 = arith.mulf %88, %65 : vector<10x128xf32>
    %90 = arith.addf %87, %89 : vector<10x128xf32>
    %91 = math.tanh %90 : vector<10x128xf32>
    %92 = arith.mulf %51, %91 : vector<10x128xf32>
    %cst_57 = arith.constant 4.000000e-01 : f32
    %93 = vector.broadcast %cst_57 : f32 to vector<10x128xf32>
    %94 = arith.mulf %93, %67 : vector<10x128xf32>
    %95 = arith.addf %92, %94 : vector<10x128xf32>
    %96 = math.tanh %95 : vector<10x128xf32>
    %97 = arith.mulf %57, %96 : vector<10x128xf32>
    %cst_58 = arith.constant 4.000000e-01 : f32
    %98 = vector.broadcast %cst_58 : f32 to vector<10x128xf32>
    %99 = arith.mulf %98, %69 : vector<10x128xf32>
    %100 = arith.addf %97, %99 : vector<10x128xf32>
    %101 = math.tanh %100 : vector<10x128xf32>
    %c1_59 = arith.constant 1 : index
    %c0_60 = arith.constant 0 : index
    %102 = vector.load %arg11[%c1_59, %c0_60] : memref<49x128xf32, #tpu.memory_space<vmem>>, vector<1x128xf32>
    %103 = vector.broadcast %102 : vector<1x128xf32> to vector<10x128xf32>
    %104 = arith.mulf %27, %103 : vector<10x128xf32>
    %cst_61 = arith.constant 4.000000e-01 : f32
    %105 = vector.broadcast %cst_61 : f32 to vector<10x128xf32>
    %106 = arith.mulf %105, %76 : vector<10x128xf32>
    %107 = arith.addf %104, %106 : vector<10x128xf32>
    %108 = math.tanh %107 : vector<10x128xf32>
    %109 = arith.mulf %33, %108 : vector<10x128xf32>
    %cst_62 = arith.constant 4.000000e-01 : f32
    %110 = vector.broadcast %cst_62 : f32 to vector<10x128xf32>
    %111 = arith.mulf %110, %81 : vector<10x128xf32>
    %112 = arith.addf %109, %111 : vector<10x128xf32>
    %113 = math.tanh %112 : vector<10x128xf32>
    %114 = arith.mulf %39, %113 : vector<10x128xf32>
    %cst_63 = arith.constant 4.000000e-01 : f32
    %115 = vector.broadcast %cst_63 : f32 to vector<10x128xf32>
    %116 = arith.mulf %115, %86 : vector<10x128xf32>
    %117 = arith.addf %114, %116 : vector<10x128xf32>
    %118 = math.tanh %117 : vector<10x128xf32>
    %119 = arith.mulf %45, %118 : vector<10x128xf32>
    %cst_64 = arith.constant 4.000000e-01 : f32
    %120 = vector.broadcast %cst_64 : f32 to vector<10x128xf32>
    %121 = arith.mulf %120, %91 : vector<10x128xf32>
    %122 = arith.addf %119, %121 : vector<10x128xf32>
    %123 = math.tanh %122 : vector<10x128xf32>
    %124 = arith.mulf %51, %123 : vector<10x128xf32>
    %cst_65 = arith.constant 4.000000e-01 : f32
    %125 = vector.broadcast %cst_65 : f32 to vector<10x128xf32>
    %126 = arith.mulf %125, %96 : vector<10x128xf32>
    %127 = arith.addf %124, %126 : vector<10x128xf32>
    %128 = math.tanh %127 : vector<10x128xf32>
    %129 = arith.mulf %57, %128 : vector<10x128xf32>
    %cst_66 = arith.constant 4.000000e-01 : f32
    %130 = vector.broadcast %cst_66 : f32 to vector<10x128xf32>
    %131 = arith.mulf %130, %101 : vector<10x128xf32>
    %132 = arith.addf %129, %131 : vector<10x128xf32>
    %133 = math.tanh %132 : vector<10x128xf32>
    %c2_67 = arith.constant 2 : index
    %c0_68 = arith.constant 0 : index
    %134 = vector.load %arg11[%c2_67, %c0_68] : memref<49x128xf32, #tpu.memory_space<vmem>>, vector<1x128xf32>
    %135 = vector.broadcast %134 : vector<1x128xf32> to vector<10x128xf32>
    %136 = arith.mulf %27, %135 : vector<10x128xf32>
    %cst_69 = arith.constant 4.000000e-01 : f32
    %137 = vector.broadcast %cst_69 : f32 to vector<10x128xf32>
    %138 = arith.mulf %137, %108 : vector<10x128xf32>
    %139 = arith.addf %136, %138 : vector<10x128xf32>
    %140 = math.tanh %139 : vector<10x128xf32>
    %141 = arith.mulf %33, %140 : vector<10x128xf32>
    %cst_70 = arith.constant 4.000000e-01 : f32
    %142 = vector.broadcast %cst_70 : f32 to vector<10x128xf32>
    %143 = arith.mulf %142, %113 : vector<10x128xf32>
    %144 = arith.addf %141, %143 : vector<10x128xf32>
    %145 = math.tanh %144 : vector<10x128xf32>
    %146 = arith.mulf %39, %145 : vector<10x128xf32>
    %cst_71 = arith.constant 4.000000e-01 : f32
    %147 = vector.broadcast %cst_71 : f32 to vector<10x128xf32>
    %148 = arith.mulf %147, %118 : vector<10x128xf32>
    %149 = arith.addf %146, %148 : vector<10x128xf32>
    %150 = math.tanh %149 : vector<10x128xf32>
    %151 = arith.mulf %45, %150 : vector<10x128xf32>
    %cst_72 = arith.constant 4.000000e-01 : f32
    %152 = vector.broadcast %cst_72 : f32 to vector<10x128xf32>
    %153 = arith.mulf %152, %123 : vector<10x128xf32>
    %154 = arith.addf %151, %153 : vector<10x128xf32>
    %155 = math.tanh %154 : vector<10x128xf32>
    %156 = arith.mulf %51, %155 : vector<10x128xf32>
    %cst_73 = arith.constant 4.000000e-01 : f32
    %157 = vector.broadcast %cst_73 : f32 to vector<10x128xf32>
    %158 = arith.mulf %157, %128 : vector<10x128xf32>
    %159 = arith.addf %156, %158 : vector<10x128xf32>
    %160 = math.tanh %159 : vector<10x128xf32>
    %161 = arith.mulf %57, %160 : vector<10x128xf32>
    %cst_74 = arith.constant 4.000000e-01 : f32
    %162 = vector.broadcast %cst_74 : f32 to vector<10x128xf32>
    %163 = arith.mulf %162, %133 : vector<10x128xf32>
    %164 = arith.addf %161, %163 : vector<10x128xf32>
    %165 = math.tanh %164 : vector<10x128xf32>
    %c3_75 = arith.constant 3 : index
    %c0_76 = arith.constant 0 : index
    %166 = vector.load %arg11[%c3_75, %c0_76] : memref<49x128xf32, #tpu.memory_space<vmem>>, vector<1x128xf32>
    %167 = vector.broadcast %166 : vector<1x128xf32> to vector<10x128xf32>
    %168 = arith.mulf %27, %167 : vector<10x128xf32>
    %cst_77 = arith.constant 4.000000e-01 : f32
    %169 = vector.broadcast %cst_77 : f32 to vector<10x128xf32>
    %170 = arith.mulf %169, %140 : vector<10x128xf32>
    %171 = arith.addf %168, %170 : vector<10x128xf32>
    %172 = math.tanh %171 : vector<10x128xf32>
    %173 = arith.mulf %33, %172 : vector<10x128xf32>
    %cst_78 = arith.constant 4.000000e-01 : f32
    %174 = vector.broadcast %cst_78 : f32 to vector<10x128xf32>
    %175 = arith.mulf %174, %145 : vector<10x128xf32>
    %176 = arith.addf %173, %175 : vector<10x128xf32>
    %177 = math.tanh %176 : vector<10x128xf32>
    %178 = arith.mulf %39, %177 : vector<10x128xf32>
    %cst_79 = arith.constant 4.000000e-01 : f32
    %179 = vector.broadcast %cst_79 : f32 to vector<10x128xf32>
    %180 = arith.mulf %179, %150 : vector<10x128xf32>
    %181 = arith.addf %178, %180 : vector<10x128xf32>
    %182 = math.tanh %181 : vector<10x128xf32>
    %183 = arith.mulf %45, %182 : vector<10x128xf32>
    %cst_80 = arith.constant 4.000000e-01 : f32
    %184 = vector.broadcast %cst_80 : f32 to vector<10x128xf32>
    %185 = arith.mulf %184, %155 : vector<10x128xf32>
    %186 = arith.addf %183, %185 : vector<10x128xf32>
    %187 = math.tanh %186 : vector<10x128xf32>
    %188 = arith.mulf %51, %187 : vector<10x128xf32>
    %cst_81 = arith.constant 4.000000e-01 : f32
    %189 = vector.broadcast %cst_81 : f32 to vector<10x128xf32>
    %190 = arith.mulf %189, %160 : vector<10x128xf32>
    %191 = arith.addf %188, %190 : vector<10x128xf32>
    %192 = math.tanh %191 : vector<10x128xf32>
    %193 = arith.mulf %57, %192 : vector<10x128xf32>
    %cst_82 = arith.constant 4.000000e-01 : f32
    %194 = vector.broadcast %cst_82 : f32 to vector<10x128xf32>
    %195 = arith.mulf %194, %165 : vector<10x128xf32>
    %196 = arith.addf %193, %195 : vector<10x128xf32>
    %197 = math.tanh %196 : vector<10x128xf32>
    %c4_83 = arith.constant 4 : index
    %c0_84 = arith.constant 0 : index
    %198 = vector.load %arg11[%c4_83, %c0_84] : memref<49x128xf32, #tpu.memory_space<vmem>>, vector<1x128xf32>
    %199 = vector.broadcast %198 : vector<1x128xf32> to vector<10x128xf32>
    %200 = arith.mulf %27, %199 : vector<10x128xf32>
    %cst_85 = arith.constant 4.000000e-01 : f32
    %201 = vector.broadcast %cst_85 : f32 to vector<10x128xf32>
    %202 = arith.mulf %201, %172 : vector<10x128xf32>
    %203 = arith.addf %200, %202 : vector<10x128xf32>
    %204 = math.tanh %203 : vector<10x128xf32>
    %205 = arith.mulf %33, %204 : vector<10x128xf32>
    %cst_86 = arith.constant 4.000000e-01 : f32
    %206 = vector.broadcast %cst_86 : f32 to vector<10x128xf32>
    %207 = arith.mulf %206, %177 : vector<10x128xf32>
    %208 = arith.addf %205, %207 : vector<10x128xf32>
    %209 = math.tanh %208 : vector<10x128xf32>
    %210 = arith.mulf %39, %209 : vector<10x128xf32>
    %cst_87 = arith.constant 4.000000e-01 : f32
    %211 = vector.broadcast %cst_87 : f32 to vector<10x128xf32>
    %212 = arith.mulf %211, %182 : vector<10x128xf32>
    %213 = arith.addf %210, %212 : vector<10x128xf32>
    %214 = math.tanh %213 : vector<10x128xf32>
    %215 = arith.mulf %45, %214 : vector<10x128xf32>
    %cst_88 = arith.constant 4.000000e-01 : f32
    %216 = vector.broadcast %cst_88 : f32 to vector<10x128xf32>
    %217 = arith.mulf %216, %187 : vector<10x128xf32>
    %218 = arith.addf %215, %217 : vector<10x128xf32>
    %219 = math.tanh %218 : vector<10x128xf32>
    %220 = arith.mulf %51, %219 : vector<10x128xf32>
    %cst_89 = arith.constant 4.000000e-01 : f32
    %221 = vector.broadcast %cst_89 : f32 to vector<10x128xf32>
    %222 = arith.mulf %221, %192 : vector<10x128xf32>
    %223 = arith.addf %220, %222 : vector<10x128xf32>
    %224 = math.tanh %223 : vector<10x128xf32>
    %225 = arith.mulf %57, %224 : vector<10x128xf32>
    %cst_90 = arith.constant 4.000000e-01 : f32
    %226 = vector.broadcast %cst_90 : f32 to vector<10x128xf32>
    %227 = arith.mulf %226, %197 : vector<10x128xf32>
    %228 = arith.addf %225, %227 : vector<10x128xf32>
    %229 = math.tanh %228 : vector<10x128xf32>
    %c5_91 = arith.constant 5 : index
    %c0_92 = arith.constant 0 : index
    %230 = vector.load %arg11[%c5_91, %c0_92] : memref<49x128xf32, #tpu.memory_space<vmem>>, vector<1x128xf32>
    %231 = vector.broadcast %230 : vector<1x128xf32> to vector<10x128xf32>
    %232 = arith.mulf %27, %231 : vector<10x128xf32>
    %cst_93 = arith.constant 4.000000e-01 : f32
    %233 = vector.broadcast %cst_93 : f32 to vector<10x128xf32>
    %234 = arith.mulf %233, %204 : vector<10x128xf32>
    %235 = arith.addf %232, %234 : vector<10x128xf32>
    %236 = math.tanh %235 : vector<10x128xf32>
    %237 = arith.mulf %33, %236 : vector<10x128xf32>
    %cst_94 = arith.constant 4.000000e-01 : f32
    %238 = vector.broadcast %cst_94 : f32 to vector<10x128xf32>
    %239 = arith.mulf %238, %209 : vector<10x128xf32>
    %240 = arith.addf %237, %239 : vector<10x128xf32>
    %241 = math.tanh %240 : vector<10x128xf32>
    %242 = arith.mulf %39, %241 : vector<10x128xf32>
    %cst_95 = arith.constant 4.000000e-01 : f32
    %243 = vector.broadcast %cst_95 : f32 to vector<10x128xf32>
    %244 = arith.mulf %243, %214 : vector<10x128xf32>
    %245 = arith.addf %242, %244 : vector<10x128xf32>
    %246 = math.tanh %245 : vector<10x128xf32>
    %247 = arith.mulf %45, %246 : vector<10x128xf32>
    %cst_96 = arith.constant 4.000000e-01 : f32
    %248 = vector.broadcast %cst_96 : f32 to vector<10x128xf32>
    %249 = arith.mulf %248, %219 : vector<10x128xf32>
    %250 = arith.addf %247, %249 : vector<10x128xf32>
    %251 = math.tanh %250 : vector<10x128xf32>
    %252 = arith.mulf %51, %251 : vector<10x128xf32>
    %cst_97 = arith.constant 4.000000e-01 : f32
    %253 = vector.broadcast %cst_97 : f32 to vector<10x128xf32>
    %254 = arith.mulf %253, %224 : vector<10x128xf32>
    %255 = arith.addf %252, %254 : vector<10x128xf32>
    %256 = math.tanh %255 : vector<10x128xf32>
    %257 = arith.mulf %57, %256 : vector<10x128xf32>
    %cst_98 = arith.constant 4.000000e-01 : f32
    %258 = vector.broadcast %cst_98 : f32 to vector<10x128xf32>
    %259 = arith.mulf %258, %229 : vector<10x128xf32>
    %260 = arith.addf %257, %259 : vector<10x128xf32>
    %261 = math.tanh %260 : vector<10x128xf32>
    %c6 = arith.constant 6 : index
    %c0_99 = arith.constant 0 : index
    %262 = vector.load %arg11[%c6, %c0_99] : memref<49x128xf32, #tpu.memory_space<vmem>>, vector<1x128xf32>
    %263 = vector.broadcast %262 : vector<1x128xf32> to vector<10x128xf32>
    %264 = arith.mulf %27, %263 : vector<10x128xf32>
    %cst_100 = arith.constant 4.000000e-01 : f32
    %265 = vector.broadcast %cst_100 : f32 to vector<10x128xf32>
    %266 = arith.mulf %265, %236 : vector<10x128xf32>
    %267 = arith.addf %264, %266 : vector<10x128xf32>
    %268 = math.tanh %267 : vector<10x128xf32>
    %269 = arith.mulf %33, %268 : vector<10x128xf32>
    %cst_101 = arith.constant 4.000000e-01 : f32
    %270 = vector.broadcast %cst_101 : f32 to vector<10x128xf32>
    %271 = arith.mulf %270, %241 : vector<10x128xf32>
    %272 = arith.addf %269, %271 : vector<10x128xf32>
    %273 = math.tanh %272 : vector<10x128xf32>
    %274 = arith.mulf %39, %273 : vector<10x128xf32>
    %cst_102 = arith.constant 4.000000e-01 : f32
    %275 = vector.broadcast %cst_102 : f32 to vector<10x128xf32>
    %276 = arith.mulf %275, %246 : vector<10x128xf32>
    %277 = arith.addf %274, %276 : vector<10x128xf32>
    %278 = math.tanh %277 : vector<10x128xf32>
    %279 = arith.mulf %45, %278 : vector<10x128xf32>
    %cst_103 = arith.constant 4.000000e-01 : f32
    %280 = vector.broadcast %cst_103 : f32 to vector<10x128xf32>
    %281 = arith.mulf %280, %251 : vector<10x128xf32>
    %282 = arith.addf %279, %281 : vector<10x128xf32>
    %283 = math.tanh %282 : vector<10x128xf32>
    %284 = arith.mulf %51, %283 : vector<10x128xf32>
    %cst_104 = arith.constant 4.000000e-01 : f32
    %285 = vector.broadcast %cst_104 : f32 to vector<10x128xf32>
    %286 = arith.mulf %285, %256 : vector<10x128xf32>
    %287 = arith.addf %284, %286 : vector<10x128xf32>
    %288 = math.tanh %287 : vector<10x128xf32>
    %289 = arith.mulf %57, %288 : vector<10x128xf32>
    %cst_105 = arith.constant 4.000000e-01 : f32
    %290 = vector.broadcast %cst_105 : f32 to vector<10x128xf32>
    %291 = arith.mulf %290, %261 : vector<10x128xf32>
    %292 = arith.addf %289, %291 : vector<10x128xf32>
    %293 = math.tanh %292 : vector<10x128xf32>
    %c7 = arith.constant 7 : index
    %c0_106 = arith.constant 0 : index
    %294 = vector.load %arg11[%c7, %c0_106] : memref<49x128xf32, #tpu.memory_space<vmem>>, vector<1x128xf32>
    %295 = vector.broadcast %294 : vector<1x128xf32> to vector<10x128xf32>
    %296 = arith.mulf %27, %295 : vector<10x128xf32>
    %cst_107 = arith.constant 4.000000e-01 : f32
    %297 = vector.broadcast %cst_107 : f32 to vector<10x128xf32>
    %298 = arith.mulf %297, %268 : vector<10x128xf32>
    %299 = arith.addf %296, %298 : vector<10x128xf32>
    %300 = math.tanh %299 : vector<10x128xf32>
    %301 = arith.mulf %33, %300 : vector<10x128xf32>
    %cst_108 = arith.constant 4.000000e-01 : f32
    %302 = vector.broadcast %cst_108 : f32 to vector<10x128xf32>
    %303 = arith.mulf %302, %273 : vector<10x128xf32>
    %304 = arith.addf %301, %303 : vector<10x128xf32>
    %305 = math.tanh %304 : vector<10x128xf32>
    %306 = arith.mulf %39, %305 : vector<10x128xf32>
    %cst_109 = arith.constant 4.000000e-01 : f32
    %307 = vector.broadcast %cst_109 : f32 to vector<10x128xf32>
    %308 = arith.mulf %307, %278 : vector<10x128xf32>
    %309 = arith.addf %306, %308 : vector<10x128xf32>
    %310 = math.tanh %309 : vector<10x128xf32>
    %311 = arith.mulf %45, %310 : vector<10x128xf32>
    %cst_110 = arith.constant 4.000000e-01 : f32
    %312 = vector.broadcast %cst_110 : f32 to vector<10x128xf32>
    %313 = arith.mulf %312, %283 : vector<10x128xf32>
    %314 = arith.addf %311, %313 : vector<10x128xf32>
    %315 = math.tanh %314 : vector<10x128xf32>
    %316 = arith.mulf %51, %315 : vector<10x128xf32>
    %cst_111 = arith.constant 4.000000e-01 : f32
    %317 = vector.broadcast %cst_111 : f32 to vector<10x128xf32>
    %318 = arith.mulf %317, %288 : vector<10x128xf32>
    %319 = arith.addf %316, %318 : vector<10x128xf32>
    %320 = math.tanh %319 : vector<10x128xf32>
    %321 = arith.mulf %57, %320 : vector<10x128xf32>
    %cst_112 = arith.constant 4.000000e-01 : f32
    %322 = vector.broadcast %cst_112 : f32 to vector<10x128xf32>
    %323 = arith.mulf %322, %293 : vector<10x128xf32>
    %324 = arith.addf %321, %323 : vector<10x128xf32>
    %325 = math.tanh %324 : vector<10x128xf32>
    %c8 = arith.constant 8 : index
    %c0_113 = arith.constant 0 : index
    %326 = vector.load %arg11[%c8, %c0_113] : memref<49x128xf32, #tpu.memory_space<vmem>>, vector<1x128xf32>
    %327 = vector.broadcast %326 : vector<1x128xf32> to vector<10x128xf32>
    %328 = arith.mulf %27, %327 : vector<10x128xf32>
    %cst_114 = arith.constant 4.000000e-01 : f32
    %329 = vector.broadcast %cst_114 : f32 to vector<10x128xf32>
    %330 = arith.mulf %329, %300 : vector<10x128xf32>
    %331 = arith.addf %328, %330 : vector<10x128xf32>
    %332 = math.tanh %331 : vector<10x128xf32>
    %333 = arith.mulf %33, %332 : vector<10x128xf32>
    %cst_115 = arith.constant 4.000000e-01 : f32
    %334 = vector.broadcast %cst_115 : f32 to vector<10x128xf32>
    %335 = arith.mulf %334, %305 : vector<10x128xf32>
    %336 = arith.addf %333, %335 : vector<10x128xf32>
    %337 = math.tanh %336 : vector<10x128xf32>
    %338 = arith.mulf %39, %337 : vector<10x128xf32>
    %cst_116 = arith.constant 4.000000e-01 : f32
    %339 = vector.broadcast %cst_116 : f32 to vector<10x128xf32>
    %340 = arith.mulf %339, %310 : vector<10x128xf32>
    %341 = arith.addf %338, %340 : vector<10x128xf32>
    %342 = math.tanh %341 : vector<10x128xf32>
    %343 = arith.mulf %45, %342 : vector<10x128xf32>
    %cst_117 = arith.constant 4.000000e-01 : f32
    %344 = vector.broadcast %cst_117 : f32 to vector<10x128xf32>
    %345 = arith.mulf %344, %315 : vector<10x128xf32>
    %346 = arith.addf %343, %345 : vector<10x128xf32>
    %347 = math.tanh %346 : vector<10x128xf32>
    %348 = arith.mulf %51, %347 : vector<10x128xf32>
    %cst_118 = arith.constant 4.000000e-01 : f32
    %349 = vector.broadcast %cst_118 : f32 to vector<10x128xf32>
    %350 = arith.mulf %349, %320 : vector<10x128xf32>
    %351 = arith.addf %348, %350 : vector<10x128xf32>
    %352 = math.tanh %351 : vector<10x128xf32>
    %353 = arith.mulf %57, %352 : vector<10x128xf32>
    %cst_119 = arith.constant 4.000000e-01 : f32
    %354 = vector.broadcast %cst_119 : f32 to vector<10x128xf32>
    %355 = arith.mulf %354, %325 : vector<10x128xf32>
    %356 = arith.addf %353, %355 : vector<10x128xf32>
    %357 = math.tanh %356 : vector<10x128xf32>
    %c9 = arith.constant 9 : index
    %c0_120 = arith.constant 0 : index
    %358 = vector.load %arg11[%c9, %c0_120] : memref<49x128xf32, #tpu.memory_space<vmem>>, vector<1x128xf32>
    %359 = vector.broadcast %358 : vector<1x128xf32> to vector<10x128xf32>
    %360 = arith.mulf %27, %359 : vector<10x128xf32>
    %cst_121 = arith.constant 4.000000e-01 : f32
    %361 = vector.broadcast %cst_121 : f32 to vector<10x128xf32>
    %362 = arith.mulf %361, %332 : vector<10x128xf32>
    %363 = arith.addf %360, %362 : vector<10x128xf32>
    %364 = math.tanh %363 : vector<10x128xf32>
    %365 = arith.mulf %33, %364 : vector<10x128xf32>
    %cst_122 = arith.constant 4.000000e-01 : f32
    %366 = vector.broadcast %cst_122 : f32 to vector<10x128xf32>
    %367 = arith.mulf %366, %337 : vector<10x128xf32>
    %368 = arith.addf %365, %367 : vector<10x128xf32>
    %369 = math.tanh %368 : vector<10x128xf32>
    %370 = arith.mulf %39, %369 : vector<10x128xf32>
    %cst_123 = arith.constant 4.000000e-01 : f32
    %371 = vector.broadcast %cst_123 : f32 to vector<10x128xf32>
    %372 = arith.mulf %371, %342 : vector<10x128xf32>
    %373 = arith.addf %370, %372 : vector<10x128xf32>
    %374 = math.tanh %373 : vector<10x128xf32>
    %375 = arith.mulf %45, %374 : vector<10x128xf32>
    %cst_124 = arith.constant 4.000000e-01 : f32
    %376 = vector.broadcast %cst_124 : f32 to vector<10x128xf32>
    %377 = arith.mulf %376, %347 : vector<10x128xf32>
    %378 = arith.addf %375, %377 : vector<10x128xf32>
    %379 = math.tanh %378 : vector<10x128xf32>
    %380 = arith.mulf %51, %379 : vector<10x128xf32>
    %cst_125 = arith.constant 4.000000e-01 : f32
    %381 = vector.broadcast %cst_125 : f32 to vector<10x128xf32>
    %382 = arith.mulf %381, %352 : vector<10x128xf32>
    %383 = arith.addf %380, %382 : vector<10x128xf32>
    %384 = math.tanh %383 : vector<10x128xf32>
    %385 = arith.mulf %57, %384 : vector<10x128xf32>
    %cst_126 = arith.constant 4.000000e-01 : f32
    %386 = vector.broadcast %cst_126 : f32 to vector<10x128xf32>
    %387 = arith.mulf %386, %357 : vector<10x128xf32>
    %388 = arith.addf %385, %387 : vector<10x128xf32>
    %389 = math.tanh %388 : vector<10x128xf32>
    %c10 = arith.constant 10 : index
    %c0_127 = arith.constant 0 : index
    %390 = vector.load %arg11[%c10, %c0_127] : memref<49x128xf32, #tpu.memory_space<vmem>>, vector<1x128xf32>
    %391 = vector.broadcast %390 : vector<1x128xf32> to vector<10x128xf32>
    %392 = arith.mulf %27, %391 : vector<10x128xf32>
    %cst_128 = arith.constant 4.000000e-01 : f32
    %393 = vector.broadcast %cst_128 : f32 to vector<10x128xf32>
    %394 = arith.mulf %393, %364 : vector<10x128xf32>
    %395 = arith.addf %392, %394 : vector<10x128xf32>
    %396 = math.tanh %395 : vector<10x128xf32>
    %397 = arith.mulf %33, %396 : vector<10x128xf32>
    %cst_129 = arith.constant 4.000000e-01 : f32
    %398 = vector.broadcast %cst_129 : f32 to vector<10x128xf32>
    %399 = arith.mulf %398, %369 : vector<10x128xf32>
    %400 = arith.addf %397, %399 : vector<10x128xf32>
    %401 = math.tanh %400 : vector<10x128xf32>
    %402 = arith.mulf %39, %401 : vector<10x128xf32>
    %cst_130 = arith.constant 4.000000e-01 : f32
    %403 = vector.broadcast %cst_130 : f32 to vector<10x128xf32>
    %404 = arith.mulf %403, %374 : vector<10x128xf32>
    %405 = arith.addf %402, %404 : vector<10x128xf32>
    %406 = math.tanh %405 : vector<10x128xf32>
    %407 = arith.mulf %45, %406 : vector<10x128xf32>
    %cst_131 = arith.constant 4.000000e-01 : f32
    %408 = vector.broadcast %cst_131 : f32 to vector<10x128xf32>
    %409 = arith.mulf %408, %379 : vector<10x128xf32>
    %410 = arith.addf %407, %409 : vector<10x128xf32>
    %411 = math.tanh %410 : vector<10x128xf32>
    %412 = arith.mulf %51, %411 : vector<10x128xf32>
    %cst_132 = arith.constant 4.000000e-01 : f32
    %413 = vector.broadcast %cst_132 : f32 to vector<10x128xf32>
    %414 = arith.mulf %413, %384 : vector<10x128xf32>
    %415 = arith.addf %412, %414 : vector<10x128xf32>
    %416 = math.tanh %415 : vector<10x128xf32>
    %417 = arith.mulf %57, %416 : vector<10x128xf32>
    %cst_133 = arith.constant 4.000000e-01 : f32
    %418 = vector.broadcast %cst_133 : f32 to vector<10x128xf32>
    %419 = arith.mulf %418, %389 : vector<10x128xf32>
    %420 = arith.addf %417, %419 : vector<10x128xf32>
    %421 = math.tanh %420 : vector<10x128xf32>
    %c11 = arith.constant 11 : index
    %c0_134 = arith.constant 0 : index
    %422 = vector.load %arg11[%c11, %c0_134] : memref<49x128xf32, #tpu.memory_space<vmem>>, vector<1x128xf32>
    %423 = vector.broadcast %422 : vector<1x128xf32> to vector<10x128xf32>
    %424 = arith.mulf %27, %423 : vector<10x128xf32>
    %cst_135 = arith.constant 4.000000e-01 : f32
    %425 = vector.broadcast %cst_135 : f32 to vector<10x128xf32>
    %426 = arith.mulf %425, %396 : vector<10x128xf32>
    %427 = arith.addf %424, %426 : vector<10x128xf32>
    %428 = math.tanh %427 : vector<10x128xf32>
    %429 = arith.mulf %33, %428 : vector<10x128xf32>
    %cst_136 = arith.constant 4.000000e-01 : f32
    %430 = vector.broadcast %cst_136 : f32 to vector<10x128xf32>
    %431 = arith.mulf %430, %401 : vector<10x128xf32>
    %432 = arith.addf %429, %431 : vector<10x128xf32>
    %433 = math.tanh %432 : vector<10x128xf32>
    %434 = arith.mulf %39, %433 : vector<10x128xf32>
    %cst_137 = arith.constant 4.000000e-01 : f32
    %435 = vector.broadcast %cst_137 : f32 to vector<10x128xf32>
    %436 = arith.mulf %435, %406 : vector<10x128xf32>
    %437 = arith.addf %434, %436 : vector<10x128xf32>
    %438 = math.tanh %437 : vector<10x128xf32>
    %439 = arith.mulf %45, %438 : vector<10x128xf32>
    %cst_138 = arith.constant 4.000000e-01 : f32
    %440 = vector.broadcast %cst_138 : f32 to vector<10x128xf32>
    %441 = arith.mulf %440, %411 : vector<10x128xf32>
    %442 = arith.addf %439, %441 : vector<10x128xf32>
    %443 = math.tanh %442 : vector<10x128xf32>
    %444 = arith.mulf %51, %443 : vector<10x128xf32>
    %cst_139 = arith.constant 4.000000e-01 : f32
    %445 = vector.broadcast %cst_139 : f32 to vector<10x128xf32>
    %446 = arith.mulf %445, %416 : vector<10x128xf32>
    %447 = arith.addf %444, %446 : vector<10x128xf32>
    %448 = math.tanh %447 : vector<10x128xf32>
    %449 = arith.mulf %57, %448 : vector<10x128xf32>
    %cst_140 = arith.constant 4.000000e-01 : f32
    %450 = vector.broadcast %cst_140 : f32 to vector<10x128xf32>
    %451 = arith.mulf %450, %421 : vector<10x128xf32>
    %452 = arith.addf %449, %451 : vector<10x128xf32>
    %453 = math.tanh %452 : vector<10x128xf32>
    %c12 = arith.constant 12 : index
    %c0_141 = arith.constant 0 : index
    %454 = vector.load %arg11[%c12, %c0_141] : memref<49x128xf32, #tpu.memory_space<vmem>>, vector<1x128xf32>
    %455 = vector.broadcast %454 : vector<1x128xf32> to vector<10x128xf32>
    %456 = arith.mulf %27, %455 : vector<10x128xf32>
    %cst_142 = arith.constant 4.000000e-01 : f32
    %457 = vector.broadcast %cst_142 : f32 to vector<10x128xf32>
    %458 = arith.mulf %457, %428 : vector<10x128xf32>
    %459 = arith.addf %456, %458 : vector<10x128xf32>
    %460 = math.tanh %459 : vector<10x128xf32>
    %461 = arith.mulf %33, %460 : vector<10x128xf32>
    %cst_143 = arith.constant 4.000000e-01 : f32
    %462 = vector.broadcast %cst_143 : f32 to vector<10x128xf32>
    %463 = arith.mulf %462, %433 : vector<10x128xf32>
    %464 = arith.addf %461, %463 : vector<10x128xf32>
    %465 = math.tanh %464 : vector<10x128xf32>
    %466 = arith.mulf %39, %465 : vector<10x128xf32>
    %cst_144 = arith.constant 4.000000e-01 : f32
    %467 = vector.broadcast %cst_144 : f32 to vector<10x128xf32>
    %468 = arith.mulf %467, %438 : vector<10x128xf32>
    %469 = arith.addf %466, %468 : vector<10x128xf32>
    %470 = math.tanh %469 : vector<10x128xf32>
    %471 = arith.mulf %45, %470 : vector<10x128xf32>
    %cst_145 = arith.constant 4.000000e-01 : f32
    %472 = vector.broadcast %cst_145 : f32 to vector<10x128xf32>
    %473 = arith.mulf %472, %443 : vector<10x128xf32>
    %474 = arith.addf %471, %473 : vector<10x128xf32>
    %475 = math.tanh %474 : vector<10x128xf32>
    %476 = arith.mulf %51, %475 : vector<10x128xf32>
    %cst_146 = arith.constant 4.000000e-01 : f32
    %477 = vector.broadcast %cst_146 : f32 to vector<10x128xf32>
    %478 = arith.mulf %477, %448 : vector<10x128xf32>
    %479 = arith.addf %476, %478 : vector<10x128xf32>
    %480 = math.tanh %479 : vector<10x128xf32>
    %481 = arith.mulf %57, %480 : vector<10x128xf32>
    %cst_147 = arith.constant 4.000000e-01 : f32
    %482 = vector.broadcast %cst_147 : f32 to vector<10x128xf32>
    %483 = arith.mulf %482, %453 : vector<10x128xf32>
    %484 = arith.addf %481, %483 : vector<10x128xf32>
    %485 = math.tanh %484 : vector<10x128xf32>
    %c13 = arith.constant 13 : index
    %c0_148 = arith.constant 0 : index
    %486 = vector.load %arg11[%c13, %c0_148] : memref<49x128xf32, #tpu.memory_space<vmem>>, vector<1x128xf32>
    %487 = vector.broadcast %486 : vector<1x128xf32> to vector<10x128xf32>
    %488 = arith.mulf %27, %487 : vector<10x128xf32>
    %cst_149 = arith.constant 4.000000e-01 : f32
    %489 = vector.broadcast %cst_149 : f32 to vector<10x128xf32>
    %490 = arith.mulf %489, %460 : vector<10x128xf32>
    %491 = arith.addf %488, %490 : vector<10x128xf32>
    %492 = math.tanh %491 : vector<10x128xf32>
    %493 = arith.mulf %33, %492 : vector<10x128xf32>
    %cst_150 = arith.constant 4.000000e-01 : f32
    %494 = vector.broadcast %cst_150 : f32 to vector<10x128xf32>
    %495 = arith.mulf %494, %465 : vector<10x128xf32>
    %496 = arith.addf %493, %495 : vector<10x128xf32>
    %497 = math.tanh %496 : vector<10x128xf32>
    %498 = arith.mulf %39, %497 : vector<10x128xf32>
    %cst_151 = arith.constant 4.000000e-01 : f32
    %499 = vector.broadcast %cst_151 : f32 to vector<10x128xf32>
    %500 = arith.mulf %499, %470 : vector<10x128xf32>
    %501 = arith.addf %498, %500 : vector<10x128xf32>
    %502 = math.tanh %501 : vector<10x128xf32>
    %503 = arith.mulf %45, %502 : vector<10x128xf32>
    %cst_152 = arith.constant 4.000000e-01 : f32
    %504 = vector.broadcast %cst_152 : f32 to vector<10x128xf32>
    %505 = arith.mulf %504, %475 : vector<10x128xf32>
    %506 = arith.addf %503, %505 : vector<10x128xf32>
    %507 = math.tanh %506 : vector<10x128xf32>
    %508 = arith.mulf %51, %507 : vector<10x128xf32>
    %cst_153 = arith.constant 4.000000e-01 : f32
    %509 = vector.broadcast %cst_153 : f32 to vector<10x128xf32>
    %510 = arith.mulf %509, %480 : vector<10x128xf32>
    %511 = arith.addf %508, %510 : vector<10x128xf32>
    %512 = math.tanh %511 : vector<10x128xf32>
    %513 = arith.mulf %57, %512 : vector<10x128xf32>
    %cst_154 = arith.constant 4.000000e-01 : f32
    %514 = vector.broadcast %cst_154 : f32 to vector<10x128xf32>
    %515 = arith.mulf %514, %485 : vector<10x128xf32>
    %516 = arith.addf %513, %515 : vector<10x128xf32>
    %517 = math.tanh %516 : vector<10x128xf32>
    %c14 = arith.constant 14 : index
    %c0_155 = arith.constant 0 : index
    %518 = vector.load %arg11[%c14, %c0_155] : memref<49x128xf32, #tpu.memory_space<vmem>>, vector<1x128xf32>
    %519 = vector.broadcast %518 : vector<1x128xf32> to vector<10x128xf32>
    %520 = arith.mulf %27, %519 : vector<10x128xf32>
    %cst_156 = arith.constant 4.000000e-01 : f32
    %521 = vector.broadcast %cst_156 : f32 to vector<10x128xf32>
    %522 = arith.mulf %521, %492 : vector<10x128xf32>
    %523 = arith.addf %520, %522 : vector<10x128xf32>
    %524 = math.tanh %523 : vector<10x128xf32>
    %525 = arith.mulf %33, %524 : vector<10x128xf32>
    %cst_157 = arith.constant 4.000000e-01 : f32
    %526 = vector.broadcast %cst_157 : f32 to vector<10x128xf32>
    %527 = arith.mulf %526, %497 : vector<10x128xf32>
    %528 = arith.addf %525, %527 : vector<10x128xf32>
    %529 = math.tanh %528 : vector<10x128xf32>
    %530 = arith.mulf %39, %529 : vector<10x128xf32>
    %cst_158 = arith.constant 4.000000e-01 : f32
    %531 = vector.broadcast %cst_158 : f32 to vector<10x128xf32>
    %532 = arith.mulf %531, %502 : vector<10x128xf32>
    %533 = arith.addf %530, %532 : vector<10x128xf32>
    %534 = math.tanh %533 : vector<10x128xf32>
    %535 = arith.mulf %45, %534 : vector<10x128xf32>
    %cst_159 = arith.constant 4.000000e-01 : f32
    %536 = vector.broadcast %cst_159 : f32 to vector<10x128xf32>
    %537 = arith.mulf %536, %507 : vector<10x128xf32>
    %538 = arith.addf %535, %537 : vector<10x128xf32>
    %539 = math.tanh %538 : vector<10x128xf32>
    %540 = arith.mulf %51, %539 : vector<10x128xf32>
    %cst_160 = arith.constant 4.000000e-01 : f32
    %541 = vector.broadcast %cst_160 : f32 to vector<10x128xf32>
    %542 = arith.mulf %541, %512 : vector<10x128xf32>
    %543 = arith.addf %540, %542 : vector<10x128xf32>
    %544 = math.tanh %543 : vector<10x128xf32>
    %545 = arith.mulf %57, %544 : vector<10x128xf32>
    %cst_161 = arith.constant 4.000000e-01 : f32
    %546 = vector.broadcast %cst_161 : f32 to vector<10x128xf32>
    %547 = arith.mulf %546, %517 : vector<10x128xf32>
    %548 = arith.addf %545, %547 : vector<10x128xf32>
    %549 = math.tanh %548 : vector<10x128xf32>
    %c15 = arith.constant 15 : index
    %c0_162 = arith.constant 0 : index
    %550 = vector.load %arg11[%c15, %c0_162] : memref<49x128xf32, #tpu.memory_space<vmem>>, vector<1x128xf32>
    %551 = vector.broadcast %550 : vector<1x128xf32> to vector<10x128xf32>
    %552 = arith.mulf %27, %551 : vector<10x128xf32>
    %cst_163 = arith.constant 4.000000e-01 : f32
    %553 = vector.broadcast %cst_163 : f32 to vector<10x128xf32>
    %554 = arith.mulf %553, %524 : vector<10x128xf32>
    %555 = arith.addf %552, %554 : vector<10x128xf32>
    %556 = math.tanh %555 : vector<10x128xf32>
    %557 = arith.mulf %33, %556 : vector<10x128xf32>
    %cst_164 = arith.constant 4.000000e-01 : f32
    %558 = vector.broadcast %cst_164 : f32 to vector<10x128xf32>
    %559 = arith.mulf %558, %529 : vector<10x128xf32>
    %560 = arith.addf %557, %559 : vector<10x128xf32>
    %561 = math.tanh %560 : vector<10x128xf32>
    %562 = arith.mulf %39, %561 : vector<10x128xf32>
    %cst_165 = arith.constant 4.000000e-01 : f32
    %563 = vector.broadcast %cst_165 : f32 to vector<10x128xf32>
    %564 = arith.mulf %563, %534 : vector<10x128xf32>
    %565 = arith.addf %562, %564 : vector<10x128xf32>
    %566 = math.tanh %565 : vector<10x128xf32>
    %567 = arith.mulf %45, %566 : vector<10x128xf32>
    %cst_166 = arith.constant 4.000000e-01 : f32
    %568 = vector.broadcast %cst_166 : f32 to vector<10x128xf32>
    %569 = arith.mulf %568, %539 : vector<10x128xf32>
    %570 = arith.addf %567, %569 : vector<10x128xf32>
    %571 = math.tanh %570 : vector<10x128xf32>
    %572 = arith.mulf %51, %571 : vector<10x128xf32>
    %cst_167 = arith.constant 4.000000e-01 : f32
    %573 = vector.broadcast %cst_167 : f32 to vector<10x128xf32>
    %574 = arith.mulf %573, %544 : vector<10x128xf32>
    %575 = arith.addf %572, %574 : vector<10x128xf32>
    %576 = math.tanh %575 : vector<10x128xf32>
    %577 = arith.mulf %57, %576 : vector<10x128xf32>
    %cst_168 = arith.constant 4.000000e-01 : f32
    %578 = vector.broadcast %cst_168 : f32 to vector<10x128xf32>
    %579 = arith.mulf %578, %549 : vector<10x128xf32>
    %580 = arith.addf %577, %579 : vector<10x128xf32>
    %581 = math.tanh %580 : vector<10x128xf32>
    %c16 = arith.constant 16 : index
    %c0_169 = arith.constant 0 : index
    %582 = vector.load %arg11[%c16, %c0_169] : memref<49x128xf32, #tpu.memory_space<vmem>>, vector<1x128xf32>
    %583 = vector.broadcast %582 : vector<1x128xf32> to vector<10x128xf32>
    %584 = arith.mulf %27, %583 : vector<10x128xf32>
    %cst_170 = arith.constant 4.000000e-01 : f32
    %585 = vector.broadcast %cst_170 : f32 to vector<10x128xf32>
    %586 = arith.mulf %585, %556 : vector<10x128xf32>
    %587 = arith.addf %584, %586 : vector<10x128xf32>
    %588 = math.tanh %587 : vector<10x128xf32>
    %589 = arith.mulf %33, %588 : vector<10x128xf32>
    %cst_171 = arith.constant 4.000000e-01 : f32
    %590 = vector.broadcast %cst_171 : f32 to vector<10x128xf32>
    %591 = arith.mulf %590, %561 : vector<10x128xf32>
    %592 = arith.addf %589, %591 : vector<10x128xf32>
    %593 = math.tanh %592 : vector<10x128xf32>
    %594 = arith.mulf %39, %593 : vector<10x128xf32>
    %cst_172 = arith.constant 4.000000e-01 : f32
    %595 = vector.broadcast %cst_172 : f32 to vector<10x128xf32>
    %596 = arith.mulf %595, %566 : vector<10x128xf32>
    %597 = arith.addf %594, %596 : vector<10x128xf32>
    %598 = math.tanh %597 : vector<10x128xf32>
    %599 = arith.mulf %45, %598 : vector<10x128xf32>
    %cst_173 = arith.constant 4.000000e-01 : f32
    %600 = vector.broadcast %cst_173 : f32 to vector<10x128xf32>
    %601 = arith.mulf %600, %571 : vector<10x128xf32>
    %602 = arith.addf %599, %601 : vector<10x128xf32>
    %603 = math.tanh %602 : vector<10x128xf32>
    %604 = arith.mulf %51, %603 : vector<10x128xf32>
    %cst_174 = arith.constant 4.000000e-01 : f32
    %605 = vector.broadcast %cst_174 : f32 to vector<10x128xf32>
    %606 = arith.mulf %605, %576 : vector<10x128xf32>
    %607 = arith.addf %604, %606 : vector<10x128xf32>
    %608 = math.tanh %607 : vector<10x128xf32>
    %609 = arith.mulf %57, %608 : vector<10x128xf32>
    %cst_175 = arith.constant 4.000000e-01 : f32
    %610 = vector.broadcast %cst_175 : f32 to vector<10x128xf32>
    %611 = arith.mulf %610, %581 : vector<10x128xf32>
    %612 = arith.addf %609, %611 : vector<10x128xf32>
    %613 = math.tanh %612 : vector<10x128xf32>
    %c17 = arith.constant 17 : index
    %c0_176 = arith.constant 0 : index
    %614 = vector.load %arg11[%c17, %c0_176] : memref<49x128xf32, #tpu.memory_space<vmem>>, vector<1x128xf32>
    %615 = vector.broadcast %614 : vector<1x128xf32> to vector<10x128xf32>
    %616 = arith.mulf %27, %615 : vector<10x128xf32>
    %cst_177 = arith.constant 4.000000e-01 : f32
    %617 = vector.broadcast %cst_177 : f32 to vector<10x128xf32>
    %618 = arith.mulf %617, %588 : vector<10x128xf32>
    %619 = arith.addf %616, %618 : vector<10x128xf32>
    %620 = math.tanh %619 : vector<10x128xf32>
    %621 = arith.mulf %33, %620 : vector<10x128xf32>
    %cst_178 = arith.constant 4.000000e-01 : f32
    %622 = vector.broadcast %cst_178 : f32 to vector<10x128xf32>
    %623 = arith.mulf %622, %593 : vector<10x128xf32>
    %624 = arith.addf %621, %623 : vector<10x128xf32>
    %625 = math.tanh %624 : vector<10x128xf32>
    %626 = arith.mulf %39, %625 : vector<10x128xf32>
    %cst_179 = arith.constant 4.000000e-01 : f32
    %627 = vector.broadcast %cst_179 : f32 to vector<10x128xf32>
    %628 = arith.mulf %627, %598 : vector<10x128xf32>
    %629 = arith.addf %626, %628 : vector<10x128xf32>
    %630 = math.tanh %629 : vector<10x128xf32>
    %631 = arith.mulf %45, %630 : vector<10x128xf32>
    %cst_180 = arith.constant 4.000000e-01 : f32
    %632 = vector.broadcast %cst_180 : f32 to vector<10x128xf32>
    %633 = arith.mulf %632, %603 : vector<10x128xf32>
    %634 = arith.addf %631, %633 : vector<10x128xf32>
    %635 = math.tanh %634 : vector<10x128xf32>
    %636 = arith.mulf %51, %635 : vector<10x128xf32>
    %cst_181 = arith.constant 4.000000e-01 : f32
    %637 = vector.broadcast %cst_181 : f32 to vector<10x128xf32>
    %638 = arith.mulf %637, %608 : vector<10x128xf32>
    %639 = arith.addf %636, %638 : vector<10x128xf32>
    %640 = math.tanh %639 : vector<10x128xf32>
    %641 = arith.mulf %57, %640 : vector<10x128xf32>
    %cst_182 = arith.constant 4.000000e-01 : f32
    %642 = vector.broadcast %cst_182 : f32 to vector<10x128xf32>
    %643 = arith.mulf %642, %613 : vector<10x128xf32>
    %644 = arith.addf %641, %643 : vector<10x128xf32>
    %645 = math.tanh %644 : vector<10x128xf32>
    %c18 = arith.constant 18 : index
    %c0_183 = arith.constant 0 : index
    %646 = vector.load %arg11[%c18, %c0_183] : memref<49x128xf32, #tpu.memory_space<vmem>>, vector<1x128xf32>
    %647 = vector.broadcast %646 : vector<1x128xf32> to vector<10x128xf32>
    %648 = arith.mulf %27, %647 : vector<10x128xf32>
    %cst_184 = arith.constant 4.000000e-01 : f32
    %649 = vector.broadcast %cst_184 : f32 to vector<10x128xf32>
    %650 = arith.mulf %649, %620 : vector<10x128xf32>
    %651 = arith.addf %648, %650 : vector<10x128xf32>
    %652 = math.tanh %651 : vector<10x128xf32>
    %653 = arith.mulf %33, %652 : vector<10x128xf32>
    %cst_185 = arith.constant 4.000000e-01 : f32
    %654 = vector.broadcast %cst_185 : f32 to vector<10x128xf32>
    %655 = arith.mulf %654, %625 : vector<10x128xf32>
    %656 = arith.addf %653, %655 : vector<10x128xf32>
    %657 = math.tanh %656 : vector<10x128xf32>
    %658 = arith.mulf %39, %657 : vector<10x128xf32>
    %cst_186 = arith.constant 4.000000e-01 : f32
    %659 = vector.broadcast %cst_186 : f32 to vector<10x128xf32>
    %660 = arith.mulf %659, %630 : vector<10x128xf32>
    %661 = arith.addf %658, %660 : vector<10x128xf32>
    %662 = math.tanh %661 : vector<10x128xf32>
    %663 = arith.mulf %45, %662 : vector<10x128xf32>
    %cst_187 = arith.constant 4.000000e-01 : f32
    %664 = vector.broadcast %cst_187 : f32 to vector<10x128xf32>
    %665 = arith.mulf %664, %635 : vector<10x128xf32>
    %666 = arith.addf %663, %665 : vector<10x128xf32>
    %667 = math.tanh %666 : vector<10x128xf32>
    %668 = arith.mulf %51, %667 : vector<10x128xf32>
    %cst_188 = arith.constant 4.000000e-01 : f32
    %669 = vector.broadcast %cst_188 : f32 to vector<10x128xf32>
    %670 = arith.mulf %669, %640 : vector<10x128xf32>
    %671 = arith.addf %668, %670 : vector<10x128xf32>
    %672 = math.tanh %671 : vector<10x128xf32>
    %673 = arith.mulf %57, %672 : vector<10x128xf32>
    %cst_189 = arith.constant 4.000000e-01 : f32
    %674 = vector.broadcast %cst_189 : f32 to vector<10x128xf32>
    %675 = arith.mulf %674, %645 : vector<10x128xf32>
    %676 = arith.addf %673, %675 : vector<10x128xf32>
    %677 = math.tanh %676 : vector<10x128xf32>
    %c19 = arith.constant 19 : index
    %c0_190 = arith.constant 0 : index
    %678 = vector.load %arg11[%c19, %c0_190] : memref<49x128xf32, #tpu.memory_space<vmem>>, vector<1x128xf32>
    %679 = vector.broadcast %678 : vector<1x128xf32> to vector<10x128xf32>
    %680 = arith.mulf %27, %679 : vector<10x128xf32>
    %cst_191 = arith.constant 4.000000e-01 : f32
    %681 = vector.broadcast %cst_191 : f32 to vector<10x128xf32>
    %682 = arith.mulf %681, %652 : vector<10x128xf32>
    %683 = arith.addf %680, %682 : vector<10x128xf32>
    %684 = math.tanh %683 : vector<10x128xf32>
    %685 = arith.mulf %33, %684 : vector<10x128xf32>
    %cst_192 = arith.constant 4.000000e-01 : f32
    %686 = vector.broadcast %cst_192 : f32 to vector<10x128xf32>
    %687 = arith.mulf %686, %657 : vector<10x128xf32>
    %688 = arith.addf %685, %687 : vector<10x128xf32>
    %689 = math.tanh %688 : vector<10x128xf32>
    %690 = arith.mulf %39, %689 : vector<10x128xf32>
    %cst_193 = arith.constant 4.000000e-01 : f32
    %691 = vector.broadcast %cst_193 : f32 to vector<10x128xf32>
    %692 = arith.mulf %691, %662 : vector<10x128xf32>
    %693 = arith.addf %690, %692 : vector<10x128xf32>
    %694 = math.tanh %693 : vector<10x128xf32>
    %695 = arith.mulf %45, %694 : vector<10x128xf32>
    %cst_194 = arith.constant 4.000000e-01 : f32
    %696 = vector.broadcast %cst_194 : f32 to vector<10x128xf32>
    %697 = arith.mulf %696, %667 : vector<10x128xf32>
    %698 = arith.addf %695, %697 : vector<10x128xf32>
    %699 = math.tanh %698 : vector<10x128xf32>
    %700 = arith.mulf %51, %699 : vector<10x128xf32>
    %cst_195 = arith.constant 4.000000e-01 : f32
    %701 = vector.broadcast %cst_195 : f32 to vector<10x128xf32>
    %702 = arith.mulf %701, %672 : vector<10x128xf32>
    %703 = arith.addf %700, %702 : vector<10x128xf32>
    %704 = math.tanh %703 : vector<10x128xf32>
    %705 = arith.mulf %57, %704 : vector<10x128xf32>
    %cst_196 = arith.constant 4.000000e-01 : f32
    %706 = vector.broadcast %cst_196 : f32 to vector<10x128xf32>
    %707 = arith.mulf %706, %677 : vector<10x128xf32>
    %708 = arith.addf %705, %707 : vector<10x128xf32>
    %709 = math.tanh %708 : vector<10x128xf32>
    %c20 = arith.constant 20 : index
    %c0_197 = arith.constant 0 : index
    %710 = vector.load %arg11[%c20, %c0_197] : memref<49x128xf32, #tpu.memory_space<vmem>>, vector<1x128xf32>
    %711 = vector.broadcast %710 : vector<1x128xf32> to vector<10x128xf32>
    %712 = arith.mulf %27, %711 : vector<10x128xf32>
    %cst_198 = arith.constant 4.000000e-01 : f32
    %713 = vector.broadcast %cst_198 : f32 to vector<10x128xf32>
    %714 = arith.mulf %713, %684 : vector<10x128xf32>
    %715 = arith.addf %712, %714 : vector<10x128xf32>
    %716 = math.tanh %715 : vector<10x128xf32>
    %717 = arith.mulf %33, %716 : vector<10x128xf32>
    %cst_199 = arith.constant 4.000000e-01 : f32
    %718 = vector.broadcast %cst_199 : f32 to vector<10x128xf32>
    %719 = arith.mulf %718, %689 : vector<10x128xf32>
    %720 = arith.addf %717, %719 : vector<10x128xf32>
    %721 = math.tanh %720 : vector<10x128xf32>
    %722 = arith.mulf %39, %721 : vector<10x128xf32>
    %cst_200 = arith.constant 4.000000e-01 : f32
    %723 = vector.broadcast %cst_200 : f32 to vector<10x128xf32>
    %724 = arith.mulf %723, %694 : vector<10x128xf32>
    %725 = arith.addf %722, %724 : vector<10x128xf32>
    %726 = math.tanh %725 : vector<10x128xf32>
    %727 = arith.mulf %45, %726 : vector<10x128xf32>
    %cst_201 = arith.constant 4.000000e-01 : f32
    %728 = vector.broadcast %cst_201 : f32 to vector<10x128xf32>
    %729 = arith.mulf %728, %699 : vector<10x128xf32>
    %730 = arith.addf %727, %729 : vector<10x128xf32>
    %731 = math.tanh %730 : vector<10x128xf32>
    %732 = arith.mulf %51, %731 : vector<10x128xf32>
    %cst_202 = arith.constant 4.000000e-01 : f32
    %733 = vector.broadcast %cst_202 : f32 to vector<10x128xf32>
    %734 = arith.mulf %733, %704 : vector<10x128xf32>
    %735 = arith.addf %732, %734 : vector<10x128xf32>
    %736 = math.tanh %735 : vector<10x128xf32>
    %737 = arith.mulf %57, %736 : vector<10x128xf32>
    %cst_203 = arith.constant 4.000000e-01 : f32
    %738 = vector.broadcast %cst_203 : f32 to vector<10x128xf32>
    %739 = arith.mulf %738, %709 : vector<10x128xf32>
    %740 = arith.addf %737, %739 : vector<10x128xf32>
    %741 = math.tanh %740 : vector<10x128xf32>
    %c21 = arith.constant 21 : index
    %c0_204 = arith.constant 0 : index
    %742 = vector.load %arg11[%c21, %c0_204] : memref<49x128xf32, #tpu.memory_space<vmem>>, vector<1x128xf32>
    %743 = vector.broadcast %742 : vector<1x128xf32> to vector<10x128xf32>
    %744 = arith.mulf %27, %743 : vector<10x128xf32>
    %cst_205 = arith.constant 4.000000e-01 : f32
    %745 = vector.broadcast %cst_205 : f32 to vector<10x128xf32>
    %746 = arith.mulf %745, %716 : vector<10x128xf32>
    %747 = arith.addf %744, %746 : vector<10x128xf32>
    %748 = math.tanh %747 : vector<10x128xf32>
    %749 = arith.mulf %33, %748 : vector<10x128xf32>
    %cst_206 = arith.constant 4.000000e-01 : f32
    %750 = vector.broadcast %cst_206 : f32 to vector<10x128xf32>
    %751 = arith.mulf %750, %721 : vector<10x128xf32>
    %752 = arith.addf %749, %751 : vector<10x128xf32>
    %753 = math.tanh %752 : vector<10x128xf32>
    %754 = arith.mulf %39, %753 : vector<10x128xf32>
    %cst_207 = arith.constant 4.000000e-01 : f32
    %755 = vector.broadcast %cst_207 : f32 to vector<10x128xf32>
    %756 = arith.mulf %755, %726 : vector<10x128xf32>
    %757 = arith.addf %754, %756 : vector<10x128xf32>
    %758 = math.tanh %757 : vector<10x128xf32>
    %759 = arith.mulf %45, %758 : vector<10x128xf32>
    %cst_208 = arith.constant 4.000000e-01 : f32
    %760 = vector.broadcast %cst_208 : f32 to vector<10x128xf32>
    %761 = arith.mulf %760, %731 : vector<10x128xf32>
    %762 = arith.addf %759, %761 : vector<10x128xf32>
    %763 = math.tanh %762 : vector<10x128xf32>
    %764 = arith.mulf %51, %763 : vector<10x128xf32>
    %cst_209 = arith.constant 4.000000e-01 : f32
    %765 = vector.broadcast %cst_209 : f32 to vector<10x128xf32>
    %766 = arith.mulf %765, %736 : vector<10x128xf32>
    %767 = arith.addf %764, %766 : vector<10x128xf32>
    %768 = math.tanh %767 : vector<10x128xf32>
    %769 = arith.mulf %57, %768 : vector<10x128xf32>
    %cst_210 = arith.constant 4.000000e-01 : f32
    %770 = vector.broadcast %cst_210 : f32 to vector<10x128xf32>
    %771 = arith.mulf %770, %741 : vector<10x128xf32>
    %772 = arith.addf %769, %771 : vector<10x128xf32>
    %773 = math.tanh %772 : vector<10x128xf32>
    %c22 = arith.constant 22 : index
    %c0_211 = arith.constant 0 : index
    %774 = vector.load %arg11[%c22, %c0_211] : memref<49x128xf32, #tpu.memory_space<vmem>>, vector<1x128xf32>
    %775 = vector.broadcast %774 : vector<1x128xf32> to vector<10x128xf32>
    %776 = arith.mulf %27, %775 : vector<10x128xf32>
    %cst_212 = arith.constant 4.000000e-01 : f32
    %777 = vector.broadcast %cst_212 : f32 to vector<10x128xf32>
    %778 = arith.mulf %777, %748 : vector<10x128xf32>
    %779 = arith.addf %776, %778 : vector<10x128xf32>
    %780 = math.tanh %779 : vector<10x128xf32>
    %781 = arith.mulf %33, %780 : vector<10x128xf32>
    %cst_213 = arith.constant 4.000000e-01 : f32
    %782 = vector.broadcast %cst_213 : f32 to vector<10x128xf32>
    %783 = arith.mulf %782, %753 : vector<10x128xf32>
    %784 = arith.addf %781, %783 : vector<10x128xf32>
    %785 = math.tanh %784 : vector<10x128xf32>
    %786 = arith.mulf %39, %785 : vector<10x128xf32>
    %cst_214 = arith.constant 4.000000e-01 : f32
    %787 = vector.broadcast %cst_214 : f32 to vector<10x128xf32>
    %788 = arith.mulf %787, %758 : vector<10x128xf32>
    %789 = arith.addf %786, %788 : vector<10x128xf32>
    %790 = math.tanh %789 : vector<10x128xf32>
    %791 = arith.mulf %45, %790 : vector<10x128xf32>
    %cst_215 = arith.constant 4.000000e-01 : f32
    %792 = vector.broadcast %cst_215 : f32 to vector<10x128xf32>
    %793 = arith.mulf %792, %763 : vector<10x128xf32>
    %794 = arith.addf %791, %793 : vector<10x128xf32>
    %795 = math.tanh %794 : vector<10x128xf32>
    %796 = arith.mulf %51, %795 : vector<10x128xf32>
    %cst_216 = arith.constant 4.000000e-01 : f32
    %797 = vector.broadcast %cst_216 : f32 to vector<10x128xf32>
    %798 = arith.mulf %797, %768 : vector<10x128xf32>
    %799 = arith.addf %796, %798 : vector<10x128xf32>
    %800 = math.tanh %799 : vector<10x128xf32>
    %801 = arith.mulf %57, %800 : vector<10x128xf32>
    %cst_217 = arith.constant 4.000000e-01 : f32
    %802 = vector.broadcast %cst_217 : f32 to vector<10x128xf32>
    %803 = arith.mulf %802, %773 : vector<10x128xf32>
    %804 = arith.addf %801, %803 : vector<10x128xf32>
    %805 = math.tanh %804 : vector<10x128xf32>
    %c23 = arith.constant 23 : index
    %c0_218 = arith.constant 0 : index
    %806 = vector.load %arg11[%c23, %c0_218] : memref<49x128xf32, #tpu.memory_space<vmem>>, vector<1x128xf32>
    %807 = vector.broadcast %806 : vector<1x128xf32> to vector<10x128xf32>
    %808 = arith.mulf %27, %807 : vector<10x128xf32>
    %cst_219 = arith.constant 4.000000e-01 : f32
    %809 = vector.broadcast %cst_219 : f32 to vector<10x128xf32>
    %810 = arith.mulf %809, %780 : vector<10x128xf32>
    %811 = arith.addf %808, %810 : vector<10x128xf32>
    %812 = math.tanh %811 : vector<10x128xf32>
    %813 = arith.mulf %33, %812 : vector<10x128xf32>
    %cst_220 = arith.constant 4.000000e-01 : f32
    %814 = vector.broadcast %cst_220 : f32 to vector<10x128xf32>
    %815 = arith.mulf %814, %785 : vector<10x128xf32>
    %816 = arith.addf %813, %815 : vector<10x128xf32>
    %817 = math.tanh %816 : vector<10x128xf32>
    %818 = arith.mulf %39, %817 : vector<10x128xf32>
    %cst_221 = arith.constant 4.000000e-01 : f32
    %819 = vector.broadcast %cst_221 : f32 to vector<10x128xf32>
    %820 = arith.mulf %819, %790 : vector<10x128xf32>
    %821 = arith.addf %818, %820 : vector<10x128xf32>
    %822 = math.tanh %821 : vector<10x128xf32>
    %823 = arith.mulf %45, %822 : vector<10x128xf32>
    %cst_222 = arith.constant 4.000000e-01 : f32
    %824 = vector.broadcast %cst_222 : f32 to vector<10x128xf32>
    %825 = arith.mulf %824, %795 : vector<10x128xf32>
    %826 = arith.addf %823, %825 : vector<10x128xf32>
    %827 = math.tanh %826 : vector<10x128xf32>
    %828 = arith.mulf %51, %827 : vector<10x128xf32>
    %cst_223 = arith.constant 4.000000e-01 : f32
    %829 = vector.broadcast %cst_223 : f32 to vector<10x128xf32>
    %830 = arith.mulf %829, %800 : vector<10x128xf32>
    %831 = arith.addf %828, %830 : vector<10x128xf32>
    %832 = math.tanh %831 : vector<10x128xf32>
    %833 = arith.mulf %57, %832 : vector<10x128xf32>
    %cst_224 = arith.constant 4.000000e-01 : f32
    %834 = vector.broadcast %cst_224 : f32 to vector<10x128xf32>
    %835 = arith.mulf %834, %805 : vector<10x128xf32>
    %836 = arith.addf %833, %835 : vector<10x128xf32>
    %837 = math.tanh %836 : vector<10x128xf32>
    %c24 = arith.constant 24 : index
    %c0_225 = arith.constant 0 : index
    %838 = vector.load %arg11[%c24, %c0_225] : memref<49x128xf32, #tpu.memory_space<vmem>>, vector<1x128xf32>
    %839 = vector.broadcast %838 : vector<1x128xf32> to vector<10x128xf32>
    %840 = arith.mulf %27, %839 : vector<10x128xf32>
    %cst_226 = arith.constant 4.000000e-01 : f32
    %841 = vector.broadcast %cst_226 : f32 to vector<10x128xf32>
    %842 = arith.mulf %841, %812 : vector<10x128xf32>
    %843 = arith.addf %840, %842 : vector<10x128xf32>
    %844 = math.tanh %843 : vector<10x128xf32>
    %845 = arith.mulf %33, %844 : vector<10x128xf32>
    %cst_227 = arith.constant 4.000000e-01 : f32
    %846 = vector.broadcast %cst_227 : f32 to vector<10x128xf32>
    %847 = arith.mulf %846, %817 : vector<10x128xf32>
    %848 = arith.addf %845, %847 : vector<10x128xf32>
    %849 = math.tanh %848 : vector<10x128xf32>
    %850 = arith.mulf %39, %849 : vector<10x128xf32>
    %cst_228 = arith.constant 4.000000e-01 : f32
    %851 = vector.broadcast %cst_228 : f32 to vector<10x128xf32>
    %852 = arith.mulf %851, %822 : vector<10x128xf32>
    %853 = arith.addf %850, %852 : vector<10x128xf32>
    %854 = math.tanh %853 : vector<10x128xf32>
    %855 = arith.mulf %45, %854 : vector<10x128xf32>
    %cst_229 = arith.constant 4.000000e-01 : f32
    %856 = vector.broadcast %cst_229 : f32 to vector<10x128xf32>
    %857 = arith.mulf %856, %827 : vector<10x128xf32>
    %858 = arith.addf %855, %857 : vector<10x128xf32>
    %859 = math.tanh %858 : vector<10x128xf32>
    %860 = arith.mulf %51, %859 : vector<10x128xf32>
    %cst_230 = arith.constant 4.000000e-01 : f32
    %861 = vector.broadcast %cst_230 : f32 to vector<10x128xf32>
    %862 = arith.mulf %861, %832 : vector<10x128xf32>
    %863 = arith.addf %860, %862 : vector<10x128xf32>
    %864 = math.tanh %863 : vector<10x128xf32>
    %865 = arith.mulf %57, %864 : vector<10x128xf32>
    %cst_231 = arith.constant 4.000000e-01 : f32
    %866 = vector.broadcast %cst_231 : f32 to vector<10x128xf32>
    %867 = arith.mulf %866, %837 : vector<10x128xf32>
    %868 = arith.addf %865, %867 : vector<10x128xf32>
    %869 = math.tanh %868 : vector<10x128xf32>
    %c25 = arith.constant 25 : index
    %c0_232 = arith.constant 0 : index
    %870 = vector.load %arg11[%c25, %c0_232] : memref<49x128xf32, #tpu.memory_space<vmem>>, vector<1x128xf32>
    %871 = vector.broadcast %870 : vector<1x128xf32> to vector<10x128xf32>
    %872 = arith.mulf %27, %871 : vector<10x128xf32>
    %cst_233 = arith.constant 4.000000e-01 : f32
    %873 = vector.broadcast %cst_233 : f32 to vector<10x128xf32>
    %874 = arith.mulf %873, %844 : vector<10x128xf32>
    %875 = arith.addf %872, %874 : vector<10x128xf32>
    %876 = math.tanh %875 : vector<10x128xf32>
    %877 = arith.mulf %33, %876 : vector<10x128xf32>
    %cst_234 = arith.constant 4.000000e-01 : f32
    %878 = vector.broadcast %cst_234 : f32 to vector<10x128xf32>
    %879 = arith.mulf %878, %849 : vector<10x128xf32>
    %880 = arith.addf %877, %879 : vector<10x128xf32>
    %881 = math.tanh %880 : vector<10x128xf32>
    %882 = arith.mulf %39, %881 : vector<10x128xf32>
    %cst_235 = arith.constant 4.000000e-01 : f32
    %883 = vector.broadcast %cst_235 : f32 to vector<10x128xf32>
    %884 = arith.mulf %883, %854 : vector<10x128xf32>
    %885 = arith.addf %882, %884 : vector<10x128xf32>
    %886 = math.tanh %885 : vector<10x128xf32>
    %887 = arith.mulf %45, %886 : vector<10x128xf32>
    %cst_236 = arith.constant 4.000000e-01 : f32
    %888 = vector.broadcast %cst_236 : f32 to vector<10x128xf32>
    %889 = arith.mulf %888, %859 : vector<10x128xf32>
    %890 = arith.addf %887, %889 : vector<10x128xf32>
    %891 = math.tanh %890 : vector<10x128xf32>
    %892 = arith.mulf %51, %891 : vector<10x128xf32>
    %cst_237 = arith.constant 4.000000e-01 : f32
    %893 = vector.broadcast %cst_237 : f32 to vector<10x128xf32>
    %894 = arith.mulf %893, %864 : vector<10x128xf32>
    %895 = arith.addf %892, %894 : vector<10x128xf32>
    %896 = math.tanh %895 : vector<10x128xf32>
    %897 = arith.mulf %57, %896 : vector<10x128xf32>
    %cst_238 = arith.constant 4.000000e-01 : f32
    %898 = vector.broadcast %cst_238 : f32 to vector<10x128xf32>
    %899 = arith.mulf %898, %869 : vector<10x128xf32>
    %900 = arith.addf %897, %899 : vector<10x128xf32>
    %901 = math.tanh %900 : vector<10x128xf32>
    %c26 = arith.constant 26 : index
    %c0_239 = arith.constant 0 : index
    %902 = vector.load %arg11[%c26, %c0_239] : memref<49x128xf32, #tpu.memory_space<vmem>>, vector<1x128xf32>
    %903 = vector.broadcast %902 : vector<1x128xf32> to vector<10x128xf32>
    %904 = arith.mulf %27, %903 : vector<10x128xf32>
    %cst_240 = arith.constant 4.000000e-01 : f32
    %905 = vector.broadcast %cst_240 : f32 to vector<10x128xf32>
    %906 = arith.mulf %905, %876 : vector<10x128xf32>
    %907 = arith.addf %904, %906 : vector<10x128xf32>
    %908 = math.tanh %907 : vector<10x128xf32>
    %909 = arith.mulf %33, %908 : vector<10x128xf32>
    %cst_241 = arith.constant 4.000000e-01 : f32
    %910 = vector.broadcast %cst_241 : f32 to vector<10x128xf32>
    %911 = arith.mulf %910, %881 : vector<10x128xf32>
    %912 = arith.addf %909, %911 : vector<10x128xf32>
    %913 = math.tanh %912 : vector<10x128xf32>
    %914 = arith.mulf %39, %913 : vector<10x128xf32>
    %cst_242 = arith.constant 4.000000e-01 : f32
    %915 = vector.broadcast %cst_242 : f32 to vector<10x128xf32>
    %916 = arith.mulf %915, %886 : vector<10x128xf32>
    %917 = arith.addf %914, %916 : vector<10x128xf32>
    %918 = math.tanh %917 : vector<10x128xf32>
    %919 = arith.mulf %45, %918 : vector<10x128xf32>
    %cst_243 = arith.constant 4.000000e-01 : f32
    %920 = vector.broadcast %cst_243 : f32 to vector<10x128xf32>
    %921 = arith.mulf %920, %891 : vector<10x128xf32>
    %922 = arith.addf %919, %921 : vector<10x128xf32>
    %923 = math.tanh %922 : vector<10x128xf32>
    %924 = arith.mulf %51, %923 : vector<10x128xf32>
    %cst_244 = arith.constant 4.000000e-01 : f32
    %925 = vector.broadcast %cst_244 : f32 to vector<10x128xf32>
    %926 = arith.mulf %925, %896 : vector<10x128xf32>
    %927 = arith.addf %924, %926 : vector<10x128xf32>
    %928 = math.tanh %927 : vector<10x128xf32>
    %929 = arith.mulf %57, %928 : vector<10x128xf32>
    %cst_245 = arith.constant 4.000000e-01 : f32
    %930 = vector.broadcast %cst_245 : f32 to vector<10x128xf32>
    %931 = arith.mulf %930, %901 : vector<10x128xf32>
    %932 = arith.addf %929, %931 : vector<10x128xf32>
    %933 = math.tanh %932 : vector<10x128xf32>
    %c27 = arith.constant 27 : index
    %c0_246 = arith.constant 0 : index
    %934 = vector.load %arg11[%c27, %c0_246] : memref<49x128xf32, #tpu.memory_space<vmem>>, vector<1x128xf32>
    %935 = vector.broadcast %934 : vector<1x128xf32> to vector<10x128xf32>
    %936 = arith.mulf %27, %935 : vector<10x128xf32>
    %cst_247 = arith.constant 4.000000e-01 : f32
    %937 = vector.broadcast %cst_247 : f32 to vector<10x128xf32>
    %938 = arith.mulf %937, %908 : vector<10x128xf32>
    %939 = arith.addf %936, %938 : vector<10x128xf32>
    %940 = math.tanh %939 : vector<10x128xf32>
    %941 = arith.mulf %33, %940 : vector<10x128xf32>
    %cst_248 = arith.constant 4.000000e-01 : f32
    %942 = vector.broadcast %cst_248 : f32 to vector<10x128xf32>
    %943 = arith.mulf %942, %913 : vector<10x128xf32>
    %944 = arith.addf %941, %943 : vector<10x128xf32>
    %945 = math.tanh %944 : vector<10x128xf32>
    %946 = arith.mulf %39, %945 : vector<10x128xf32>
    %cst_249 = arith.constant 4.000000e-01 : f32
    %947 = vector.broadcast %cst_249 : f32 to vector<10x128xf32>
    %948 = arith.mulf %947, %918 : vector<10x128xf32>
    %949 = arith.addf %946, %948 : vector<10x128xf32>
    %950 = math.tanh %949 : vector<10x128xf32>
    %951 = arith.mulf %45, %950 : vector<10x128xf32>
    %cst_250 = arith.constant 4.000000e-01 : f32
    %952 = vector.broadcast %cst_250 : f32 to vector<10x128xf32>
    %953 = arith.mulf %952, %923 : vector<10x128xf32>
    %954 = arith.addf %951, %953 : vector<10x128xf32>
    %955 = math.tanh %954 : vector<10x128xf32>
    %956 = arith.mulf %51, %955 : vector<10x128xf32>
    %cst_251 = arith.constant 4.000000e-01 : f32
    %957 = vector.broadcast %cst_251 : f32 to vector<10x128xf32>
    %958 = arith.mulf %957, %928 : vector<10x128xf32>
    %959 = arith.addf %956, %958 : vector<10x128xf32>
    %960 = math.tanh %959 : vector<10x128xf32>
    %961 = arith.mulf %57, %960 : vector<10x128xf32>
    %cst_252 = arith.constant 4.000000e-01 : f32
    %962 = vector.broadcast %cst_252 : f32 to vector<10x128xf32>
    %963 = arith.mulf %962, %933 : vector<10x128xf32>
    %964 = arith.addf %961, %963 : vector<10x128xf32>
    %965 = math.tanh %964 : vector<10x128xf32>
    %c28 = arith.constant 28 : index
    %c0_253 = arith.constant 0 : index
    %966 = vector.load %arg11[%c28, %c0_253] : memref<49x128xf32, #tpu.memory_space<vmem>>, vector<1x128xf32>
    %967 = vector.broadcast %966 : vector<1x128xf32> to vector<10x128xf32>
    %968 = arith.mulf %27, %967 : vector<10x128xf32>
    %cst_254 = arith.constant 4.000000e-01 : f32
    %969 = vector.broadcast %cst_254 : f32 to vector<10x128xf32>
    %970 = arith.mulf %969, %940 : vector<10x128xf32>
    %971 = arith.addf %968, %970 : vector<10x128xf32>
    %972 = math.tanh %971 : vector<10x128xf32>
    %973 = arith.mulf %33, %972 : vector<10x128xf32>
    %cst_255 = arith.constant 4.000000e-01 : f32
    %974 = vector.broadcast %cst_255 : f32 to vector<10x128xf32>
    %975 = arith.mulf %974, %945 : vector<10x128xf32>
    %976 = arith.addf %973, %975 : vector<10x128xf32>
    %977 = math.tanh %976 : vector<10x128xf32>
    %978 = arith.mulf %39, %977 : vector<10x128xf32>
    %cst_256 = arith.constant 4.000000e-01 : f32
    %979 = vector.broadcast %cst_256 : f32 to vector<10x128xf32>
    %980 = arith.mulf %979, %950 : vector<10x128xf32>
    %981 = arith.addf %978, %980 : vector<10x128xf32>
    %982 = math.tanh %981 : vector<10x128xf32>
    %983 = arith.mulf %45, %982 : vector<10x128xf32>
    %cst_257 = arith.constant 4.000000e-01 : f32
    %984 = vector.broadcast %cst_257 : f32 to vector<10x128xf32>
    %985 = arith.mulf %984, %955 : vector<10x128xf32>
    %986 = arith.addf %983, %985 : vector<10x128xf32>
    %987 = math.tanh %986 : vector<10x128xf32>
    %988 = arith.mulf %51, %987 : vector<10x128xf32>
    %cst_258 = arith.constant 4.000000e-01 : f32
    %989 = vector.broadcast %cst_258 : f32 to vector<10x128xf32>
    %990 = arith.mulf %989, %960 : vector<10x128xf32>
    %991 = arith.addf %988, %990 : vector<10x128xf32>
    %992 = math.tanh %991 : vector<10x128xf32>
    %993 = arith.mulf %57, %992 : vector<10x128xf32>
    %cst_259 = arith.constant 4.000000e-01 : f32
    %994 = vector.broadcast %cst_259 : f32 to vector<10x128xf32>
    %995 = arith.mulf %994, %965 : vector<10x128xf32>
    %996 = arith.addf %993, %995 : vector<10x128xf32>
    %997 = math.tanh %996 : vector<10x128xf32>
    %c29 = arith.constant 29 : index
    %c0_260 = arith.constant 0 : index
    %998 = vector.load %arg11[%c29, %c0_260] : memref<49x128xf32, #tpu.memory_space<vmem>>, vector<1x128xf32>
    %999 = vector.broadcast %998 : vector<1x128xf32> to vector<10x128xf32>
    %1000 = arith.mulf %27, %999 : vector<10x128xf32>
    %cst_261 = arith.constant 4.000000e-01 : f32
    %1001 = vector.broadcast %cst_261 : f32 to vector<10x128xf32>
    %1002 = arith.mulf %1001, %972 : vector<10x128xf32>
    %1003 = arith.addf %1000, %1002 : vector<10x128xf32>
    %1004 = math.tanh %1003 : vector<10x128xf32>
    %1005 = arith.mulf %33, %1004 : vector<10x128xf32>
    %cst_262 = arith.constant 4.000000e-01 : f32
    %1006 = vector.broadcast %cst_262 : f32 to vector<10x128xf32>
    %1007 = arith.mulf %1006, %977 : vector<10x128xf32>
    %1008 = arith.addf %1005, %1007 : vector<10x128xf32>
    %1009 = math.tanh %1008 : vector<10x128xf32>
    %1010 = arith.mulf %39, %1009 : vector<10x128xf32>
    %cst_263 = arith.constant 4.000000e-01 : f32
    %1011 = vector.broadcast %cst_263 : f32 to vector<10x128xf32>
    %1012 = arith.mulf %1011, %982 : vector<10x128xf32>
    %1013 = arith.addf %1010, %1012 : vector<10x128xf32>
    %1014 = math.tanh %1013 : vector<10x128xf32>
    %1015 = arith.mulf %45, %1014 : vector<10x128xf32>
    %cst_264 = arith.constant 4.000000e-01 : f32
    %1016 = vector.broadcast %cst_264 : f32 to vector<10x128xf32>
    %1017 = arith.mulf %1016, %987 : vector<10x128xf32>
    %1018 = arith.addf %1015, %1017 : vector<10x128xf32>
    %1019 = math.tanh %1018 : vector<10x128xf32>
    %1020 = arith.mulf %51, %1019 : vector<10x128xf32>
    %cst_265 = arith.constant 4.000000e-01 : f32
    %1021 = vector.broadcast %cst_265 : f32 to vector<10x128xf32>
    %1022 = arith.mulf %1021, %992 : vector<10x128xf32>
    %1023 = arith.addf %1020, %1022 : vector<10x128xf32>
    %1024 = math.tanh %1023 : vector<10x128xf32>
    %1025 = arith.mulf %57, %1024 : vector<10x128xf32>
    %cst_266 = arith.constant 4.000000e-01 : f32
    %1026 = vector.broadcast %cst_266 : f32 to vector<10x128xf32>
    %1027 = arith.mulf %1026, %997 : vector<10x128xf32>
    %1028 = arith.addf %1025, %1027 : vector<10x128xf32>
    %1029 = math.tanh %1028 : vector<10x128xf32>
    %c30 = arith.constant 30 : index
    %c0_267 = arith.constant 0 : index
    %1030 = vector.load %arg11[%c30, %c0_267] : memref<49x128xf32, #tpu.memory_space<vmem>>, vector<1x128xf32>
    %1031 = vector.broadcast %1030 : vector<1x128xf32> to vector<10x128xf32>
    %1032 = arith.mulf %27, %1031 : vector<10x128xf32>
    %cst_268 = arith.constant 4.000000e-01 : f32
    %1033 = vector.broadcast %cst_268 : f32 to vector<10x128xf32>
    %1034 = arith.mulf %1033, %1004 : vector<10x128xf32>
    %1035 = arith.addf %1032, %1034 : vector<10x128xf32>
    %1036 = math.tanh %1035 : vector<10x128xf32>
    %1037 = arith.mulf %33, %1036 : vector<10x128xf32>
    %cst_269 = arith.constant 4.000000e-01 : f32
    %1038 = vector.broadcast %cst_269 : f32 to vector<10x128xf32>
    %1039 = arith.mulf %1038, %1009 : vector<10x128xf32>
    %1040 = arith.addf %1037, %1039 : vector<10x128xf32>
    %1041 = math.tanh %1040 : vector<10x128xf32>
    %1042 = arith.mulf %39, %1041 : vector<10x128xf32>
    %cst_270 = arith.constant 4.000000e-01 : f32
    %1043 = vector.broadcast %cst_270 : f32 to vector<10x128xf32>
    %1044 = arith.mulf %1043, %1014 : vector<10x128xf32>
    %1045 = arith.addf %1042, %1044 : vector<10x128xf32>
    %1046 = math.tanh %1045 : vector<10x128xf32>
    %1047 = arith.mulf %45, %1046 : vector<10x128xf32>
    %cst_271 = arith.constant 4.000000e-01 : f32
    %1048 = vector.broadcast %cst_271 : f32 to vector<10x128xf32>
    %1049 = arith.mulf %1048, %1019 : vector<10x128xf32>
    %1050 = arith.addf %1047, %1049 : vector<10x128xf32>
    %1051 = math.tanh %1050 : vector<10x128xf32>
    %1052 = arith.mulf %51, %1051 : vector<10x128xf32>
    %cst_272 = arith.constant 4.000000e-01 : f32
    %1053 = vector.broadcast %cst_272 : f32 to vector<10x128xf32>
    %1054 = arith.mulf %1053, %1024 : vector<10x128xf32>
    %1055 = arith.addf %1052, %1054 : vector<10x128xf32>
    %1056 = math.tanh %1055 : vector<10x128xf32>
    %1057 = arith.mulf %57, %1056 : vector<10x128xf32>
    %cst_273 = arith.constant 4.000000e-01 : f32
    %1058 = vector.broadcast %cst_273 : f32 to vector<10x128xf32>
    %1059 = arith.mulf %1058, %1029 : vector<10x128xf32>
    %1060 = arith.addf %1057, %1059 : vector<10x128xf32>
    %1061 = math.tanh %1060 : vector<10x128xf32>
    %c31 = arith.constant 31 : index
    %c0_274 = arith.constant 0 : index
    %1062 = vector.load %arg11[%c31, %c0_274] : memref<49x128xf32, #tpu.memory_space<vmem>>, vector<1x128xf32>
    %1063 = vector.broadcast %1062 : vector<1x128xf32> to vector<10x128xf32>
    %1064 = arith.mulf %27, %1063 : vector<10x128xf32>
    %cst_275 = arith.constant 4.000000e-01 : f32
    %1065 = vector.broadcast %cst_275 : f32 to vector<10x128xf32>
    %1066 = arith.mulf %1065, %1036 : vector<10x128xf32>
    %1067 = arith.addf %1064, %1066 : vector<10x128xf32>
    %1068 = math.tanh %1067 : vector<10x128xf32>
    %1069 = arith.mulf %33, %1068 : vector<10x128xf32>
    %cst_276 = arith.constant 4.000000e-01 : f32
    %1070 = vector.broadcast %cst_276 : f32 to vector<10x128xf32>
    %1071 = arith.mulf %1070, %1041 : vector<10x128xf32>
    %1072 = arith.addf %1069, %1071 : vector<10x128xf32>
    %1073 = math.tanh %1072 : vector<10x128xf32>
    %1074 = arith.mulf %39, %1073 : vector<10x128xf32>
    %cst_277 = arith.constant 4.000000e-01 : f32
    %1075 = vector.broadcast %cst_277 : f32 to vector<10x128xf32>
    %1076 = arith.mulf %1075, %1046 : vector<10x128xf32>
    %1077 = arith.addf %1074, %1076 : vector<10x128xf32>
    %1078 = math.tanh %1077 : vector<10x128xf32>
    %1079 = arith.mulf %45, %1078 : vector<10x128xf32>
    %cst_278 = arith.constant 4.000000e-01 : f32
    %1080 = vector.broadcast %cst_278 : f32 to vector<10x128xf32>
    %1081 = arith.mulf %1080, %1051 : vector<10x128xf32>
    %1082 = arith.addf %1079, %1081 : vector<10x128xf32>
    %1083 = math.tanh %1082 : vector<10x128xf32>
    %1084 = arith.mulf %51, %1083 : vector<10x128xf32>
    %cst_279 = arith.constant 4.000000e-01 : f32
    %1085 = vector.broadcast %cst_279 : f32 to vector<10x128xf32>
    %1086 = arith.mulf %1085, %1056 : vector<10x128xf32>
    %1087 = arith.addf %1084, %1086 : vector<10x128xf32>
    %1088 = math.tanh %1087 : vector<10x128xf32>
    %1089 = arith.mulf %57, %1088 : vector<10x128xf32>
    %cst_280 = arith.constant 4.000000e-01 : f32
    %1090 = vector.broadcast %cst_280 : f32 to vector<10x128xf32>
    %1091 = arith.mulf %1090, %1061 : vector<10x128xf32>
    %1092 = arith.addf %1089, %1091 : vector<10x128xf32>
    %1093 = math.tanh %1092 : vector<10x128xf32>
    %c32 = arith.constant 32 : index
    %c0_281 = arith.constant 0 : index
    %1094 = vector.load %arg11[%c32, %c0_281] : memref<49x128xf32, #tpu.memory_space<vmem>>, vector<1x128xf32>
    %1095 = vector.broadcast %1094 : vector<1x128xf32> to vector<10x128xf32>
    %1096 = arith.mulf %27, %1095 : vector<10x128xf32>
    %cst_282 = arith.constant 4.000000e-01 : f32
    %1097 = vector.broadcast %cst_282 : f32 to vector<10x128xf32>
    %1098 = arith.mulf %1097, %1068 : vector<10x128xf32>
    %1099 = arith.addf %1096, %1098 : vector<10x128xf32>
    %1100 = math.tanh %1099 : vector<10x128xf32>
    %1101 = arith.mulf %33, %1100 : vector<10x128xf32>
    %cst_283 = arith.constant 4.000000e-01 : f32
    %1102 = vector.broadcast %cst_283 : f32 to vector<10x128xf32>
    %1103 = arith.mulf %1102, %1073 : vector<10x128xf32>
    %1104 = arith.addf %1101, %1103 : vector<10x128xf32>
    %1105 = math.tanh %1104 : vector<10x128xf32>
    %1106 = arith.mulf %39, %1105 : vector<10x128xf32>
    %cst_284 = arith.constant 4.000000e-01 : f32
    %1107 = vector.broadcast %cst_284 : f32 to vector<10x128xf32>
    %1108 = arith.mulf %1107, %1078 : vector<10x128xf32>
    %1109 = arith.addf %1106, %1108 : vector<10x128xf32>
    %1110 = math.tanh %1109 : vector<10x128xf32>
    %1111 = arith.mulf %45, %1110 : vector<10x128xf32>
    %cst_285 = arith.constant 4.000000e-01 : f32
    %1112 = vector.broadcast %cst_285 : f32 to vector<10x128xf32>
    %1113 = arith.mulf %1112, %1083 : vector<10x128xf32>
    %1114 = arith.addf %1111, %1113 : vector<10x128xf32>
    %1115 = math.tanh %1114 : vector<10x128xf32>
    %1116 = arith.mulf %51, %1115 : vector<10x128xf32>
    %cst_286 = arith.constant 4.000000e-01 : f32
    %1117 = vector.broadcast %cst_286 : f32 to vector<10x128xf32>
    %1118 = arith.mulf %1117, %1088 : vector<10x128xf32>
    %1119 = arith.addf %1116, %1118 : vector<10x128xf32>
    %1120 = math.tanh %1119 : vector<10x128xf32>
    %1121 = arith.mulf %57, %1120 : vector<10x128xf32>
    %cst_287 = arith.constant 4.000000e-01 : f32
    %1122 = vector.broadcast %cst_287 : f32 to vector<10x128xf32>
    %1123 = arith.mulf %1122, %1093 : vector<10x128xf32>
    %1124 = arith.addf %1121, %1123 : vector<10x128xf32>
    %1125 = math.tanh %1124 : vector<10x128xf32>
    %c33 = arith.constant 33 : index
    %c0_288 = arith.constant 0 : index
    %1126 = vector.load %arg11[%c33, %c0_288] : memref<49x128xf32, #tpu.memory_space<vmem>>, vector<1x128xf32>
    %1127 = vector.broadcast %1126 : vector<1x128xf32> to vector<10x128xf32>
    %1128 = arith.mulf %27, %1127 : vector<10x128xf32>
    %cst_289 = arith.constant 4.000000e-01 : f32
    %1129 = vector.broadcast %cst_289 : f32 to vector<10x128xf32>
    %1130 = arith.mulf %1129, %1100 : vector<10x128xf32>
    %1131 = arith.addf %1128, %1130 : vector<10x128xf32>
    %1132 = math.tanh %1131 : vector<10x128xf32>
    %1133 = arith.mulf %33, %1132 : vector<10x128xf32>
    %cst_290 = arith.constant 4.000000e-01 : f32
    %1134 = vector.broadcast %cst_290 : f32 to vector<10x128xf32>
    %1135 = arith.mulf %1134, %1105 : vector<10x128xf32>
    %1136 = arith.addf %1133, %1135 : vector<10x128xf32>
    %1137 = math.tanh %1136 : vector<10x128xf32>
    %1138 = arith.mulf %39, %1137 : vector<10x128xf32>
    %cst_291 = arith.constant 4.000000e-01 : f32
    %1139 = vector.broadcast %cst_291 : f32 to vector<10x128xf32>
    %1140 = arith.mulf %1139, %1110 : vector<10x128xf32>
    %1141 = arith.addf %1138, %1140 : vector<10x128xf32>
    %1142 = math.tanh %1141 : vector<10x128xf32>
    %1143 = arith.mulf %45, %1142 : vector<10x128xf32>
    %cst_292 = arith.constant 4.000000e-01 : f32
    %1144 = vector.broadcast %cst_292 : f32 to vector<10x128xf32>
    %1145 = arith.mulf %1144, %1115 : vector<10x128xf32>
    %1146 = arith.addf %1143, %1145 : vector<10x128xf32>
    %1147 = math.tanh %1146 : vector<10x128xf32>
    %1148 = arith.mulf %51, %1147 : vector<10x128xf32>
    %cst_293 = arith.constant 4.000000e-01 : f32
    %1149 = vector.broadcast %cst_293 : f32 to vector<10x128xf32>
    %1150 = arith.mulf %1149, %1120 : vector<10x128xf32>
    %1151 = arith.addf %1148, %1150 : vector<10x128xf32>
    %1152 = math.tanh %1151 : vector<10x128xf32>
    %1153 = arith.mulf %57, %1152 : vector<10x128xf32>
    %cst_294 = arith.constant 4.000000e-01 : f32
    %1154 = vector.broadcast %cst_294 : f32 to vector<10x128xf32>
    %1155 = arith.mulf %1154, %1125 : vector<10x128xf32>
    %1156 = arith.addf %1153, %1155 : vector<10x128xf32>
    %1157 = math.tanh %1156 : vector<10x128xf32>
    %c34 = arith.constant 34 : index
    %c0_295 = arith.constant 0 : index
    %1158 = vector.load %arg11[%c34, %c0_295] : memref<49x128xf32, #tpu.memory_space<vmem>>, vector<1x128xf32>
    %1159 = vector.broadcast %1158 : vector<1x128xf32> to vector<10x128xf32>
    %1160 = arith.mulf %27, %1159 : vector<10x128xf32>
    %cst_296 = arith.constant 4.000000e-01 : f32
    %1161 = vector.broadcast %cst_296 : f32 to vector<10x128xf32>
    %1162 = arith.mulf %1161, %1132 : vector<10x128xf32>
    %1163 = arith.addf %1160, %1162 : vector<10x128xf32>
    %1164 = math.tanh %1163 : vector<10x128xf32>
    %1165 = arith.mulf %33, %1164 : vector<10x128xf32>
    %cst_297 = arith.constant 4.000000e-01 : f32
    %1166 = vector.broadcast %cst_297 : f32 to vector<10x128xf32>
    %1167 = arith.mulf %1166, %1137 : vector<10x128xf32>
    %1168 = arith.addf %1165, %1167 : vector<10x128xf32>
    %1169 = math.tanh %1168 : vector<10x128xf32>
    %1170 = arith.mulf %39, %1169 : vector<10x128xf32>
    %cst_298 = arith.constant 4.000000e-01 : f32
    %1171 = vector.broadcast %cst_298 : f32 to vector<10x128xf32>
    %1172 = arith.mulf %1171, %1142 : vector<10x128xf32>
    %1173 = arith.addf %1170, %1172 : vector<10x128xf32>
    %1174 = math.tanh %1173 : vector<10x128xf32>
    %1175 = arith.mulf %45, %1174 : vector<10x128xf32>
    %cst_299 = arith.constant 4.000000e-01 : f32
    %1176 = vector.broadcast %cst_299 : f32 to vector<10x128xf32>
    %1177 = arith.mulf %1176, %1147 : vector<10x128xf32>
    %1178 = arith.addf %1175, %1177 : vector<10x128xf32>
    %1179 = math.tanh %1178 : vector<10x128xf32>
    %1180 = arith.mulf %51, %1179 : vector<10x128xf32>
    %cst_300 = arith.constant 4.000000e-01 : f32
    %1181 = vector.broadcast %cst_300 : f32 to vector<10x128xf32>
    %1182 = arith.mulf %1181, %1152 : vector<10x128xf32>
    %1183 = arith.addf %1180, %1182 : vector<10x128xf32>
    %1184 = math.tanh %1183 : vector<10x128xf32>
    %1185 = arith.mulf %57, %1184 : vector<10x128xf32>
    %cst_301 = arith.constant 4.000000e-01 : f32
    %1186 = vector.broadcast %cst_301 : f32 to vector<10x128xf32>
    %1187 = arith.mulf %1186, %1157 : vector<10x128xf32>
    %1188 = arith.addf %1185, %1187 : vector<10x128xf32>
    %1189 = math.tanh %1188 : vector<10x128xf32>
    %c35 = arith.constant 35 : index
    %c0_302 = arith.constant 0 : index
    %1190 = vector.load %arg11[%c35, %c0_302] : memref<49x128xf32, #tpu.memory_space<vmem>>, vector<1x128xf32>
    %1191 = vector.broadcast %1190 : vector<1x128xf32> to vector<10x128xf32>
    %1192 = arith.mulf %27, %1191 : vector<10x128xf32>
    %cst_303 = arith.constant 4.000000e-01 : f32
    %1193 = vector.broadcast %cst_303 : f32 to vector<10x128xf32>
    %1194 = arith.mulf %1193, %1164 : vector<10x128xf32>
    %1195 = arith.addf %1192, %1194 : vector<10x128xf32>
    %1196 = math.tanh %1195 : vector<10x128xf32>
    %1197 = arith.mulf %33, %1196 : vector<10x128xf32>
    %cst_304 = arith.constant 4.000000e-01 : f32
    %1198 = vector.broadcast %cst_304 : f32 to vector<10x128xf32>
    %1199 = arith.mulf %1198, %1169 : vector<10x128xf32>
    %1200 = arith.addf %1197, %1199 : vector<10x128xf32>
    %1201 = math.tanh %1200 : vector<10x128xf32>
    %1202 = arith.mulf %39, %1201 : vector<10x128xf32>
    %cst_305 = arith.constant 4.000000e-01 : f32
    %1203 = vector.broadcast %cst_305 : f32 to vector<10x128xf32>
    %1204 = arith.mulf %1203, %1174 : vector<10x128xf32>
    %1205 = arith.addf %1202, %1204 : vector<10x128xf32>
    %1206 = math.tanh %1205 : vector<10x128xf32>
    %1207 = arith.mulf %45, %1206 : vector<10x128xf32>
    %cst_306 = arith.constant 4.000000e-01 : f32
    %1208 = vector.broadcast %cst_306 : f32 to vector<10x128xf32>
    %1209 = arith.mulf %1208, %1179 : vector<10x128xf32>
    %1210 = arith.addf %1207, %1209 : vector<10x128xf32>
    %1211 = math.tanh %1210 : vector<10x128xf32>
    %1212 = arith.mulf %51, %1211 : vector<10x128xf32>
    %cst_307 = arith.constant 4.000000e-01 : f32
    %1213 = vector.broadcast %cst_307 : f32 to vector<10x128xf32>
    %1214 = arith.mulf %1213, %1184 : vector<10x128xf32>
    %1215 = arith.addf %1212, %1214 : vector<10x128xf32>
    %1216 = math.tanh %1215 : vector<10x128xf32>
    %1217 = arith.mulf %57, %1216 : vector<10x128xf32>
    %cst_308 = arith.constant 4.000000e-01 : f32
    %1218 = vector.broadcast %cst_308 : f32 to vector<10x128xf32>
    %1219 = arith.mulf %1218, %1189 : vector<10x128xf32>
    %1220 = arith.addf %1217, %1219 : vector<10x128xf32>
    %1221 = math.tanh %1220 : vector<10x128xf32>
    %c36 = arith.constant 36 : index
    %c0_309 = arith.constant 0 : index
    %1222 = vector.load %arg11[%c36, %c0_309] : memref<49x128xf32, #tpu.memory_space<vmem>>, vector<1x128xf32>
    %1223 = vector.broadcast %1222 : vector<1x128xf32> to vector<10x128xf32>
    %1224 = arith.mulf %27, %1223 : vector<10x128xf32>
    %cst_310 = arith.constant 4.000000e-01 : f32
    %1225 = vector.broadcast %cst_310 : f32 to vector<10x128xf32>
    %1226 = arith.mulf %1225, %1196 : vector<10x128xf32>
    %1227 = arith.addf %1224, %1226 : vector<10x128xf32>
    %1228 = math.tanh %1227 : vector<10x128xf32>
    %1229 = arith.mulf %33, %1228 : vector<10x128xf32>
    %cst_311 = arith.constant 4.000000e-01 : f32
    %1230 = vector.broadcast %cst_311 : f32 to vector<10x128xf32>
    %1231 = arith.mulf %1230, %1201 : vector<10x128xf32>
    %1232 = arith.addf %1229, %1231 : vector<10x128xf32>
    %1233 = math.tanh %1232 : vector<10x128xf32>
    %1234 = arith.mulf %39, %1233 : vector<10x128xf32>
    %cst_312 = arith.constant 4.000000e-01 : f32
    %1235 = vector.broadcast %cst_312 : f32 to vector<10x128xf32>
    %1236 = arith.mulf %1235, %1206 : vector<10x128xf32>
    %1237 = arith.addf %1234, %1236 : vector<10x128xf32>
    %1238 = math.tanh %1237 : vector<10x128xf32>
    %1239 = arith.mulf %45, %1238 : vector<10x128xf32>
    %cst_313 = arith.constant 4.000000e-01 : f32
    %1240 = vector.broadcast %cst_313 : f32 to vector<10x128xf32>
    %1241 = arith.mulf %1240, %1211 : vector<10x128xf32>
    %1242 = arith.addf %1239, %1241 : vector<10x128xf32>
    %1243 = math.tanh %1242 : vector<10x128xf32>
    %1244 = arith.mulf %51, %1243 : vector<10x128xf32>
    %cst_314 = arith.constant 4.000000e-01 : f32
    %1245 = vector.broadcast %cst_314 : f32 to vector<10x128xf32>
    %1246 = arith.mulf %1245, %1216 : vector<10x128xf32>
    %1247 = arith.addf %1244, %1246 : vector<10x128xf32>
    %1248 = math.tanh %1247 : vector<10x128xf32>
    %1249 = arith.mulf %57, %1248 : vector<10x128xf32>
    %cst_315 = arith.constant 4.000000e-01 : f32
    %1250 = vector.broadcast %cst_315 : f32 to vector<10x128xf32>
    %1251 = arith.mulf %1250, %1221 : vector<10x128xf32>
    %1252 = arith.addf %1249, %1251 : vector<10x128xf32>
    %1253 = math.tanh %1252 : vector<10x128xf32>
    %c37 = arith.constant 37 : index
    %c0_316 = arith.constant 0 : index
    %1254 = vector.load %arg11[%c37, %c0_316] : memref<49x128xf32, #tpu.memory_space<vmem>>, vector<1x128xf32>
    %1255 = vector.broadcast %1254 : vector<1x128xf32> to vector<10x128xf32>
    %1256 = arith.mulf %27, %1255 : vector<10x128xf32>
    %cst_317 = arith.constant 4.000000e-01 : f32
    %1257 = vector.broadcast %cst_317 : f32 to vector<10x128xf32>
    %1258 = arith.mulf %1257, %1228 : vector<10x128xf32>
    %1259 = arith.addf %1256, %1258 : vector<10x128xf32>
    %1260 = math.tanh %1259 : vector<10x128xf32>
    %1261 = arith.mulf %33, %1260 : vector<10x128xf32>
    %cst_318 = arith.constant 4.000000e-01 : f32
    %1262 = vector.broadcast %cst_318 : f32 to vector<10x128xf32>
    %1263 = arith.mulf %1262, %1233 : vector<10x128xf32>
    %1264 = arith.addf %1261, %1263 : vector<10x128xf32>
    %1265 = math.tanh %1264 : vector<10x128xf32>
    %1266 = arith.mulf %39, %1265 : vector<10x128xf32>
    %cst_319 = arith.constant 4.000000e-01 : f32
    %1267 = vector.broadcast %cst_319 : f32 to vector<10x128xf32>
    %1268 = arith.mulf %1267, %1238 : vector<10x128xf32>
    %1269 = arith.addf %1266, %1268 : vector<10x128xf32>
    %1270 = math.tanh %1269 : vector<10x128xf32>
    %1271 = arith.mulf %45, %1270 : vector<10x128xf32>
    %cst_320 = arith.constant 4.000000e-01 : f32
    %1272 = vector.broadcast %cst_320 : f32 to vector<10x128xf32>
    %1273 = arith.mulf %1272, %1243 : vector<10x128xf32>
    %1274 = arith.addf %1271, %1273 : vector<10x128xf32>
    %1275 = math.tanh %1274 : vector<10x128xf32>
    %1276 = arith.mulf %51, %1275 : vector<10x128xf32>
    %cst_321 = arith.constant 4.000000e-01 : f32
    %1277 = vector.broadcast %cst_321 : f32 to vector<10x128xf32>
    %1278 = arith.mulf %1277, %1248 : vector<10x128xf32>
    %1279 = arith.addf %1276, %1278 : vector<10x128xf32>
    %1280 = math.tanh %1279 : vector<10x128xf32>
    %1281 = arith.mulf %57, %1280 : vector<10x128xf32>
    %cst_322 = arith.constant 4.000000e-01 : f32
    %1282 = vector.broadcast %cst_322 : f32 to vector<10x128xf32>
    %1283 = arith.mulf %1282, %1253 : vector<10x128xf32>
    %1284 = arith.addf %1281, %1283 : vector<10x128xf32>
    %1285 = math.tanh %1284 : vector<10x128xf32>
    %c38 = arith.constant 38 : index
    %c0_323 = arith.constant 0 : index
    %1286 = vector.load %arg11[%c38, %c0_323] : memref<49x128xf32, #tpu.memory_space<vmem>>, vector<1x128xf32>
    %1287 = vector.broadcast %1286 : vector<1x128xf32> to vector<10x128xf32>
    %1288 = arith.mulf %27, %1287 : vector<10x128xf32>
    %cst_324 = arith.constant 4.000000e-01 : f32
    %1289 = vector.broadcast %cst_324 : f32 to vector<10x128xf32>
    %1290 = arith.mulf %1289, %1260 : vector<10x128xf32>
    %1291 = arith.addf %1288, %1290 : vector<10x128xf32>
    %1292 = math.tanh %1291 : vector<10x128xf32>
    %1293 = arith.mulf %33, %1292 : vector<10x128xf32>
    %cst_325 = arith.constant 4.000000e-01 : f32
    %1294 = vector.broadcast %cst_325 : f32 to vector<10x128xf32>
    %1295 = arith.mulf %1294, %1265 : vector<10x128xf32>
    %1296 = arith.addf %1293, %1295 : vector<10x128xf32>
    %1297 = math.tanh %1296 : vector<10x128xf32>
    %1298 = arith.mulf %39, %1297 : vector<10x128xf32>
    %cst_326 = arith.constant 4.000000e-01 : f32
    %1299 = vector.broadcast %cst_326 : f32 to vector<10x128xf32>
    %1300 = arith.mulf %1299, %1270 : vector<10x128xf32>
    %1301 = arith.addf %1298, %1300 : vector<10x128xf32>
    %1302 = math.tanh %1301 : vector<10x128xf32>
    %1303 = arith.mulf %45, %1302 : vector<10x128xf32>
    %cst_327 = arith.constant 4.000000e-01 : f32
    %1304 = vector.broadcast %cst_327 : f32 to vector<10x128xf32>
    %1305 = arith.mulf %1304, %1275 : vector<10x128xf32>
    %1306 = arith.addf %1303, %1305 : vector<10x128xf32>
    %1307 = math.tanh %1306 : vector<10x128xf32>
    %1308 = arith.mulf %51, %1307 : vector<10x128xf32>
    %cst_328 = arith.constant 4.000000e-01 : f32
    %1309 = vector.broadcast %cst_328 : f32 to vector<10x128xf32>
    %1310 = arith.mulf %1309, %1280 : vector<10x128xf32>
    %1311 = arith.addf %1308, %1310 : vector<10x128xf32>
    %1312 = math.tanh %1311 : vector<10x128xf32>
    %1313 = arith.mulf %57, %1312 : vector<10x128xf32>
    %cst_329 = arith.constant 4.000000e-01 : f32
    %1314 = vector.broadcast %cst_329 : f32 to vector<10x128xf32>
    %1315 = arith.mulf %1314, %1285 : vector<10x128xf32>
    %1316 = arith.addf %1313, %1315 : vector<10x128xf32>
    %1317 = math.tanh %1316 : vector<10x128xf32>
    %c39 = arith.constant 39 : index
    %c0_330 = arith.constant 0 : index
    %1318 = vector.load %arg11[%c39, %c0_330] : memref<49x128xf32, #tpu.memory_space<vmem>>, vector<1x128xf32>
    %1319 = vector.broadcast %1318 : vector<1x128xf32> to vector<10x128xf32>
    %1320 = arith.mulf %27, %1319 : vector<10x128xf32>
    %cst_331 = arith.constant 4.000000e-01 : f32
    %1321 = vector.broadcast %cst_331 : f32 to vector<10x128xf32>
    %1322 = arith.mulf %1321, %1292 : vector<10x128xf32>
    %1323 = arith.addf %1320, %1322 : vector<10x128xf32>
    %1324 = math.tanh %1323 : vector<10x128xf32>
    %1325 = arith.mulf %33, %1324 : vector<10x128xf32>
    %cst_332 = arith.constant 4.000000e-01 : f32
    %1326 = vector.broadcast %cst_332 : f32 to vector<10x128xf32>
    %1327 = arith.mulf %1326, %1297 : vector<10x128xf32>
    %1328 = arith.addf %1325, %1327 : vector<10x128xf32>
    %1329 = math.tanh %1328 : vector<10x128xf32>
    %1330 = arith.mulf %39, %1329 : vector<10x128xf32>
    %cst_333 = arith.constant 4.000000e-01 : f32
    %1331 = vector.broadcast %cst_333 : f32 to vector<10x128xf32>
    %1332 = arith.mulf %1331, %1302 : vector<10x128xf32>
    %1333 = arith.addf %1330, %1332 : vector<10x128xf32>
    %1334 = math.tanh %1333 : vector<10x128xf32>
    %1335 = arith.mulf %45, %1334 : vector<10x128xf32>
    %cst_334 = arith.constant 4.000000e-01 : f32
    %1336 = vector.broadcast %cst_334 : f32 to vector<10x128xf32>
    %1337 = arith.mulf %1336, %1307 : vector<10x128xf32>
    %1338 = arith.addf %1335, %1337 : vector<10x128xf32>
    %1339 = math.tanh %1338 : vector<10x128xf32>
    %1340 = arith.mulf %51, %1339 : vector<10x128xf32>
    %cst_335 = arith.constant 4.000000e-01 : f32
    %1341 = vector.broadcast %cst_335 : f32 to vector<10x128xf32>
    %1342 = arith.mulf %1341, %1312 : vector<10x128xf32>
    %1343 = arith.addf %1340, %1342 : vector<10x128xf32>
    %1344 = math.tanh %1343 : vector<10x128xf32>
    %1345 = arith.mulf %57, %1344 : vector<10x128xf32>
    %cst_336 = arith.constant 4.000000e-01 : f32
    %1346 = vector.broadcast %cst_336 : f32 to vector<10x128xf32>
    %1347 = arith.mulf %1346, %1317 : vector<10x128xf32>
    %1348 = arith.addf %1345, %1347 : vector<10x128xf32>
    %1349 = math.tanh %1348 : vector<10x128xf32>
    %c40 = arith.constant 40 : index
    %c0_337 = arith.constant 0 : index
    %1350 = vector.load %arg11[%c40, %c0_337] : memref<49x128xf32, #tpu.memory_space<vmem>>, vector<1x128xf32>
    %1351 = vector.broadcast %1350 : vector<1x128xf32> to vector<10x128xf32>
    %1352 = arith.mulf %27, %1351 : vector<10x128xf32>
    %cst_338 = arith.constant 4.000000e-01 : f32
    %1353 = vector.broadcast %cst_338 : f32 to vector<10x128xf32>
    %1354 = arith.mulf %1353, %1324 : vector<10x128xf32>
    %1355 = arith.addf %1352, %1354 : vector<10x128xf32>
    %1356 = math.tanh %1355 : vector<10x128xf32>
    %1357 = arith.mulf %33, %1356 : vector<10x128xf32>
    %cst_339 = arith.constant 4.000000e-01 : f32
    %1358 = vector.broadcast %cst_339 : f32 to vector<10x128xf32>
    %1359 = arith.mulf %1358, %1329 : vector<10x128xf32>
    %1360 = arith.addf %1357, %1359 : vector<10x128xf32>
    %1361 = math.tanh %1360 : vector<10x128xf32>
    %1362 = arith.mulf %39, %1361 : vector<10x128xf32>
    %cst_340 = arith.constant 4.000000e-01 : f32
    %1363 = vector.broadcast %cst_340 : f32 to vector<10x128xf32>
    %1364 = arith.mulf %1363, %1334 : vector<10x128xf32>
    %1365 = arith.addf %1362, %1364 : vector<10x128xf32>
    %1366 = math.tanh %1365 : vector<10x128xf32>
    %1367 = arith.mulf %45, %1366 : vector<10x128xf32>
    %cst_341 = arith.constant 4.000000e-01 : f32
    %1368 = vector.broadcast %cst_341 : f32 to vector<10x128xf32>
    %1369 = arith.mulf %1368, %1339 : vector<10x128xf32>
    %1370 = arith.addf %1367, %1369 : vector<10x128xf32>
    %1371 = math.tanh %1370 : vector<10x128xf32>
    %1372 = arith.mulf %51, %1371 : vector<10x128xf32>
    %cst_342 = arith.constant 4.000000e-01 : f32
    %1373 = vector.broadcast %cst_342 : f32 to vector<10x128xf32>
    %1374 = arith.mulf %1373, %1344 : vector<10x128xf32>
    %1375 = arith.addf %1372, %1374 : vector<10x128xf32>
    %1376 = math.tanh %1375 : vector<10x128xf32>
    %1377 = arith.mulf %57, %1376 : vector<10x128xf32>
    %cst_343 = arith.constant 4.000000e-01 : f32
    %1378 = vector.broadcast %cst_343 : f32 to vector<10x128xf32>
    %1379 = arith.mulf %1378, %1349 : vector<10x128xf32>
    %1380 = arith.addf %1377, %1379 : vector<10x128xf32>
    %1381 = math.tanh %1380 : vector<10x128xf32>
    %c41 = arith.constant 41 : index
    %c0_344 = arith.constant 0 : index
    %1382 = vector.load %arg11[%c41, %c0_344] : memref<49x128xf32, #tpu.memory_space<vmem>>, vector<1x128xf32>
    %1383 = vector.broadcast %1382 : vector<1x128xf32> to vector<10x128xf32>
    %1384 = arith.mulf %27, %1383 : vector<10x128xf32>
    %cst_345 = arith.constant 4.000000e-01 : f32
    %1385 = vector.broadcast %cst_345 : f32 to vector<10x128xf32>
    %1386 = arith.mulf %1385, %1356 : vector<10x128xf32>
    %1387 = arith.addf %1384, %1386 : vector<10x128xf32>
    %1388 = math.tanh %1387 : vector<10x128xf32>
    %1389 = arith.mulf %33, %1388 : vector<10x128xf32>
    %cst_346 = arith.constant 4.000000e-01 : f32
    %1390 = vector.broadcast %cst_346 : f32 to vector<10x128xf32>
    %1391 = arith.mulf %1390, %1361 : vector<10x128xf32>
    %1392 = arith.addf %1389, %1391 : vector<10x128xf32>
    %1393 = math.tanh %1392 : vector<10x128xf32>
    %1394 = arith.mulf %39, %1393 : vector<10x128xf32>
    %cst_347 = arith.constant 4.000000e-01 : f32
    %1395 = vector.broadcast %cst_347 : f32 to vector<10x128xf32>
    %1396 = arith.mulf %1395, %1366 : vector<10x128xf32>
    %1397 = arith.addf %1394, %1396 : vector<10x128xf32>
    %1398 = math.tanh %1397 : vector<10x128xf32>
    %1399 = arith.mulf %45, %1398 : vector<10x128xf32>
    %cst_348 = arith.constant 4.000000e-01 : f32
    %1400 = vector.broadcast %cst_348 : f32 to vector<10x128xf32>
    %1401 = arith.mulf %1400, %1371 : vector<10x128xf32>
    %1402 = arith.addf %1399, %1401 : vector<10x128xf32>
    %1403 = math.tanh %1402 : vector<10x128xf32>
    %1404 = arith.mulf %51, %1403 : vector<10x128xf32>
    %cst_349 = arith.constant 4.000000e-01 : f32
    %1405 = vector.broadcast %cst_349 : f32 to vector<10x128xf32>
    %1406 = arith.mulf %1405, %1376 : vector<10x128xf32>
    %1407 = arith.addf %1404, %1406 : vector<10x128xf32>
    %1408 = math.tanh %1407 : vector<10x128xf32>
    %1409 = arith.mulf %57, %1408 : vector<10x128xf32>
    %cst_350 = arith.constant 4.000000e-01 : f32
    %1410 = vector.broadcast %cst_350 : f32 to vector<10x128xf32>
    %1411 = arith.mulf %1410, %1381 : vector<10x128xf32>
    %1412 = arith.addf %1409, %1411 : vector<10x128xf32>
    %1413 = math.tanh %1412 : vector<10x128xf32>
    %c42 = arith.constant 42 : index
    %c0_351 = arith.constant 0 : index
    %1414 = vector.load %arg11[%c42, %c0_351] : memref<49x128xf32, #tpu.memory_space<vmem>>, vector<1x128xf32>
    %1415 = vector.broadcast %1414 : vector<1x128xf32> to vector<10x128xf32>
    %1416 = arith.mulf %27, %1415 : vector<10x128xf32>
    %cst_352 = arith.constant 4.000000e-01 : f32
    %1417 = vector.broadcast %cst_352 : f32 to vector<10x128xf32>
    %1418 = arith.mulf %1417, %1388 : vector<10x128xf32>
    %1419 = arith.addf %1416, %1418 : vector<10x128xf32>
    %1420 = math.tanh %1419 : vector<10x128xf32>
    %1421 = arith.mulf %33, %1420 : vector<10x128xf32>
    %cst_353 = arith.constant 4.000000e-01 : f32
    %1422 = vector.broadcast %cst_353 : f32 to vector<10x128xf32>
    %1423 = arith.mulf %1422, %1393 : vector<10x128xf32>
    %1424 = arith.addf %1421, %1423 : vector<10x128xf32>
    %1425 = math.tanh %1424 : vector<10x128xf32>
    %1426 = arith.mulf %39, %1425 : vector<10x128xf32>
    %cst_354 = arith.constant 4.000000e-01 : f32
    %1427 = vector.broadcast %cst_354 : f32 to vector<10x128xf32>
    %1428 = arith.mulf %1427, %1398 : vector<10x128xf32>
    %1429 = arith.addf %1426, %1428 : vector<10x128xf32>
    %1430 = math.tanh %1429 : vector<10x128xf32>
    %1431 = arith.mulf %45, %1430 : vector<10x128xf32>
    %cst_355 = arith.constant 4.000000e-01 : f32
    %1432 = vector.broadcast %cst_355 : f32 to vector<10x128xf32>
    %1433 = arith.mulf %1432, %1403 : vector<10x128xf32>
    %1434 = arith.addf %1431, %1433 : vector<10x128xf32>
    %1435 = math.tanh %1434 : vector<10x128xf32>
    %1436 = arith.mulf %51, %1435 : vector<10x128xf32>
    %cst_356 = arith.constant 4.000000e-01 : f32
    %1437 = vector.broadcast %cst_356 : f32 to vector<10x128xf32>
    %1438 = arith.mulf %1437, %1408 : vector<10x128xf32>
    %1439 = arith.addf %1436, %1438 : vector<10x128xf32>
    %1440 = math.tanh %1439 : vector<10x128xf32>
    %1441 = arith.mulf %57, %1440 : vector<10x128xf32>
    %cst_357 = arith.constant 4.000000e-01 : f32
    %1442 = vector.broadcast %cst_357 : f32 to vector<10x128xf32>
    %1443 = arith.mulf %1442, %1413 : vector<10x128xf32>
    %1444 = arith.addf %1441, %1443 : vector<10x128xf32>
    %1445 = math.tanh %1444 : vector<10x128xf32>
    %c43 = arith.constant 43 : index
    %c0_358 = arith.constant 0 : index
    %1446 = vector.load %arg11[%c43, %c0_358] : memref<49x128xf32, #tpu.memory_space<vmem>>, vector<1x128xf32>
    %1447 = vector.broadcast %1446 : vector<1x128xf32> to vector<10x128xf32>
    %1448 = arith.mulf %27, %1447 : vector<10x128xf32>
    %cst_359 = arith.constant 4.000000e-01 : f32
    %1449 = vector.broadcast %cst_359 : f32 to vector<10x128xf32>
    %1450 = arith.mulf %1449, %1420 : vector<10x128xf32>
    %1451 = arith.addf %1448, %1450 : vector<10x128xf32>
    %1452 = math.tanh %1451 : vector<10x128xf32>
    %1453 = arith.mulf %33, %1452 : vector<10x128xf32>
    %cst_360 = arith.constant 4.000000e-01 : f32
    %1454 = vector.broadcast %cst_360 : f32 to vector<10x128xf32>
    %1455 = arith.mulf %1454, %1425 : vector<10x128xf32>
    %1456 = arith.addf %1453, %1455 : vector<10x128xf32>
    %1457 = math.tanh %1456 : vector<10x128xf32>
    %1458 = arith.mulf %39, %1457 : vector<10x128xf32>
    %cst_361 = arith.constant 4.000000e-01 : f32
    %1459 = vector.broadcast %cst_361 : f32 to vector<10x128xf32>
    %1460 = arith.mulf %1459, %1430 : vector<10x128xf32>
    %1461 = arith.addf %1458, %1460 : vector<10x128xf32>
    %1462 = math.tanh %1461 : vector<10x128xf32>
    %1463 = arith.mulf %45, %1462 : vector<10x128xf32>
    %cst_362 = arith.constant 4.000000e-01 : f32
    %1464 = vector.broadcast %cst_362 : f32 to vector<10x128xf32>
    %1465 = arith.mulf %1464, %1435 : vector<10x128xf32>
    %1466 = arith.addf %1463, %1465 : vector<10x128xf32>
    %1467 = math.tanh %1466 : vector<10x128xf32>
    %1468 = arith.mulf %51, %1467 : vector<10x128xf32>
    %cst_363 = arith.constant 4.000000e-01 : f32
    %1469 = vector.broadcast %cst_363 : f32 to vector<10x128xf32>
    %1470 = arith.mulf %1469, %1440 : vector<10x128xf32>
    %1471 = arith.addf %1468, %1470 : vector<10x128xf32>
    %1472 = math.tanh %1471 : vector<10x128xf32>
    %1473 = arith.mulf %57, %1472 : vector<10x128xf32>
    %cst_364 = arith.constant 4.000000e-01 : f32
    %1474 = vector.broadcast %cst_364 : f32 to vector<10x128xf32>
    %1475 = arith.mulf %1474, %1445 : vector<10x128xf32>
    %1476 = arith.addf %1473, %1475 : vector<10x128xf32>
    %1477 = math.tanh %1476 : vector<10x128xf32>
    %c44 = arith.constant 44 : index
    %c0_365 = arith.constant 0 : index
    %1478 = vector.load %arg11[%c44, %c0_365] : memref<49x128xf32, #tpu.memory_space<vmem>>, vector<1x128xf32>
    %1479 = vector.broadcast %1478 : vector<1x128xf32> to vector<10x128xf32>
    %1480 = arith.mulf %27, %1479 : vector<10x128xf32>
    %cst_366 = arith.constant 4.000000e-01 : f32
    %1481 = vector.broadcast %cst_366 : f32 to vector<10x128xf32>
    %1482 = arith.mulf %1481, %1452 : vector<10x128xf32>
    %1483 = arith.addf %1480, %1482 : vector<10x128xf32>
    %1484 = math.tanh %1483 : vector<10x128xf32>
    %1485 = arith.mulf %33, %1484 : vector<10x128xf32>
    %cst_367 = arith.constant 4.000000e-01 : f32
    %1486 = vector.broadcast %cst_367 : f32 to vector<10x128xf32>
    %1487 = arith.mulf %1486, %1457 : vector<10x128xf32>
    %1488 = arith.addf %1485, %1487 : vector<10x128xf32>
    %1489 = math.tanh %1488 : vector<10x128xf32>
    %1490 = arith.mulf %39, %1489 : vector<10x128xf32>
    %cst_368 = arith.constant 4.000000e-01 : f32
    %1491 = vector.broadcast %cst_368 : f32 to vector<10x128xf32>
    %1492 = arith.mulf %1491, %1462 : vector<10x128xf32>
    %1493 = arith.addf %1490, %1492 : vector<10x128xf32>
    %1494 = math.tanh %1493 : vector<10x128xf32>
    %1495 = arith.mulf %45, %1494 : vector<10x128xf32>
    %cst_369 = arith.constant 4.000000e-01 : f32
    %1496 = vector.broadcast %cst_369 : f32 to vector<10x128xf32>
    %1497 = arith.mulf %1496, %1467 : vector<10x128xf32>
    %1498 = arith.addf %1495, %1497 : vector<10x128xf32>
    %1499 = math.tanh %1498 : vector<10x128xf32>
    %1500 = arith.mulf %51, %1499 : vector<10x128xf32>
    %cst_370 = arith.constant 4.000000e-01 : f32
    %1501 = vector.broadcast %cst_370 : f32 to vector<10x128xf32>
    %1502 = arith.mulf %1501, %1472 : vector<10x128xf32>
    %1503 = arith.addf %1500, %1502 : vector<10x128xf32>
    %1504 = math.tanh %1503 : vector<10x128xf32>
    %1505 = arith.mulf %57, %1504 : vector<10x128xf32>
    %cst_371 = arith.constant 4.000000e-01 : f32
    %1506 = vector.broadcast %cst_371 : f32 to vector<10x128xf32>
    %1507 = arith.mulf %1506, %1477 : vector<10x128xf32>
    %1508 = arith.addf %1505, %1507 : vector<10x128xf32>
    %1509 = math.tanh %1508 : vector<10x128xf32>
    %c45 = arith.constant 45 : index
    %c0_372 = arith.constant 0 : index
    %1510 = vector.load %arg11[%c45, %c0_372] : memref<49x128xf32, #tpu.memory_space<vmem>>, vector<1x128xf32>
    %1511 = vector.broadcast %1510 : vector<1x128xf32> to vector<10x128xf32>
    %1512 = arith.mulf %27, %1511 : vector<10x128xf32>
    %cst_373 = arith.constant 4.000000e-01 : f32
    %1513 = vector.broadcast %cst_373 : f32 to vector<10x128xf32>
    %1514 = arith.mulf %1513, %1484 : vector<10x128xf32>
    %1515 = arith.addf %1512, %1514 : vector<10x128xf32>
    %1516 = math.tanh %1515 : vector<10x128xf32>
    %1517 = arith.mulf %33, %1516 : vector<10x128xf32>
    %cst_374 = arith.constant 4.000000e-01 : f32
    %1518 = vector.broadcast %cst_374 : f32 to vector<10x128xf32>
    %1519 = arith.mulf %1518, %1489 : vector<10x128xf32>
    %1520 = arith.addf %1517, %1519 : vector<10x128xf32>
    %1521 = math.tanh %1520 : vector<10x128xf32>
    %1522 = arith.mulf %39, %1521 : vector<10x128xf32>
    %cst_375 = arith.constant 4.000000e-01 : f32
    %1523 = vector.broadcast %cst_375 : f32 to vector<10x128xf32>
    %1524 = arith.mulf %1523, %1494 : vector<10x128xf32>
    %1525 = arith.addf %1522, %1524 : vector<10x128xf32>
    %1526 = math.tanh %1525 : vector<10x128xf32>
    %1527 = arith.mulf %45, %1526 : vector<10x128xf32>
    %cst_376 = arith.constant 4.000000e-01 : f32
    %1528 = vector.broadcast %cst_376 : f32 to vector<10x128xf32>
    %1529 = arith.mulf %1528, %1499 : vector<10x128xf32>
    %1530 = arith.addf %1527, %1529 : vector<10x128xf32>
    %1531 = math.tanh %1530 : vector<10x128xf32>
    %1532 = arith.mulf %51, %1531 : vector<10x128xf32>
    %cst_377 = arith.constant 4.000000e-01 : f32
    %1533 = vector.broadcast %cst_377 : f32 to vector<10x128xf32>
    %1534 = arith.mulf %1533, %1504 : vector<10x128xf32>
    %1535 = arith.addf %1532, %1534 : vector<10x128xf32>
    %1536 = math.tanh %1535 : vector<10x128xf32>
    %1537 = arith.mulf %57, %1536 : vector<10x128xf32>
    %cst_378 = arith.constant 4.000000e-01 : f32
    %1538 = vector.broadcast %cst_378 : f32 to vector<10x128xf32>
    %1539 = arith.mulf %1538, %1509 : vector<10x128xf32>
    %1540 = arith.addf %1537, %1539 : vector<10x128xf32>
    %1541 = math.tanh %1540 : vector<10x128xf32>
    %c46 = arith.constant 46 : index
    %c0_379 = arith.constant 0 : index
    %1542 = vector.load %arg11[%c46, %c0_379] : memref<49x128xf32, #tpu.memory_space<vmem>>, vector<1x128xf32>
    %1543 = vector.broadcast %1542 : vector<1x128xf32> to vector<10x128xf32>
    %1544 = arith.mulf %27, %1543 : vector<10x128xf32>
    %cst_380 = arith.constant 4.000000e-01 : f32
    %1545 = vector.broadcast %cst_380 : f32 to vector<10x128xf32>
    %1546 = arith.mulf %1545, %1516 : vector<10x128xf32>
    %1547 = arith.addf %1544, %1546 : vector<10x128xf32>
    %1548 = math.tanh %1547 : vector<10x128xf32>
    %1549 = arith.mulf %33, %1548 : vector<10x128xf32>
    %cst_381 = arith.constant 4.000000e-01 : f32
    %1550 = vector.broadcast %cst_381 : f32 to vector<10x128xf32>
    %1551 = arith.mulf %1550, %1521 : vector<10x128xf32>
    %1552 = arith.addf %1549, %1551 : vector<10x128xf32>
    %1553 = math.tanh %1552 : vector<10x128xf32>
    %1554 = arith.mulf %39, %1553 : vector<10x128xf32>
    %cst_382 = arith.constant 4.000000e-01 : f32
    %1555 = vector.broadcast %cst_382 : f32 to vector<10x128xf32>
    %1556 = arith.mulf %1555, %1526 : vector<10x128xf32>
    %1557 = arith.addf %1554, %1556 : vector<10x128xf32>
    %1558 = math.tanh %1557 : vector<10x128xf32>
    %1559 = arith.mulf %45, %1558 : vector<10x128xf32>
    %cst_383 = arith.constant 4.000000e-01 : f32
    %1560 = vector.broadcast %cst_383 : f32 to vector<10x128xf32>
    %1561 = arith.mulf %1560, %1531 : vector<10x128xf32>
    %1562 = arith.addf %1559, %1561 : vector<10x128xf32>
    %1563 = math.tanh %1562 : vector<10x128xf32>
    %1564 = arith.mulf %51, %1563 : vector<10x128xf32>
    %cst_384 = arith.constant 4.000000e-01 : f32
    %1565 = vector.broadcast %cst_384 : f32 to vector<10x128xf32>
    %1566 = arith.mulf %1565, %1536 : vector<10x128xf32>
    %1567 = arith.addf %1564, %1566 : vector<10x128xf32>
    %1568 = math.tanh %1567 : vector<10x128xf32>
    %1569 = arith.mulf %57, %1568 : vector<10x128xf32>
    %cst_385 = arith.constant 4.000000e-01 : f32
    %1570 = vector.broadcast %cst_385 : f32 to vector<10x128xf32>
    %1571 = arith.mulf %1570, %1541 : vector<10x128xf32>
    %1572 = arith.addf %1569, %1571 : vector<10x128xf32>
    %1573 = math.tanh %1572 : vector<10x128xf32>
    %c47 = arith.constant 47 : index
    %c0_386 = arith.constant 0 : index
    %1574 = vector.load %arg11[%c47, %c0_386] : memref<49x128xf32, #tpu.memory_space<vmem>>, vector<1x128xf32>
    %1575 = vector.broadcast %1574 : vector<1x128xf32> to vector<10x128xf32>
    %1576 = arith.mulf %27, %1575 : vector<10x128xf32>
    %cst_387 = arith.constant 4.000000e-01 : f32
    %1577 = vector.broadcast %cst_387 : f32 to vector<10x128xf32>
    %1578 = arith.mulf %1577, %1548 : vector<10x128xf32>
    %1579 = arith.addf %1576, %1578 : vector<10x128xf32>
    %1580 = math.tanh %1579 : vector<10x128xf32>
    %1581 = arith.mulf %33, %1580 : vector<10x128xf32>
    %cst_388 = arith.constant 4.000000e-01 : f32
    %1582 = vector.broadcast %cst_388 : f32 to vector<10x128xf32>
    %1583 = arith.mulf %1582, %1553 : vector<10x128xf32>
    %1584 = arith.addf %1581, %1583 : vector<10x128xf32>
    %1585 = math.tanh %1584 : vector<10x128xf32>
    %1586 = arith.mulf %39, %1585 : vector<10x128xf32>
    %cst_389 = arith.constant 4.000000e-01 : f32
    %1587 = vector.broadcast %cst_389 : f32 to vector<10x128xf32>
    %1588 = arith.mulf %1587, %1558 : vector<10x128xf32>
    %1589 = arith.addf %1586, %1588 : vector<10x128xf32>
    %1590 = math.tanh %1589 : vector<10x128xf32>
    %1591 = arith.mulf %45, %1590 : vector<10x128xf32>
    %cst_390 = arith.constant 4.000000e-01 : f32
    %1592 = vector.broadcast %cst_390 : f32 to vector<10x128xf32>
    %1593 = arith.mulf %1592, %1563 : vector<10x128xf32>
    %1594 = arith.addf %1591, %1593 : vector<10x128xf32>
    %1595 = math.tanh %1594 : vector<10x128xf32>
    %1596 = arith.mulf %51, %1595 : vector<10x128xf32>
    %cst_391 = arith.constant 4.000000e-01 : f32
    %1597 = vector.broadcast %cst_391 : f32 to vector<10x128xf32>
    %1598 = arith.mulf %1597, %1568 : vector<10x128xf32>
    %1599 = arith.addf %1596, %1598 : vector<10x128xf32>
    %1600 = math.tanh %1599 : vector<10x128xf32>
    %1601 = arith.mulf %57, %1600 : vector<10x128xf32>
    %cst_392 = arith.constant 4.000000e-01 : f32
    %1602 = vector.broadcast %cst_392 : f32 to vector<10x128xf32>
    %1603 = arith.mulf %1602, %1573 : vector<10x128xf32>
    %1604 = arith.addf %1601, %1603 : vector<10x128xf32>
    %1605 = math.tanh %1604 : vector<10x128xf32>
    %c48 = arith.constant 48 : index
    %c0_393 = arith.constant 0 : index
    %1606 = vector.load %arg11[%c48, %c0_393] : memref<49x128xf32, #tpu.memory_space<vmem>>, vector<1x128xf32>
    %1607 = vector.broadcast %1606 : vector<1x128xf32> to vector<10x128xf32>
    %1608 = arith.mulf %27, %1607 : vector<10x128xf32>
    %cst_394 = arith.constant 4.000000e-01 : f32
    %1609 = vector.broadcast %cst_394 : f32 to vector<10x128xf32>
    %1610 = arith.mulf %1609, %1580 : vector<10x128xf32>
    %1611 = arith.addf %1608, %1610 : vector<10x128xf32>
    %1612 = math.tanh %1611 : vector<10x128xf32>
    %1613 = arith.mulf %33, %1612 : vector<10x128xf32>
    %cst_395 = arith.constant 4.000000e-01 : f32
    %1614 = vector.broadcast %cst_395 : f32 to vector<10x128xf32>
    %1615 = arith.mulf %1614, %1585 : vector<10x128xf32>
    %1616 = arith.addf %1613, %1615 : vector<10x128xf32>
    %1617 = math.tanh %1616 : vector<10x128xf32>
    %1618 = arith.mulf %39, %1617 : vector<10x128xf32>
    %cst_396 = arith.constant 4.000000e-01 : f32
    %1619 = vector.broadcast %cst_396 : f32 to vector<10x128xf32>
    %1620 = arith.mulf %1619, %1590 : vector<10x128xf32>
    %1621 = arith.addf %1618, %1620 : vector<10x128xf32>
    %1622 = math.tanh %1621 : vector<10x128xf32>
    %1623 = arith.mulf %45, %1622 : vector<10x128xf32>
    %cst_397 = arith.constant 4.000000e-01 : f32
    %1624 = vector.broadcast %cst_397 : f32 to vector<10x128xf32>
    %1625 = arith.mulf %1624, %1595 : vector<10x128xf32>
    %1626 = arith.addf %1623, %1625 : vector<10x128xf32>
    %1627 = math.tanh %1626 : vector<10x128xf32>
    %1628 = arith.mulf %51, %1627 : vector<10x128xf32>
    %cst_398 = arith.constant 4.000000e-01 : f32
    %1629 = vector.broadcast %cst_398 : f32 to vector<10x128xf32>
    %1630 = arith.mulf %1629, %1600 : vector<10x128xf32>
    %1631 = arith.addf %1628, %1630 : vector<10x128xf32>
    %1632 = math.tanh %1631 : vector<10x128xf32>
    %1633 = arith.mulf %57, %1632 : vector<10x128xf32>
    %cst_399 = arith.constant 4.000000e-01 : f32
    %1634 = vector.broadcast %cst_399 : f32 to vector<10x128xf32>
    %1635 = arith.mulf %1634, %1605 : vector<10x128xf32>
    %1636 = arith.addf %1633, %1635 : vector<10x128xf32>
    %1637 = math.tanh %1636 : vector<10x128xf32>
    %c0_400 = arith.constant 0 : index
    %c0_401 = arith.constant 0 : index
    %c0_402 = arith.constant 0 : index
    %1638 = vector.load %arg10[%c0_400, %c0_401, %c0_402] : memref<6x10x128xf32, #tpu.memory_space<vmem>>, vector<1x10x128xf32>
    %1639 = vector.shape_cast %1638 : vector<1x10x128xf32> to vector<10x128xf32>
    %1640 = vector.shape_cast %1612 : vector<10x128xf32> to vector<1x10x128xf32>
    tpu.vector_store %arg10[%c0_400, %c0_401, %c0_402], %1640 {strides = array<i32>} : memref<6x10x128xf32, #tpu.memory_space<vmem>>, vector<1x10x128xf32>,
    %c1_403 = arith.constant 1 : index
    %c0_404 = arith.constant 0 : index
    %c0_405 = arith.constant 0 : index
    %1641 = vector.load %arg10[%c1_403, %c0_404, %c0_405] : memref<6x10x128xf32, #tpu.memory_space<vmem>>, vector<1x10x128xf32>
    %1642 = vector.shape_cast %1641 : vector<1x10x128xf32> to vector<10x128xf32>
    %1643 = vector.shape_cast %1617 : vector<10x128xf32> to vector<1x10x128xf32>
    tpu.vector_store %arg10[%c1_403, %c0_404, %c0_405], %1643 {strides = array<i32>} : memref<6x10x128xf32, #tpu.memory_space<vmem>>, vector<1x10x128xf32>,
    %c2_406 = arith.constant 2 : index
    %c0_407 = arith.constant 0 : index
    %c0_408 = arith.constant 0 : index
    %1644 = vector.load %arg10[%c2_406, %c0_407, %c0_408] : memref<6x10x128xf32, #tpu.memory_space<vmem>>, vector<1x10x128xf32>
    %1645 = vector.shape_cast %1644 : vector<1x10x128xf32> to vector<10x128xf32>
    %1646 = vector.shape_cast %1622 : vector<10x128xf32> to vector<1x10x128xf32>
    tpu.vector_store %arg10[%c2_406, %c0_407, %c0_408], %1646 {strides = array<i32>} : memref<6x10x128xf32, #tpu.memory_space<vmem>>, vector<1x10x128xf32>,
    %c3_409 = arith.constant 3 : index
    %c0_410 = arith.constant 0 : index
    %c0_411 = arith.constant 0 : index
    %1647 = vector.load %arg10[%c3_409, %c0_410, %c0_411] : memref<6x10x128xf32, #tpu.memory_space<vmem>>, vector<1x10x128xf32>
    %1648 = vector.shape_cast %1647 : vector<1x10x128xf32> to vector<10x128xf32>
    %1649 = vector.shape_cast %1627 : vector<10x128xf32> to vector<1x10x128xf32>
    tpu.vector_store %arg10[%c3_409, %c0_410, %c0_411], %1649 {strides = array<i32>} : memref<6x10x128xf32, #tpu.memory_space<vmem>>, vector<1x10x128xf32>,
    %c4_412 = arith.constant 4 : index
    %c0_413 = arith.constant 0 : index
    %c0_414 = arith.constant 0 : index
    %1650 = vector.load %arg10[%c4_412, %c0_413, %c0_414] : memref<6x10x128xf32, #tpu.memory_space<vmem>>, vector<1x10x128xf32>
    %1651 = vector.shape_cast %1650 : vector<1x10x128xf32> to vector<10x128xf32>
    %1652 = vector.shape_cast %1632 : vector<10x128xf32> to vector<1x10x128xf32>
    tpu.vector_store %arg10[%c4_412, %c0_413, %c0_414], %1652 {strides = array<i32>} : memref<6x10x128xf32, #tpu.memory_space<vmem>>, vector<1x10x128xf32>,
    %c5_415 = arith.constant 5 : index
    %c0_416 = arith.constant 0 : index
    %c0_417 = arith.constant 0 : index
    %1653 = vector.load %arg10[%c5_415, %c0_416, %c0_417] : memref<6x10x128xf32, #tpu.memory_space<vmem>>, vector<1x10x128xf32>
    %1654 = vector.shape_cast %1653 : vector<1x10x128xf32> to vector<10x128xf32>
    %1655 = vector.shape_cast %1637 : vector<10x128xf32> to vector<1x10x128xf32>
    tpu.vector_store %arg10[%c5_415, %c0_416, %c0_417], %1655 {strides = array<i32>} : memref<6x10x128xf32, #tpu.memory_space<vmem>>, vector<1x10x128xf32>,
    %c0_418 = arith.constant 0 : index
    %c0_419 = arith.constant 0 : index
    %1656 = vector.load %arg6[%c0_418, %c0_419] : memref<8x10xf32, #tpu.memory_space<vmem>>, vector<8x10xf32>
    %cst_420 = arith.constant dense<0.000000e+00> : vector<8x128xf32>
    %1657 = tpu.matmul %1656, %1637, %cst_420 {dimension_numbers = #tpu.dot_dimension_numbers<[1], [0], [0], [1], [0, 0, 1, 1], [], []>} : vector<8x10xf32>, vector<10x128xf32>, vector<8x128xf32> -> vector<8x128xf32>
    %cst_421 = arith.constant 0.000000e+00 : f32
    %1658 = vector.broadcast %cst_421 : f32 to vector<8x128xf32>
    %1659 = arith.maximumf %1657, %1658 : vector<8x128xf32>
    %c0_422 = arith.constant 0 : index
    %c0_423 = arith.constant 0 : index
    %1660 = vector.load %arg7[%c0_422, %c0_423] : memref<10x8xf32, #tpu.memory_space<vmem>>, vector<10x8xf32>
    %cst_424 = arith.constant dense<0.000000e+00> : vector<10x128xf32>
    %1661 = tpu.matmul %1660, %1659, %cst_424 {dimension_numbers = #tpu.dot_dimension_numbers<[1], [0], [0], [1], [0, 0, 1, 1], [], []>} : vector<10x8xf32>, vector<8x128xf32>, vector<10x128xf32> -> vector<10x128xf32>
    %c0_425 = arith.constant 0 : index
    %c0_426 = arith.constant 0 : index
    %1662 = vector.load %arg8[%c0_425, %c0_426] : memref<10x1xf32, #tpu.memory_space<vmem>>, vector<10x1xf32>
    %1663 = vector.broadcast %1662 : vector<10x1xf32> to vector<10x128xf32>
    %1664 = arith.addf %1661, %1663 : vector<10x128xf32>
    %c0_427 = arith.constant 0 : index
    %c0_428 = arith.constant 0 : index
    %1665 = vector.load %arg9[%c0_427, %c0_428] : memref<10x128xf32, #tpu.memory_space<vmem>>, vector<10x128xf32>
    tpu.vector_store %arg9[%c0_427, %c0_428], %1664 {strides = array<i32>} : memref<10x128xf32, #tpu.memory_space<vmem>>, vector<10x128xf32>,
    return
  }
  func.func @transform_0(%arg0: i32) -> (i32, i32) {
    %c0_i32 = arith.constant 0 : i32
    %c0_i32_0 = arith.constant 0 : i32
    return %c0_i32, %arg0 : i32, i32
  }
  func.func @transform_1(%arg0: i32) -> (i32, i32) {
    %c0_i32 = arith.constant 0 : i32
    %c0_i32_0 = arith.constant 0 : i32
    %c0_i32_1 = arith.constant 0 : i32
    return %c0_i32, %c0_i32_0 : i32, i32
  }
  func.func @transform_2(%arg0: i32) -> (i32, i32) {
    %c0_i32 = arith.constant 0 : i32
    %c0_i32_0 = arith.constant 0 : i32
    %c0_i32_1 = arith.constant 0 : i32
    return %c0_i32, %c0_i32_0 : i32, i32
  }
  func.func @transform_3(%arg0: i32) -> (i32, i32, i32) {
    %c0_i32 = arith.constant 0 : i32
    %c0_i32_0 = arith.constant 0 : i32
    %c0_i32_1 = arith.constant 0 : i32
    %c0_i32_2 = arith.constant 0 : i32
    return %c0_i32, %c0_i32_0, %c0_i32_1 : i32, i32, i32
  }
  func.func @transform_4(%arg0: i32) -> (i32, i32, i32) {
    %c0_i32 = arith.constant 0 : i32
    %c0_i32_0 = arith.constant 0 : i32
    %c0_i32_1 = arith.constant 0 : i32
    return %c0_i32, %c0_i32_0, %arg0 : i32, i32, i32
  }
  func.func @transform_5(%arg0: i32) -> (i32, i32) {
    %c0_i32 = arith.constant 0 : i32
    %c0_i32_0 = arith.constant 0 : i32
    %c0_i32_1 = arith.constant 0 : i32
    return %c0_i32, %c0_i32_0 : i32, i32
  }
  func.func @transform_6(%arg0: i32) -> (i32, i32) {
    %c0_i32 = arith.constant 0 : i32
    %c0_i32_0 = arith.constant 0 : i32
    %c0_i32_1 = arith.constant 0 : i32
    return %c0_i32, %c0_i32_0 : i32, i32
  }
  func.func @transform_7(%arg0: i32) -> (i32, i32) {
    %c0_i32 = arith.constant 0 : i32
    %c0_i32_0 = arith.constant 0 : i32
    %c0_i32_1 = arith.constant 0 : i32
    return %c0_i32, %c0_i32_0 : i32, i32
  }
  func.func @transform_8(%arg0: i32) -> (i32, i32) {
    %c0_i32 = arith.constant 0 : i32
    %c0_i32_0 = arith.constant 0 : i32
    return %c0_i32, %arg0 : i32, i32
  }
  func.func @transform_9(%arg0: i32) -> (i32, i32, i32) {
    %c0_i32 = arith.constant 0 : i32
    %c0_i32_0 = arith.constant 0 : i32
    %c0_i32_1 = arith.constant 0 : i32
    return %c0_i32, %c0_i32_0, %arg0 : i32, i32, i32
  }
}

</mosaic_0001>

<llo_original>
// kernel: qimage_dfr_system.1
$region0: #{qimage_dfr_system.1}
  #allocation0 [shape = 'u32[]', space=smem, size = 0x4, offset = 0x4, fixed_abs, tag = 'smem constant byte address 0x4 - core index']
  #allocation1 [shape = 'u32[144,128]{1,0:T(1,128)}', space=vmem, size = 0x12000, scoped, tag = 'internal scratch']
  #allocation2 [shape = 'f32[49,128]{1,0:T(8,128)}', space=vmem, size = 0x7000, scoped, tag = 'scratch operand']
  %s0 = inlined_call_operand.vmem [shape: f32[196,128], index: 0, kind: input, shape index: {}]
  %s1 = inlined_call_operand.vmem [shape: f32[49,196], index: 1, kind: input, shape index: {}]
  %s2 = inlined_call_operand.vmem [shape: f32[49,1], index: 2, kind: input, shape index: {}]
  %s3 = inlined_call_operand.vmem [shape: f32[6,10,1], index: 3, kind: input, shape index: {}]
  %s4 = inlined_call_operand.vmem [shape: f32[6,10,128], index: 4, kind: input, shape index: {}]
  %s5 = inlined_call_operand.vmem [shape: f32[8,10], index: 5, kind: input, shape index: {}]
  %s6 = inlined_call_operand.vmem [shape: f32[10,8], index: 6, kind: input, shape index: {}]
  %s7 = inlined_call_operand.vmem [shape: f32[10,1], index: 7, kind: input, shape index: {}]
  %s8 = inlined_call_operand.vmem [shape: f32[10,128], index: 8, kind: output, shape index: {0}]
  %s9 = inlined_call_operand.vmem [shape: f32[6,10,128], index: 9, kind: output, shape index: {1}]
  %10 = xla_tuple %s8, %s9
  %s11 = sld [smem:[#allocation0]]
  $region50: #{qimage_dfr_system.1} parent=0
    _
  %s13 = ssub.s32 1, %s11
  %s14 = scalar_select 0, %s13, %s11
  // Predicated region
  $region2: #{qimage_dfr_system.1} parent=0 // pred_check
    _
  $region3: #{qimage_dfr_system.1} parent=0 // pred_check_branch
    %16 = sbr.rel (0) target = $region5
  $region4: #{qimage_dfr_system.1} parent=0 // pred_region
    _
  $region5: #{qimage_dfr_system.1} parent=0 // pred_fallthru
    _
  // Predicated region
  $region6: #{qimage_dfr_system.1} parent=0 // pred_check
    _
  $region7: #{qimage_dfr_system.1} parent=0 // pred_check_branch
    %18 = sbr.rel (0) target = $region9
  $region8: #{qimage_dfr_system.1} parent=0 // pred_region
    _
  $region9: #{qimage_dfr_system.1} parent=0 // pred_fallthru
    _
  // Predicated region
  $region10: #{qimage_dfr_system.1} parent=0 // pred_check
    _
  $region11: #{qimage_dfr_system.1} parent=0 // pred_check_branch
    %20 = sbr.rel (0) target = $region13
  $region12: #{qimage_dfr_system.1} parent=0 // pred_region
    _
  $region13: #{qimage_dfr_system.1} parent=0 // pred_fallthru
    _
  // Predicated region
  $region14: #{qimage_dfr_system.1} parent=0 // pred_check
    _
  $region15: #{qimage_dfr_system.1} parent=0 // pred_check_branch
    %22 = sbr.rel (0) target = $region17
  $region16: #{qimage_dfr_system.1} parent=0 // pred_region
    _
  $region17: #{qimage_dfr_system.1} parent=0 // pred_fallthru
    _
  // Predicated region
  $region18: #{qimage_dfr_system.1} parent=0 // pred_check
    _
  $region19: #{qimage_dfr_system.1} parent=0 // pred_check_branch
    %24 = sbr.rel (0) target = $region21
  $region20: #{qimage_dfr_system.1} parent=0 // pred_region
    _
  $region21: #{qimage_dfr_system.1} parent=0 // pred_fallthru
    _
  // Predicated region
  $region22: #{qimage_dfr_system.1} parent=0 // pred_check
    _
  $region23: #{qimage_dfr_system.1} parent=0 // pred_check_branch
    %26 = sbr.rel (0) target = $region25
  $region24: #{qimage_dfr_system.1} parent=0 // pred_region
    _
  $region25: #{qimage_dfr_system.1} parent=0 // pred_fallthru
    _
  // Predicated region
  $region26: #{qimage_dfr_system.1} parent=0 // pred_check
    _
  $region27: #{qimage_dfr_system.1} parent=0 // pred_check_branch
    %28 = sbr.rel (0) target = $region29
  $region28: #{qimage_dfr_system.1} parent=0 // pred_region
    _
  $region29: #{qimage_dfr_system.1} parent=0 // pred_fallthru
    _
  // Predicated region
  $region30: #{qimage_dfr_system.1} parent=0 // pred_check
    _
  $region31: #{qimage_dfr_system.1} parent=0 // pred_check_branch
    %30 = sbr.rel (0) target = $region33
  $region32: #{qimage_dfr_system.1} parent=0 // pred_region
    _
  $region33: #{qimage_dfr_system.1} parent=0 // pred_fallthru
    _
  %v31 = vld [vmem:[%s0] sm:$0xff]
  %v32 = vld [vmem:[%s0 + $0x8] sm:$0xff]
  %v33 = vld [vmem:[%s0 + $0x10] sm:$0xff]
  %v34 = vld [vmem:[%s0 + $0x18] sm:$0xff]
  %v35 = vld [vmem:[%s0 + $0x20] sm:$0xff]
  %v36 = vld [vmem:[%s0 + $0x28] sm:$0xff]
  %v37 = vld [vmem:[%s0 + $0x30] sm:$0xff]
  %v38 = vld [vmem:[%s0 + $0x38] sm:$0xff]
  %v39 = vld [vmem:[%s0 + $0x40] sm:$0xff]
  %v40 = vld [vmem:[%s0 + $0x48] sm:$0xff]
  %v41 = vld [vmem:[%s0 + $0x50] sm:$0xff]
  %v42 = vld [vmem:[%s0 + $0x58] sm:$0xff]
  %v43 = vld [vmem:[%s0 + $0x60] sm:$0xff]
  %v44 = vld [vmem:[%s0 + $0x68] sm:$0xff]
  %v45 = vld [vmem:[%s0 + $0x70] sm:$0xff]
  %v46 = vld [vmem:[%s0 + $0x78] sm:$0xff]
  %v47 = vld [vmem:[%s0 + $0x80] sm:$0xff]
  %v48 = vld [vmem:[%s0 + $0x88] sm:$0xff]
  %v49 = vld [vmem:[%s0 + $0x90] sm:$0xff]
  %v50 = vld [vmem:[%s0 + $0x98] sm:$0xff]
  %v51 = vld [vmem:[%s0 + $0xa0] sm:$0xff]
  %v52 = vld [vmem:[%s0 + $0xa8] sm:$0xff]
  %v53 = vld [vmem:[%s0 + $0xb0] sm:$0xff]
  %v54 = vld [vmem:[%s0 + $0xb8] sm:$0xff]
  %v55 = vld [vmem:[%s0 + $0xc0] sm:$0xf]
  %v56 = vmax.f32 %v31, -0.45
  %v57 = vmax.f32 %v32, -0.45
  %v58 = vmax.f32 %v33, -0.45
  %v59 = vmax.f32 %v34, -0.45
  %v60 = vmax.f32 %v35, -0.45
  %v61 = vmax.f32 %v36, -0.45
  %v62 = vmax.f32 %v37, -0.45
  %v63 = vmax.f32 %v38, -0.45
  %v64 = vmax.f32 %v39, -0.45
  %v65 = vmax.f32 %v40, -0.45
  %v66 = vmax.f32 %v41, -0.45
  %v67 = vmax.f32 %v42, -0.45
  %v68 = vmax.f32 %v43, -0.45
  %v69 = vmax.f32 %v44, -0.45
  %v70 = vmax.f32 %v45, -0.45
  %v71 = vmax.f32 %v46, -0.45
  %v72 = vmax.f32 %v47, -0.45
  %v73 = vmax.f32 %v48, -0.45
  %v74 = vmax.f32 %v49, -0.45
  %v75 = vmax.f32 %v50, -0.45
  %v76 = vmax.f32 %v51, -0.45
  %v77 = vmax.f32 %v52, -0.45
  %v78 = vmax.f32 %v53, -0.45
  %v79 = vmax.f32 %v54, -0.45
  %v80 = vmax.f32 %v55, -0.45
  %v81 = vmin.f32 %v56, 3.55
  %v82 = vmin.f32 %v57, 3.55
  %v83 = vmin.f32 %v58, 3.55
  %v84 = vmin.f32 %v59, 3.55
  %v85 = vmin.f32 %v60, 3.55
  %v86 = vmin.f32 %v61, 3.55
  %v87 = vmin.f32 %v62, 3.55
  %v88 = vmin.f32 %v63, 3.55
  %v89 = vmin.f32 %v64, 3.55
  %v90 = vmin.f32 %v65, 3.55
  %v91 = vmin.f32 %v66, 3.55
  %v92 = vmin.f32 %v67, 3.55
  %v93 = vmin.f32 %v68, 3.55
  %v94 = vmin.f32 %v69, 3.55
  %v95 = vmin.f32 %v70, 3.55
  %v96 = vmin.f32 %v71, 3.55
  %v97 = vmin.f32 %v72, 3.55
  %v98 = vmin.f32 %v73, 3.55
  %v99 = vmin.f32 %v74, 3.55
  %v100 = vmin.f32 %v75, 3.55
  %v101 = vmin.f32 %v76, 3.55
  %v102 = vmin.f32 %v77, 3.55
  %v103 = vmin.f32 %v78, 3.55
  %v104 = vmin.f32 %v79, 3.55
  %v105 = vmin.f32 %v80, 3.55
  %v106 = vsub.f32 %v81, -0.45
  %v107 = vsub.f32 %v82, -0.45
  %v108 = vsub.f32 %v83, -0.45
  %v109 = vsub.f32 %v84, -0.45
  %v110 = vsub.f32 %v85, -0.45
  %v111 = vsub.f32 %v86, -0.45
  %v112 = vsub.f32 %v87, -0.45
  %v113 = vsub.f32 %v88, -0.45
  %v114 = vsub.f32 %v89, -0.45
  %v115 = vsub.f32 %v90, -0.45
  %v116 = vsub.f32 %v91, -0.45
  %v117 = vsub.f32 %v92, -0.45
  %v118 = vsub.f32 %v93, -0.45
  %v119 = vsub.f32 %v94, -0.45
  %v120 = vsub.f32 %v95, -0.45
  %v121 = vsub.f32 %v96, -0.45
  %v122 = vsub.f32 %v97, -0.45
  %v123 = vsub.f32 %v98, -0.45
  %v124 = vsub.f32 %v99, -0.45
  %v125 = vsub.f32 %v100, -0.45
  %v126 = vsub.f32 %v101, -0.45
  %v127 = vsub.f32 %v102, -0.45
  %v128 = vsub.f32 %v103, -0.45
  %v129 = vsub.f32 %v104, -0.45
  %v130 = vsub.f32 %v105, -0.45
  %v131 = vmul.f32 %v106, 63.75
  %v132 = vmul.f32 %v107, 63.75
  %v133 = vmul.f32 %v108, 63.75
  %v134 = vmul.f32 %v109, 63.75
  %v135 = vmul.f32 %v110, 63.75
  %v136 = vmul.f32 %v111, 63.75
  %v137 = vmul.f32 %v112, 63.75
  %v138 = vmul.f32 %v113, 63.75
  %v139 = vmul.f32 %v114, 63.75
  %v140 = vmul.f32 %v115, 63.75
  %v141 = vmul.f32 %v116, 63.75
  %v142 = vmul.f32 %v117, 63.75
  %v143 = vmul.f32 %v118, 63.75
  %v144 = vmul.f32 %v119, 63.75
  %v145 = vmul.f32 %v120, 63.75
  %v146 = vmul.f32 %v121, 63.75
  %v147 = vmul.f32 %v122, 63.75
  %v148 = vmul.f32 %v123, 63.75
  %v149 = vmul.f32 %v124, 63.75
  %v150 = vmul.f32 %v125, 63.75
  %v151 = vmul.f32 %v126, 63.75
  %v152 = vmul.f32 %v127, 63.75
  %v153 = vmul.f32 %v128, 63.75
  %v154 = vmul.f32 %v129, 63.75
  %v155 = vmul.f32 %v130, 63.75
  %v156 = vadd.f32 %v131, 0.5
  %v157 = vadd.f32 %v132, 0.5
  %v158 = vadd.f32 %v133, 0.5
  %v159 = vadd.f32 %v134, 0.5
  %v160 = vadd.f32 %v135, 0.5
  %v161 = vadd.f32 %v136, 0.5
  %v162 = vadd.f32 %v137, 0.5
  %v163 = vadd.f32 %v138, 0.5
  %v164 = vadd.f32 %v139, 0.5
  %v165 = vadd.f32 %v140, 0.5
  %v166 = vadd.f32 %v141, 0.5
  %v167 = vadd.f32 %v142, 0.5
  %v168 = vadd.f32 %v143, 0.5
  %v169 = vadd.f32 %v144, 0.5
  %v170 = vadd.f32 %v145, 0.5
  %v171 = vadd.f32 %v146, 0.5
  %v172 = vadd.f32 %v147, 0.5
  %v173 = vadd.f32 %v148, 0.5
  %v174 = vadd.f32 %v149, 0.5
  %v175 = vadd.f32 %v150, 0.5
  %v176 = vadd.f32 %v151, 0.5
  %v177 = vadd.f32 %v152, 0.5
  %v178 = vadd.f32 %v153, 0.5
  %v179 = vadd.f32 %v154, 0.5
  %v180 = vadd.f32 %v155, 0.5
  %v181 = vfloor.f32 %v156
  %v182 = vfloor.f32 %v157
  %v183 = vfloor.f32 %v158
  %v184 = vfloor.f32 %v159
  %v185 = vfloor.f32 %v160
  %v186 = vfloor.f32 %v161
  %v187 = vfloor.f32 %v162
  %v188 = vfloor.f32 %v163
  %v189 = vfloor.f32 %v164
  %v190 = vfloor.f32 %v165
  %v191 = vfloor.f32 %v166
  %v192 = vfloor.f32 %v167
  %v193 = vfloor.f32 %v168
  %v194 = vfloor.f32 %v169
  %v195 = vfloor.f32 %v170
  %v196 = vfloor.f32 %v171
  %v197 = vfloor.f32 %v172
  %v198 = vfloor.f32 %v173
  %v199 = vfloor.f32 %v174
  %v200 = vfloor.f32 %v175
  %v201 = vfloor.f32 %v176
  %v202 = vfloor.f32 %v177
  %v203 = vfloor.f32 %v178
  %v204 = vfloor.f32 %v179
  %v205 = vfloor.f32 %v180
  %v206 = vmul.f32 %v181, 0.015686275
  %v207 = vmul.f32 %v182, 0.015686275
  %v208 = vmul.f32 %v183, 0.015686275
  %v209 = vmul.f32 %v184, 0.015686275
  %v210 = vmul.f32 %v185, 0.015686275
  %v211 = vmul.f32 %v186, 0.015686275
  %v212 = vmul.f32 %v187, 0.015686275
  %v213 = vmul.f32 %v188, 0.015686275
  %v214 = vmul.f32 %v189, 0.015686275
  %v215 = vmul.f32 %v190, 0.015686275
  %v216 = vmul.f32 %v191, 0.015686275
  %v217 = vmul.f32 %v192, 0.015686275
  %v218 = vmul.f32 %v193, 0.015686275
  %v219 = vmul.f32 %v194, 0.015686275
  %v220 = vmul.f32 %v195, 0.015686275
  %v221 = vmul.f32 %v196, 0.015686275
  %v222 = vmul.f32 %v197, 0.015686275
  %v223 = vmul.f32 %v198, 0.015686275
  %v224 = vmul.f32 %v199, 0.015686275
  %v225 = vmul.f32 %v200, 0.015686275
  %v226 = vmul.f32 %v201, 0.015686275
  %v227 = vmul.f32 %v202, 0.015686275
  %v228 = vmul.f32 %v203, 0.015686275
  %v229 = vmul.f32 %v204, 0.015686275
  %v230 = vmul.f32 %v205, 0.015686275
  %v231 = vadd.f32 %v206, -0.45
  %v232 = vadd.f32 %v207, -0.45
  %v233 = vadd.f32 %v208, -0.45
  %v234 = vadd.f32 %v209, -0.45
  %v235 = vadd.f32 %v210, -0.45
  %v236 = vadd.f32 %v211, -0.45
  %v237 = vadd.f32 %v212, -0.45
  %v238 = vadd.f32 %v213, -0.45
  %v239 = vadd.f32 %v214, -0.45
  %v240 = vadd.f32 %v215, -0.45
  %v241 = vadd.f32 %v216, -0.45
  %v242 = vadd.f32 %v217, -0.45
  %v243 = vadd.f32 %v218, -0.45
  %v244 = vadd.f32 %v219, -0.45
  %v245 = vadd.f32 %v220, -0.45
  %v246 = vadd.f32 %v221, -0.45
  %v247 = vadd.f32 %v222, -0.45
  %v248 = vadd.f32 %v223, -0.45
  %v249 = vadd.f32 %v224, -0.45
  %v250 = vadd.f32 %v225, -0.45
  %v251 = vadd.f32 %v226, -0.45
  %v252 = vadd.f32 %v227, -0.45
  %v253 = vadd.f32 %v228, -0.45
  %v254 = vadd.f32 %v229, -0.45
  %v255 = vadd.f32 %v230, -0.45
  %v256 = vld [vmem:[%s1] sm:$0xff]
  %v257 = vld [vmem:[%s1 + $0x8] sm:$0xff]
  %v258 = vld [vmem:[%s1 + $0x10] sm:$0xff]
  %v259 = vld [vmem:[%s1 + $0x18] sm:$0xff]
  %v260 = vld [vmem:[%s1 + $0x20] sm:$0xff]
  %v261 = vld [vmem:[%s1 + $0x28] sm:$0xff]
  %v262 = vld [vmem:[%s1 + $0x30] sm:$0xff]
  %v263 = vld [vmem:[%s1 + $0x38] sm:$0xff]
  %v264 = vld [vmem:[%s1 + $0x40] sm:$0xff]
  %v265 = vld [vmem:[%s1 + $0x48] sm:$0xff]
  %v266 = vld [vmem:[%s1 + $0x50] sm:$0xff]
  %v267 = vld [vmem:[%s1 + $0x58] sm:$0xff]
  %v268 = vld [vmem:[%s1 + $0x60] sm:$0x1]
  %v269 = vld [vmem:[%s1 + $0x68] sm:$0x1]
  %v270 = vld [vmem:[%s2] sm:$0xff]
  %v271 = vld [vmem:[%s2 + $0x8] sm:$0xff]
  %v272 = vld [vmem:[%s2 + $0x10] sm:$0xff]
  %v273 = vld [vmem:[%s2 + $0x18] sm:$0xff]
  %v274 = vld [vmem:[%s2 + $0x20] sm:$0xff]
  %v275 = vld [vmem:[%s2 + $0x28] sm:$0xff]
  %v276 = vld [vmem:[%s2 + $0x30] sm:$0x1]
  %278 = vset.pattern.permute.xlu0 0
  %279 = vperm.xlu0 %278, %v270
  %v280 = vpop.permute.xlu0 %279
  %283 = vset.pattern.permute.xlu0 0
  %284 = vperm.xlu0 %283, %v271
  %v285 = vpop.permute.xlu0 %284
  %288 = vset.pattern.permute.xlu0 0
  %289 = vperm.xlu0 %288, %v272
  %v290 = vpop.permute.xlu0 %289
  %293 = vset.pattern.permute.xlu0 0
  %294 = vperm.xlu0 %293, %v273
  %v295 = vpop.permute.xlu0 %294
  %298 = vset.pattern.permute.xlu0 0
  %299 = vperm.xlu0 %298, %v274
  %v300 = vpop.permute.xlu0 %299
  %303 = vset.pattern.permute.xlu0 0
  %304 = vperm.xlu0 %303, %v275
  %v305 = vpop.permute.xlu0 %304
  %308 = vset.pattern.permute.xlu0 0
  %309 = vperm.xlu0 %308, %v276
  %v310 = vpop.permute.xlu0 %309
  %vm312 = vcmask 556032
  %v314 = vsel %vm312, %v257, 0
  %v317 = vsel %vm312, %v259, 0
  %v320 = vsel %vm312, %v261, 0
  %v323 = vsel %vm312, %v263, 0
  %v326 = vsel %vm312, %v265, 0
  %v329 = vsel %vm312, %v267, 0
  %v332 = vsel %vm312, %v269, 0
  %vm334 = vcmask 1043456
  %v336 = vsel %vm334, %v255, 0
  %338 = vmatprep.subr.mxu0 0.0
  %339 = vmatpush1.msra.mxu0 %v231
  %340 = vmatprep.subr.mxu0 0.0
  %341 = vmatpush1.msra.mxu0 %v232
  %342 = vmatprep.subr.mxu0 0.0
  %343 = vmatpush1.msra.mxu0 %v233
  %344 = vmatprep.subr.mxu0 0.0
  %345 = vmatpush1.msra.mxu0 %v234
  %346 = vmatprep.subr.mxu0 0.0
  %347 = vmatpush1.msra.mxu0 %v235
  %348 = vmatprep.subr.mxu0 0.0
  %349 = vmatpush1.msra.mxu0 %v236
  %350 = vmatprep.subr.mxu0 0.0
  %351 = vmatpush1.msra.mxu0 %v237
  %352 = vmatprep.subr.mxu0 0.0
  %353 = vmatpush1.msra.mxu0 %v238
  %354 = vmatprep.subr.mxu0 0.0
  %355 = vmatpush1.msra.mxu0 %v239
  %356 = vmatprep.subr.mxu0 0.0
  %357 = vmatpush1.msra.mxu0 %v240
  %358 = vmatprep.subr.mxu0 0.0
  %359 = vmatpush1.msra.mxu0 %v241
  %360 = vmatprep.subr.mxu0 0.0
  %361 = vmatpush1.msra.mxu0 %v242
  %362 = vmatprep.subr.mxu0 0.0
  %363 = vmatpush1.msra.mxu0 %v243
  %364 = vmatprep.subr.mxu0 0.0
  %365 = vmatpush1.msra.mxu0 %v244
  %366 = vmatprep.subr.mxu0 0.0
  %367 = vmatpush1.msra.mxu0 %v245
  %368 = vmatprep.subr.mxu0 0.0
  %369 = vmatpush1.msra.mxu0 %v246
  %370 = vmatprep.subr.mxu0 0.0
  %371 = vmatpush1.msra.mxu0 %v247
  %372 = vmatprep.subr.mxu0 0.0
  %373 = vmatpush1.msra.mxu0 %v248
  %374 = vmatprep.subr.mxu0 0.0
  %375 = vmatpush1.msra.mxu0 %v249
  %376 = vmatprep.subr.mxu0 0.0
  %377 = vmatpush1.msra.mxu0 %v250
  %378 = vmatprep.subr.mxu0 0.0
  %379 = vmatpush1.msra.mxu0 %v251
  %380 = vmatprep.subr.mxu0 0.0
  %381 = vmatpush1.msra.mxu0 %v252
  %382 = vmatprep.subr.mxu0 0.0
  %383 = vmatpush1.msra.mxu0 %v253
  %384 = vmatprep.subr.mxu0 0.0
  %385 = vmatpush1.msra.mxu0 %v254
  %386 = vmatprep.subr.mxu0 0.0
  %387 = vmatpush1.msra.mxu0 %v336
  %388 = vmatprep.subr.mxu0 0.0
  %389 = vmatpush1.msra.mxu0 0.0
  %390 = vmatprep.subr.mxu0 0.0
  %391 = vmatpush1.msra.mxu0 0.0
  %392 = vmatprep.subr.mxu0 0.0
  %393 = vmatpush1.msra.mxu0 0.0
  %394 = vmatprep.subr.mxu0 0.0
  %395 = vmatpush1.msra.mxu0 0.0
  %396 = vmatprep.subr.mxu0 0.0
  %397 = vmatpush1.msra.mxu0 0.0
  %398 = vmatprep.subr.mxu0 0.0
  %399 = vmatpush1.msra.mxu0 0.0
  %400 = vmatprep.subr.mxu0 0.0
  %401 = vmatpush1.msra.mxu0 0.0
  %402 = vmatprep.mubr.f32.mxu0 %v314
  %403 = vmatmul.mubr.f32.gmra.mrb[0].mxu0 %v256
  %v404 = vpop.f32.mrb[0].mxu0
  %v405 = vadd.f32 %v280, %v404
  %v406 = vpop.f32.mrb[0].mxu0
  %407 = vmatprep.mubr.f32.mxu0 %v317
  %408 = vmatmul.mubr.f32.gmra.mrb[0].mxu0 %v258
  %v409 = vpop.f32.mrb[0].mxu0
  %v410 = vadd.f32 %v285, %v409
  %v411 = vpop.f32.mrb[0].mxu0
  %412 = vmatprep.mubr.f32.mxu0 %v320
  %413 = vmatmul.mubr.f32.gmra.mrb[0].mxu0 %v260
  %v414 = vpop.f32.mrb[0].mxu0
  %v415 = vadd.f32 %v290, %v414
  %v416 = vpop.f32.mrb[0].mxu0
  %417 = vmatprep.mubr.f32.mxu0 %v323
  %418 = vmatmul.mubr.f32.gmra.mrb[0].mxu0 %v262
  %v419 = vpop.f32.mrb[0].mxu0
  %v420 = vadd.f32 %v295, %v419
  %v421 = vpop.f32.mrb[0].mxu0
  %422 = vmatprep.mubr.f32.mxu0 %v326
  %423 = vmatmul.mubr.f32.gmra.mrb[0].mxu0 %v264
  %v424 = vpop.f32.mrb[0].mxu0
  %v425 = vadd.f32 %v300, %v424
  %v426 = vpop.f32.mrb[0].mxu0
  %427 = vmatprep.mubr.f32.mxu0 %v329
  %428 = vmatmul.mubr.f32.gmra.mrb[0].mxu0 %v266
  %v429 = vpop.f32.mrb[0].mxu0
  %v430 = vadd.f32 %v305, %v429
  %v431 = vpop.f32.mrb[0].mxu0
  %432 = vmatprep.mubr.f32.mxu0 %v332
  %433 = vmatmul.mubr.f32.gmra.mrb[0].mxu0 %v268
  %v434 = vpop.f32.mrb[0].mxu0
  %v435 = vadd.f32 %v310, %v434
  %v436 = vpop.f32.mrb[0].mxu0
  %437 = vdwg.mxu0
  %438 = vst [vmem:[#allocation2] sm:$0xff] %v405
  %439 = vst [vmem:[#allocation2 + $0x8] sm:$0xff] %v410
  %440 = vst [vmem:[#allocation2 + $0x10] sm:$0xff] %v415
  %441 = vst [vmem:[#allocation2 + $0x18] sm:$0xff] %v420
  %442 = vst [vmem:[#allocation2 + $0x20] sm:$0xff] %v425
  %443 = vst [vmem:[#allocation2 + $0x28] sm:$0xff] %v430
  %444 = vst [vmem:[#allocation2 + $0x30] sm:$0x1] %v435
  %v445 = vld [vmem:[%s3] sm:$0xff]
  %v446 = vld [vmem:[%s3 + $0x8] sm:$0x3]
  %v447 = vmul.f32 %v445, 0.5
  %v448 = vmul.f32 %v446, 0.5
  %450 = vset.pattern.permute.xlu0 0
  %451 = vperm.xlu0 %450, %v447
  %v452 = vpop.permute.xlu0 %451
  %455 = vset.pattern.permute.xlu0 0
  %456 = vperm.xlu0 %455, %v448
  %v457 = vpop.permute.xlu0 %456
  %s459 = scalar_lea.vmem %s3, 16
  %v460 = vld [vmem:[%s459] sm:$0xff]
  %v461 = vld [vmem:[%s459 + $0x8] sm:$0x3]
  %v462 = vmul.f32 %v460, 0.5
  %v463 = vmul.f32 %v461, 0.5
  %465 = vset.pattern.permute.xlu0 0
  %466 = vperm.xlu0 %465, %v462
  %v467 = vpop.permute.xlu0 %466
  %470 = vset.pattern.permute.xlu0 0
  %471 = vperm.xlu0 %470, %v463
  %v472 = vpop.permute.xlu0 %471
  %s474 = scalar_lea.vmem %s3, 32
  %v475 = vld [vmem:[%s474] sm:$0xff]
  %v476 = vld [vmem:[%s474 + $0x8] sm:$0x3]
  %v477 = vmul.f32 %v475, 0.5
  %v478 = vmul.f32 %v476, 0.5
  %480 = vset.pattern.permute.xlu0 0
  %481 = vperm.xlu0 %480, %v477
  %v482 = vpop.permute.xlu0 %481
  %485 = vset.pattern.permute.xlu0 0
  %486 = vperm.xlu0 %485, %v478
  %v487 = vpop.permute.xlu0 %486
  %s489 = scalar_lea.vmem %s3, 48
  %v490 = vld [vmem:[%s489] sm:$0xff]
  %v491 = vld [vmem:[%s489 + $0x8] sm:$0x3]
  %v492 = vmul.f32 %v490, 0.5
  %v493 = vmul.f32 %v491, 0.5
  %495 = vset.pattern.permute.xlu0 0
  %496 = vperm.xlu0 %495, %v492
  %v497 = vpop.permute.xlu0 %496
  %500 = vset.pattern.permute.xlu0 0
  %501 = vperm.xlu0 %500, %v493
  %v502 = vpop.permute.xlu0 %501
  %s504 = scalar_lea.vmem %s3, 64
  %v505 = vld [vmem:[%s504] sm:$0xff]
  %v506 = vld [vmem:[%s504 + $0x8] sm:$0x3]
  %v507 = vmul.f32 %v505, 0.5
  %v508 = vmul.f32 %v506, 0.5
  %510 = vset.pattern.permute.xlu0 0
  %511 = vperm.xlu0 %510, %v507
  %v512 = vpop.permute.xlu0 %511
  %515 = vset.pattern.permute.xlu0 0
  %516 = vperm.xlu0 %515, %v508
  %v517 = vpop.permute.xlu0 %516
  %s519 = scalar_lea.vmem %s3, 80
  %v520 = vld [vmem:[%s519] sm:$0xff]
  %v521 = vld [vmem:[%s519 + $0x8] sm:$0x3]
  %v522 = vmul.f32 %v520, 0.5
  %v523 = vmul.f32 %v521, 0.5
  %525 = vset.pattern.permute.xlu0 0
  %526 = vperm.xlu0 %525, %v522
  %v527 = vpop.permute.xlu0 %526
  %530 = vset.pattern.permute.xlu0 0
  %531 = vperm.xlu0 %530, %v523
  %v532 = vpop.permute.xlu0 %531
  %v534 = vld [vmem:[%s4] sm:$0xff]
  %v535 = vld [vmem:[%s4 + $0x8] sm:$0x3]
  %s536 = scalar_lea.vmem %s4, 16
  %v537 = vld [vmem:[%s536] sm:$0xff]
  %v538 = vld [vmem:[%s536 + $0x8] sm:$0x3]
  %s539 = scalar_lea.vmem %s4, 32
  %v540 = vld [vmem:[%s539] sm:$0xff]
  %v541 = vld [vmem:[%s539 + $0x8] sm:$0x3]
  %s542 = scalar_lea.vmem %s4, 48
  %v543 = vld [vmem:[%s542] sm:$0xff]
  %v544 = vld [vmem:[%s542 + $0x8] sm:$0x3]
  %s545 = scalar_lea.vmem %s4, 64
  %v546 = vld [vmem:[%s545] sm:$0xff]
  %v547 = vld [vmem:[%s545 + $0x8] sm:$0x3]
  %s548 = scalar_lea.vmem %s4, 80
  %v549 = vld [vmem:[%s548] sm:$0xff]
  %v550 = vld [vmem:[%s548 + $0x8] sm:$0x3]
  %v551 = vld [vmem:[#allocation2] sm:$0x1]
  %v552 = vlaneseq
  %v553 = vshrl.u32 %v552, 7
  %v554 = vsub.s32 0, %v553
  %v555 = vrot.slane %v551, %v554
  %v556 = vmul.f32 %v452, %v555
  %v557 = vmul.f32 %v457, %v555
  %v558 = vmul.f32 %v534, 0.4
  %v559 = vmul.f32 %v535, 0.4
  %v560 = vadd.f32 %v556, %v558
  %v561 = vadd.f32 %v557, %v559
  %v562 = vtanh.pop %v560
  %v563 = vtanh.pop %v561
  %v564 = vmul.f32 %v467, %v562
  %v565 = vmul.f32 %v472, %v563
  %v566 = vmul.f32 %v537, 0.4
  %v567 = vmul.f32 %v538, 0.4
  %v568 = vadd.f32 %v564, %v566
  %v569 = vadd.f32 %v565, %v567
  %v570 = vtanh.pop %v568
  %v571 = vtanh.pop %v569
  %v572 = vmul.f32 %v482, %v570
  %v573 = vmul.f32 %v487, %v571
  %v574 = vmul.f32 %v540, 0.4
  %v575 = vmul.f32 %v541, 0.4
  %v576 = vadd.f32 %v572, %v574
  %v577 = vadd.f32 %v573, %v575
  %v578 = vtanh.pop %v576
  %v579 = vtanh.pop %v577
  %v580 = vmul.f32 %v497, %v578
  %v581 = vmul.f32 %v502, %v579
  %v582 = vmul.f32 %v543, 0.4
  %v583 = vmul.f32 %v544, 0.4
  %v584 = vadd.f32 %v580, %v582
  %v585 = vadd.f32 %v581, %v583
  %v586 = vtanh.pop %v584
  %v587 = vtanh.pop %v585
  %v588 = vmul.f32 %v512, %v586
  %v589 = vmul.f32 %v517, %v587
  %v590 = vmul.f32 %v546, 0.4
  %v591 = vmul.f32 %v547, 0.4
  %v592 = vadd.f32 %v588, %v590
  %v593 = vadd.f32 %v589, %v591
  %v594 = vtanh.pop %v592
  %v595 = vtanh.pop %v593
  %v596 = vmul.f32 %v527, %v594
  %v597 = vmul.f32 %v532, %v595
  %v598 = vmul.f32 %v549, 0.4
  %v599 = vmul.f32 %v550, 0.4
  %v600 = vadd.f32 %v596, %v598
  %v601 = vadd.f32 %v597, %v599
  %v602 = vtanh.pop %v600
  %v603 = vtanh.pop %v601
  %v604 = vld [vmem:[#allocation2 + $0x1] sm:$0x1]
  %v605 = vlaneseq
  %v606 = vshrl.u32 %v605, 7
  %v607 = vsub.s32 0, %v606
  %v608 = vrot.slane %v604, %v607
  %v609 = vmul.f32 %v452, %v608
  %v610 = vmul.f32 %v457, %v608
  %v611 = vmul.f32 %v562, 0.4
  %v612 = vmul.f32 %v563, 0.4
  %v613 = vadd.f32 %v609, %v611
  %v614 = vadd.f32 %v610, %v612
  %v615 = vtanh.pop %v613
  %v616 = vtanh.pop %v614
  %v617 = vmul.f32 %v467, %v615
  %v618 = vmul.f32 %v472, %v616
  %v619 = vmul.f32 %v570, 0.4
  %v620 = vmul.f32 %v571, 0.4
  %v621 = vadd.f32 %v617, %v619
  %v622 = vadd.f32 %v618, %v620
  %v623 = vtanh.pop %v621
  %v624 = vtanh.pop %v622
  %v625 = vmul.f32 %v482, %v623
  %v626 = vmul.f32 %v487, %v624
  %v627 = vmul.f32 %v578, 0.4
  %v628 = vmul.f32 %v579, 0.4
  %v629 = vadd.f32 %v625, %v627
  %v630 = vadd.f32 %v626, %v628
  %v631 = vtanh.pop %v629
  %v632 = vtanh.pop %v630
  %v633 = vmul.f32 %v497, %v631
  %v634 = vmul.f32 %v502, %v632
  %v635 = vmul.f32 %v586, 0.4
  %v636 = vmul.f32 %v587, 0.4
  %v637 = vadd.f32 %v633, %v635
  %v638 = vadd.f32 %v634, %v636
  %v639 = vtanh.pop %v637
  %v640 = vtanh.pop %v638
  %v641 = vmul.f32 %v512, %v639
  %v642 = vmul.f32 %v517, %v640
  %v643 = vmul.f32 %v594, 0.4
  %v644 = vmul.f32 %v595, 0.4
  %v645 = vadd.f32 %v641, %v643
  %v646 = vadd.f32 %v642, %v644
  %v647 = vtanh.pop %v645
  %v648 = vtanh.pop %v646
  %v649 = vmul.f32 %v527, %v647
  %v650 = vmul.f32 %v532, %v648
  %v651 = vmul.f32 %v602, 0.4
  %v652 = vmul.f32 %v603, 0.4
  %v653 = vadd.f32 %v649, %v651
  %v654 = vadd.f32 %v650, %v652
  %v655 = vtanh.pop %v653
  %v656 = vtanh.pop %v654
  %v657 = vld [vmem:[#allocation2 + $0x2] sm:$0x1]
  %v658 = vlaneseq
  %v659 = vshrl.u32 %v658, 7
  %v660 = vsub.s32 0, %v659
  %v661 = vrot.slane %v657, %v660
  %v662 = vmul.f32 %v452, %v661
  %v663 = vmul.f32 %v457, %v661
  %v664 = vmul.f32 %v615, 0.4
  %v665 = vmul.f32 %v616, 0.4
  %v666 = vadd.f32 %v662, %v664
  %v667 = vadd.f32 %v663, %v665
  %v668 = vtanh.pop %v666
  %v669 = vtanh.pop %v667
  %v670 = vmul.f32 %v467, %v668
  %v671 = vmul.f32 %v472, %v669
  %v672 = vmul.f32 %v623, 0.4
  %v673 = vmul.f32 %v624, 0.4
  %v674 = vadd.f32 %v670, %v672
  %v675 = vadd.f32 %v671, %v673
  %v676 = vtanh.pop %v674
  %v677 = vtanh.pop %v675
  %v678 = vmul.f32 %v482, %v676
  %v679 = vmul.f32 %v487, %v677
  %v680 = vmul.f32 %v631, 0.4
  %v681 = vmul.f32 %v632, 0.4
  %v682 = vadd.f32 %v678, %v680
  %v683 = vadd.f32 %v679, %v681
  %v684 = vtanh.pop %v682
  %v685 = vtanh.pop %v683
  %v686 = vmul.f32 %v497, %v684
  %v687 = vmul.f32 %v502, %v685
  %v688 = vmul.f32 %v639, 0.4
  %v689 = vmul.f32 %v640, 0.4
  %v690 = vadd.f32 %v686, %v688
  %v691 = vadd.f32 %v687, %v689
  %v692 = vtanh.pop %v690
  %v693 = vtanh.pop %v691
  %v694 = vmul.f32 %v512, %v692
  %v695 = vmul.f32 %v517, %v693
  %v696 = vmul.f32 %v647, 0.4
  %v697 = vmul.f32 %v648, 0.4
  %v698 = vadd.f32 %v694, %v696
  %v699 = vadd.f32 %v695, %v697
  %v700 = vtanh.pop %v698
  %v701 = vtanh.pop %v699
  %v702 = vmul.f32 %v527, %v700
  %v703 = vmul.f32 %v532, %v701
  %v704 = vmul.f32 %v655, 0.4
  %v705 = vmul.f32 %v656, 0.4
  %v706 = vadd.f32 %v702, %v704
  %v707 = vadd.f32 %v703, %v705
  %v708 = vtanh.pop %v706
  %v709 = vtanh.pop %v707
  %v710 = vld [vmem:[#allocation2 + $0x3] sm:$0x1]
  %v711 = vlaneseq
  %v712 = vshrl.u32 %v711, 7
  %v713 = vsub.s32 0, %v712
  %v714 = vrot.slane %v710, %v713
  %v715 = vmul.f32 %v452, %v714
  %v716 = vmul.f32 %v457, %v714
  %v717 = vmul.f32 %v668, 0.4
  %v718 = vmul.f32 %v669, 0.4
  %v719 = vadd.f32 %v715, %v717
  %v720 = vadd.f32 %v716, %v718
  %v721 = vtanh.pop %v719
  %v722 = vtanh.pop %v720
  %v723 = vmul.f32 %v467, %v721
  %v724 = vmul.f32 %v472, %v722
  %v725 = vmul.f32 %v676, 0.4
  %v726 = vmul.f32 %v677, 0.4
  %v727 = vadd.f32 %v723, %v725
  %v728 = vadd.f32 %v724, %v726
  %v729 = vtanh.pop %v727
  %v730 = vtanh.pop %v728
  %v731 = vmul.f32 %v482, %v729
  %v732 = vmul.f32 %v487, %v730
  %v733 = vmul.f32 %v684, 0.4
  %v734 = vmul.f32 %v685, 0.4
  %v735 = vadd.f32 %v731, %v733
  %v736 = vadd.f32 %v732, %v734
  %v737 = vtanh.pop %v735
  %v738 = vtanh.pop %v736
  %v739 = vmul.f32 %v497, %v737
  %v740 = vmul.f32 %v502, %v738
  %v741 = vmul.f32 %v692, 0.4
  %v742 = vmul.f32 %v693, 0.4
  %v743 = vadd.f32 %v739, %v741
  %v744 = vadd.f32 %v740, %v742
  %v745 = vtanh.pop %v743
  %v746 = vtanh.pop %v744
  %v747 = vmul.f32 %v512, %v745
  %v748 = vmul.f32 %v517, %v746
  %v749 = vmul.f32 %v700, 0.4
  %v750 = vmul.f32 %v701, 0.4
  %v751 = vadd.f32 %v747, %v749
  %v752 = vadd.f32 %v748, %v750
  %v753 = vtanh.pop %v751
  %v754 = vtanh.pop %v752
  %v755 = vmul.f32 %v527, %v753
  %v756 = vmul.f32 %v532, %v754
  %v757 = vmul.f32 %v708, 0.4
  %v758 = vmul.f32 %v709, 0.4
  %v759 = vadd.f32 %v755, %v757
  %v760 = vadd.f32 %v756, %v758
  %v761 = vtanh.pop %v759
  %v762 = vtanh.pop %v760
  %v763 = vld [vmem:[#allocation2 + $0x4] sm:$0x1]
  %v764 = vlaneseq
  %v765 = vshrl.u32 %v764, 7
  %v766 = vsub.s32 0, %v765
  %v767 = vrot.slane %v763, %v766
  %v768 = vmul.f32 %v452, %v767
  %v769 = vmul.f32 %v457, %v767
  %v770 = vmul.f32 %v721, 0.4
  %v771 = vmul.f32 %v722, 0.4
  %v772 = vadd.f32 %v768, %v770
  %v773 = vadd.f32 %v769, %v771
  %v774 = vtanh.pop %v772
  %v775 = vtanh.pop %v773
  %v776 = vmul.f32 %v467, %v774
  %v777 = vmul.f32 %v472, %v775
  %v778 = vmul.f32 %v729, 0.4
  %v779 = vmul.f32 %v730, 0.4
  %v780 = vadd.f32 %v776, %v778
  %v781 = vadd.f32 %v777, %v779
  %v782 = vtanh.pop %v780
  %v783 = vtanh.pop %v781
  %v784 = vmul.f32 %v482, %v782
  %v785 = vmul.f32 %v487, %v783
  %v786 = vmul.f32 %v737, 0.4
  %v787 = vmul.f32 %v738, 0.4
  %v788 = vadd.f32 %v784, %v786
  %v789 = vadd.f32 %v785, %v787
  %v790 = vtanh.pop %v788
  %v791 = vtanh.pop %v789
  %v792 = vmul.f32 %v497, %v790
  %v793 = vmul.f32 %v502, %v791
  %v794 = vmul.f32 %v745, 0.4
  %v795 = vmul.f32 %v746, 0.4
  %v796 = vadd.f32 %v792, %v794
  %v797 = vadd.f32 %v793, %v795
  %v798 = vtanh.pop %v796
  %v799 = vtanh.pop %v797
  %v800 = vmul.f32 %v512, %v798
  %v801 = vmul.f32 %v517, %v799
  %v802 = vmul.f32 %v753, 0.4
  %v803 = vmul.f32 %v754, 0.4
  %v804 = vadd.f32 %v800, %v802
  %v805 = vadd.f32 %v801, %v803
  %v806 = vtanh.pop %v804
  %v807 = vtanh.pop %v805
  %v808 = vmul.f32 %v527, %v806
  %v809 = vmul.f32 %v532, %v807
  %v810 = vmul.f32 %v761, 0.4
  %v811 = vmul.f32 %v762, 0.4
  %v812 = vadd.f32 %v808, %v810
  %v813 = vadd.f32 %v809, %v811
  %v814 = vtanh.pop %v812
  %v815 = vtanh.pop %v813
  %v816 = vld [vmem:[#allocation2 + $0x5] sm:$0x1]
  %v817 = vlaneseq
  %v818 = vshrl.u32 %v817, 7
  %v819 = vsub.s32 0, %v818
  %v820 = vrot.slane %v816, %v819
  %v821 = vmul.f32 %v452, %v820
  %v822 = vmul.f32 %v457, %v820
  %v823 = vmul.f32 %v774, 0.4
  %v824 = vmul.f32 %v775, 0.4
  %v825 = vadd.f32 %v821, %v823
  %v826 = vadd.f32 %v822, %v824
  %v827 = vtanh.pop %v825
  %v828 = vtanh.pop %v826
  %v829 = vmul.f32 %v467, %v827
  %v830 = vmul.f32 %v472, %v828
  %v831 = vmul.f32 %v782, 0.4
  %v832 = vmul.f32 %v783, 0.4
  %v833 = vadd.f32 %v829, %v831
  %v834 = vadd.f32 %v830, %v832
  %v835 = vtanh.pop %v833
  %v836 = vtanh.pop %v834
  %v837 = vmul.f32 %v482, %v835
  %v838 = vmul.f32 %v487, %v836
  %v839 = vmul.f32 %v790, 0.4
  %v840 = vmul.f32 %v791, 0.4
  %v841 = vadd.f32 %v837, %v839
  %v842 = vadd.f32 %v838, %v840
  %v843 = vtanh.pop %v841
  %v844 = vtanh.pop %v842
  %v845 = vmul.f32 %v497, %v843
  %v846 = vmul.f32 %v502, %v844
  %v847 = vmul.f32 %v798, 0.4
  %v848 = vmul.f32 %v799, 0.4
  %v849 = vadd.f32 %v845, %v847
  %v850 = vadd.f32 %v846, %v848
  %v851 = vtanh.pop %v849
  %v852 = vtanh.pop %v850
  %v853 = vmul.f32 %v512, %v851
  %v854 = vmul.f32 %v517, %v852
  %v855 = vmul.f32 %v806, 0.4
  %v856 = vmul.f32 %v807, 0.4
  %v857 = vadd.f32 %v853, %v855
  %v858 = vadd.f32 %v854, %v856
  %v859 = vtanh.pop %v857
  %v860 = vtanh.pop %v858
  %v861 = vmul.f32 %v527, %v859
  %v862 = vmul.f32 %v532, %v860
  %v863 = vmul.f32 %v814, 0.4
  %v864 = vmul.f32 %v815, 0.4
  %v865 = vadd.f32 %v861, %v863
  %v866 = vadd.f32 %v862, %v864
  %v867 = vtanh.pop %v865
  %v868 = vtanh.pop %v866
  %v869 = vld [vmem:[#allocation2 + $0x6] sm:$0x1]
  %v870 = vlaneseq
  %v871 = vshrl.u32 %v870, 7
  %v872 = vsub.s32 0, %v871
  %v873 = vrot.slane %v869, %v872
  %v874 = vmul.f32 %v452, %v873
  %v875 = vmul.f32 %v457, %v873
  %v876 = vmul.f32 %v827, 0.4
  %v877 = vmul.f32 %v828, 0.4
  %v878 = vadd.f32 %v874, %v876
  %v879 = vadd.f32 %v875, %v877
  %v880 = vtanh.pop %v878
  %v881 = vtanh.pop %v879
  %v882 = vmul.f32 %v467, %v880
  %v883 = vmul.f32 %v472, %v881
  %v884 = vmul.f32 %v835, 0.4
  %v885 = vmul.f32 %v836, 0.4
  %v886 = vadd.f32 %v882, %v884
  %v887 = vadd.f32 %v883, %v885
  %v888 = vtanh.pop %v886
  %v889 = vtanh.pop %v887
  %v890 = vmul.f32 %v482, %v888
  %v891 = vmul.f32 %v487, %v889
  %v892 = vmul.f32 %v843, 0.4
  %v893 = vmul.f32 %v844, 0.4
  %v894 = vadd.f32 %v890, %v892
  %v895 = vadd.f32 %v891, %v893
  %v896 = vtanh.pop %v894
  %v897 = vtanh.pop %v895
  %v898 = vmul.f32 %v497, %v896
  %v899 = vmul.f32 %v502, %v897
  %v900 = vmul.f32 %v851, 0.4
  %v901 = vmul.f32 %v852, 0.4
  %v902 = vadd.f32 %v898, %v900
  %v903 = vadd.f32 %v899, %v901
  %v904 = vtanh.pop %v902
  %v905 = vtanh.pop %v903
  %v906 = vmul.f32 %v512, %v904
  %v907 = vmul.f32 %v517, %v905
  %v908 = vmul.f32 %v859, 0.4
  %v909 = vmul.f32 %v860, 0.4
  %v910 = vadd.f32 %v906, %v908
  %v911 = vadd.f32 %v907, %v909
  %v912 = vtanh.pop %v910
  %v913 = vtanh.pop %v911
  %v914 = vmul.f32 %v527, %v912
  %v915 = vmul.f32 %v532, %v913
  %v916 = vmul.f32 %v867, 0.4
  %v917 = vmul.f32 %v868, 0.4
  %v918 = vadd.f32 %v914, %v916
  %v919 = vadd.f32 %v915, %v917
  %v920 = vtanh.pop %v918
  %v921 = vtanh.pop %v919
  %v922 = vld [vmem:[#allocation2 + $0x7] sm:$0x1]
  %v923 = vlaneseq
  %v924 = vshrl.u32 %v923, 7
  %v925 = vsub.s32 0, %v924
  %v926 = vrot.slane %v922, %v925
  %v927 = vmul.f32 %v452, %v926
  %v928 = vmul.f32 %v457, %v926
  %v929 = vmul.f32 %v880, 0.4
  %v930 = vmul.f32 %v881, 0.4
  %v931 = vadd.f32 %v927, %v929
  %v932 = vadd.f32 %v928, %v930
  %v933 = vtanh.pop %v931
  %v934 = vtanh.pop %v932
  %v935 = vmul.f32 %v467, %v933
  %v936 = vmul.f32 %v472, %v934
  %v937 = vmul.f32 %v888, 0.4
  %v938 = vmul.f32 %v889, 0.4
  %v939 = vadd.f32 %v935, %v937
  %v940 = vadd.f32 %v936, %v938
  %v941 = vtanh.pop %v939
  %v942 = vtanh.pop %v940
  %v943 = vmul.f32 %v482, %v941
  %v944 = vmul.f32 %v487, %v942
  %v945 = vmul.f32 %v896, 0.4
  %v946 = vmul.f32 %v897, 0.4
  %v947 = vadd.f32 %v943, %v945
  %v948 = vadd.f32 %v944, %v946
  %v949 = vtanh.pop %v947
  %v950 = vtanh.pop %v948
  %v951 = vmul.f32 %v497, %v949
  %v952 = vmul.f32 %v502, %v950
  %v953 = vmul.f32 %v904, 0.4
  %v954 = vmul.f32 %v905, 0.4
  %v955 = vadd.f32 %v951, %v953
  %v956 = vadd.f32 %v952, %v954
  %v957 = vtanh.pop %v955
  %v958 = vtanh.pop %v956
  %v959 = vmul.f32 %v512, %v957
  %v960 = vmul.f32 %v517, %v958
  %v961 = vmul.f32 %v912, 0.4
  %v962 = vmul.f32 %v913, 0.4
  %v963 = vadd.f32 %v959, %v961
  %v964 = vadd.f32 %v960, %v962
  %v965 = vtanh.pop %v963
  %v966 = vtanh.pop %v964
  %v967 = vmul.f32 %v527, %v965
  %v968 = vmul.f32 %v532, %v966
  %v969 = vmul.f32 %v920, 0.4
  %v970 = vmul.f32 %v921, 0.4
  %v971 = vadd.f32 %v967, %v969
  %v972 = vadd.f32 %v968, %v970
  %v973 = vtanh.pop %v971
  %v974 = vtanh.pop %v972
  %v975 = vld [vmem:[#allocation2 + $0x8] sm:$0x1]
  %v976 = vlaneseq
  %v977 = vshrl.u32 %v976, 7
  %v978 = vsub.s32 0, %v977
  %v979 = vrot.slane %v975, %v978
  %v980 = vmul.f32 %v452, %v979
  %v981 = vmul.f32 %v457, %v979
  %v982 = vmul.f32 %v933, 0.4
  %v983 = vmul.f32 %v934, 0.4
  %v984 = vadd.f32 %v980, %v982
  %v985 = vadd.f32 %v981, %v983
  %v986 = vtanh.pop %v984
  %v987 = vtanh.pop %v985
  %v988 = vmul.f32 %v467, %v986
  %v989 = vmul.f32 %v472, %v987
  %v990 = vmul.f32 %v941, 0.4
  %v991 = vmul.f32 %v942, 0.4
  %v992 = vadd.f32 %v988, %v990
  %v993 = vadd.f32 %v989, %v991
  %v994 = vtanh.pop %v992
  %v995 = vtanh.pop %v993
  %v996 = vmul.f32 %v482, %v994
  %v997 = vmul.f32 %v487, %v995
  %v998 = vmul.f32 %v949, 0.4
  %v999 = vmul.f32 %v950, 0.4
  %v1000 = vadd.f32 %v996, %v998
  %v1001 = vadd.f32 %v997, %v999
  %v1002 = vtanh.pop %v1000
  %v1003 = vtanh.pop %v1001
  %v1004 = vmul.f32 %v497, %v1002
  %v1005 = vmul.f32 %v502, %v1003
  %v1006 = vmul.f32 %v957, 0.4
  %v1007 = vmul.f32 %v958, 0.4
  %v1008 = vadd.f32 %v1004, %v1006
  %v1009 = vadd.f32 %v1005, %v1007
  %v1010 = vtanh.pop %v1008
  %v1011 = vtanh.pop %v1009
  %v1012 = vmul.f32 %v512, %v1010
  %v1013 = vmul.f32 %v517, %v1011
  %v1014 = vmul.f32 %v965, 0.4
  %v1015 = vmul.f32 %v966, 0.4
  %v1016 = vadd.f32 %v1012, %v1014
  %v1017 = vadd.f32 %v1013, %v1015
  %v1018 = vtanh.pop %v1016
  %v1019 = vtanh.pop %v1017
  %v1020 = vmul.f32 %v527, %v1018
  %v1021 = vmul.f32 %v532, %v1019
  %v1022 = vmul.f32 %v973, 0.4
  %v1023 = vmul.f32 %v974, 0.4
  %v1024 = vadd.f32 %v1020, %v1022
  %v1025 = vadd.f32 %v1021, %v1023
  %v1026 = vtanh.pop %v1024
  %v1027 = vtanh.pop %v1025
  %v1028 = vld [vmem:[#allocation2 + $0x9] sm:$0x1]
  %v1029 = vlaneseq
  %v1030 = vshrl.u32 %v1029, 7
  %v1031 = vsub.s32 0, %v1030
  %v1032 = vrot.slane %v1028, %v1031
  %v1033 = vmul.f32 %v452, %v1032
  %v1034 = vmul.f32 %v457, %v1032
  %v1035 = vmul.f32 %v986, 0.4
  %v1036 = vmul.f32 %v987, 0.4
  %v1037 = vadd.f32 %v1033, %v1035
  %v1038 = vadd.f32 %v1034, %v1036
  %v1039 = vtanh.pop %v1037
  %v1040 = vtanh.pop %v1038
  %v1041 = vmul.f32 %v467, %v1039
  %v1042 = vmul.f32 %v472, %v1040
  %v1043 = vmul.f32 %v994, 0.4
  %v1044 = vmul.f32 %v995, 0.4
  %v1045 = vadd.f32 %v1041, %v1043
  %v1046 = vadd.f32 %v1042, %v1044
  %v1047 = vtanh.pop %v1045
  %v1048 = vtanh.pop %v1046
  %v1049 = vmul.f32 %v482, %v1047
  %v1050 = vmul.f32 %v487, %v1048
  %v1051 = vmul.f32 %v1002, 0.4
  %v1052 = vmul.f32 %v1003, 0.4
  %v1053 = vadd.f32 %v1049, %v1051
  %v1054 = vadd.f32 %v1050, %v1052
  %v1055 = vtanh.pop %v1053
  %v1056 = vtanh.pop %v1054
  %v1057 = vmul.f32 %v497, %v1055
  %v1058 = vmul.f32 %v502, %v1056
  %v1059 = vmul.f32 %v1010, 0.4
  %v1060 = vmul.f32 %v1011, 0.4
  %v1061 = vadd.f32 %v1057, %v1059
  %v1062 = vadd.f32 %v1058, %v1060
  %v1063 = vtanh.pop %v1061
  %v1064 = vtanh.pop %v1062
  %v1065 = vmul.f32 %v512, %v1063
  %v1066 = vmul.f32 %v517, %v1064
  %v1067 = vmul.f32 %v1018, 0.4
  %v1068 = vmul.f32 %v1019, 0.4
  %v1069 = vadd.f32 %v1065, %v1067
  %v1070 = vadd.f32 %v1066, %v1068
  %v1071 = vtanh.pop %v1069
  %v1072 = vtanh.pop %v1070
  %v1073 = vmul.f32 %v527, %v1071
  %v1074 = vmul.f32 %v532, %v1072
  %v1075 = vmul.f32 %v1026, 0.4
  %v1076 = vmul.f32 %v1027, 0.4
  %v1077 = vadd.f32 %v1073, %v1075
  %v1078 = vadd.f32 %v1074, %v1076
  %v1079 = vtanh.pop %v1077
  %v1080 = vtanh.pop %v1078
  %v1081 = vld [vmem:[#allocation2 + $0xa] sm:$0x1]
  %v1082 = vlaneseq
  %v1083 = vshrl.u32 %v1082, 7
  %v1084 = vsub.s32 0, %v1083
  %v1085 = vrot.slane %v1081, %v1084
  %v1086 = vmul.f32 %v452, %v1085
  %v1087 = vmul.f32 %v457, %v1085
  %v1088 = vmul.f32 %v1039, 0.4
  %v1089 = vmul.f32 %v1040, 0.4
  %v1090 = vadd.f32 %v1086, %v1088
  %v1091 = vadd.f32 %v1087, %v1089
  %v1092 = vtanh.pop %v1090
  %v1093 = vtanh.pop %v1091
  %v1094 = vmul.f32 %v467, %v1092
  %v1095 = vmul.f32 %v472, %v1093
  %v1096 = vmul.f32 %v1047, 0.4
  %v1097 = vmul.f32 %v1048, 0.4
  %v1098 = vadd.f32 %v1094, %v1096
  %v1099 = vadd.f32 %v1095, %v1097
  %v1100 = vtanh.pop %v1098
  %v1101 = vtanh.pop %v1099
  %v1102 = vmul.f32 %v482, %v1100
  %v1103 = vmul.f32 %v487, %v1101
  %v1104 = vmul.f32 %v1055, 0.4
  %v1105 = vmul.f32 %v1056, 0.4
  %v1106 = vadd.f32 %v1102, %v1104
  %v1107 = vadd.f32 %v1103, %v1105
  %v1108 = vtanh.pop %v1106
  %v1109 = vtanh.pop %v1107
  %v1110 = vmul.f32 %v497, %v1108
  %v1111 = vmul.f32 %v502, %v1109
  %v1112 = vmul.f32 %v1063, 0.4
  %v1113 = vmul.f32 %v1064, 0.4
  %v1114 = vadd.f32 %v1110, %v1112
  %v1115 = vadd.f32 %v1111, %v1113
  %v1116 = vtanh.pop %v1114
  %v1117 = vtanh.pop %v1115
  %v1118 = vmul.f32 %v512, %v1116
  %v1119 = vmul.f32 %v517, %v1117
  %v1120 = vmul.f32 %v1071, 0.4
  %v1121 = vmul.f32 %v1072, 0.4
  %v1122 = vadd.f32 %v1118, %v1120
  %v1123 = vadd.f32 %v1119, %v1121
  %v1124 = vtanh.pop %v1122
  %v1125 = vtanh.pop %v1123
  %v1126 = vmul.f32 %v527, %v1124
  %v1127 = vmul.f32 %v532, %v1125
  %v1128 = vmul.f32 %v1079, 0.4
  %v1129 = vmul.f32 %v1080, 0.4
  %v1130 = vadd.f32 %v1126, %v1128
  %v1131 = vadd.f32 %v1127, %v1129
  %v1132 = vtanh.pop %v1130
  %v1133 = vtanh.pop %v1131
  %v1134 = vld [vmem:[#allocation2 + $0xb] sm:$0x1]
  %v1135 = vlaneseq
  %v1136 = vshrl.u32 %v1135, 7
  %v1137 = vsub.s32 0, %v1136
  %v1138 = vrot.slane %v1134, %v1137
  %v1139 = vmul.f32 %v452, %v1138
  %v1140 = vmul.f32 %v457, %v1138
  %v1141 = vmul.f32 %v1092, 0.4
  %v1142 = vmul.f32 %v1093, 0.4
  %v1143 = vadd.f32 %v1139, %v1141
  %v1144 = vadd.f32 %v1140, %v1142
  %v1145 = vtanh.pop %v1143
  %v1146 = vtanh.pop %v1144
  %v1147 = vmul.f32 %v467, %v1145
  %v1148 = vmul.f32 %v472, %v1146
  %v1149 = vmul.f32 %v1100, 0.4
  %v1150 = vmul.f32 %v1101, 0.4
  %v1151 = vadd.f32 %v1147, %v1149
  %v1152 = vadd.f32 %v1148, %v1150
  %v1153 = vtanh.pop %v1151
  %v1154 = vtanh.pop %v1152
  %v1155 = vmul.f32 %v482, %v1153
  %v1156 = vmul.f32 %v487, %v1154
  %v1157 = vmul.f32 %v1108, 0.4
  %v1158 = vmul.f32 %v1109, 0.4
  %v1159 = vadd.f32 %v1155, %v1157
  %v1160 = vadd.f32 %v1156, %v1158
  %v1161 = vtanh.pop %v1159
  %v1162 = vtanh.pop %v1160
  %v1163 = vmul.f32 %v497, %v1161
  %v1164 = vmul.f32 %v502, %v1162
  %v1165 = vmul.f32 %v1116, 0.4
  %v1166 = vmul.f32 %v1117, 0.4
  %v1167 = vadd.f32 %v1163, %v1165
  %v1168 = vadd.f32 %v1164, %v1166
  %v1169 = vtanh.pop %v1167
  %v1170 = vtanh.pop %v1168
  %v1171 = vmul.f32 %v512, %v1169
  %v1172 = vmul.f32 %v517, %v1170
  %v1173 = vmul.f32 %v1124, 0.4
  %v1174 = vmul.f32 %v1125, 0.4
  %v1175 = vadd.f32 %v1171, %v1173
  %v1176 = vadd.f32 %v1172, %v1174
  %v1177 = vtanh.pop %v1175
  %v1178 = vtanh.pop %v1176
  %v1179 = vmul.f32 %v527, %v1177
  %v1180 = vmul.f32 %v532, %v1178
  %v1181 = vmul.f32 %v1132, 0.4
  %v1182 = vmul.f32 %v1133, 0.4
  %v1183 = vadd.f32 %v1179, %v1181
  %v1184 = vadd.f32 %v1180, %v1182
  %v1185 = vtanh.pop %v1183
  %v1186 = vtanh.pop %v1184
  %v1187 = vld [vmem:[#allocation2 + $0xc] sm:$0x1]
  %v1188 = vlaneseq
  %v1189 = vshrl.u32 %v1188, 7
  %v1190 = vsub.s32 0, %v1189
  %v1191 = vrot.slane %v1187, %v1190
  %v1192 = vmul.f32 %v452, %v1191
  %v1193 = vmul.f32 %v457, %v1191
  %v1194 = vmul.f32 %v1145, 0.4
  %v1195 = vmul.f32 %v1146, 0.4
  %v1196 = vadd.f32 %v1192, %v1194
  %v1197 = vadd.f32 %v1193, %v1195
  %v1198 = vtanh.pop %v1196
  %v1199 = vtanh.pop %v1197
  %v1200 = vmul.f32 %v467, %v1198
  %v1201 = vmul.f32 %v472, %v1199
  %v1202 = vmul.f32 %v1153, 0.4
  %v1203 = vmul.f32 %v1154, 0.4
  %v1204 = vadd.f32 %v1200, %v1202
  %v1205 = vadd.f32 %v1201, %v1203
  %v1206 = vtanh.pop %v1204
  %v1207 = vtanh.pop %v1205
  %v1208 = vmul.f32 %v482, %v1206
  %v1209 = vmul.f32 %v487, %v1207
  %v1210 = vmul.f32 %v1161, 0.4
  %v1211 = vmul.f32 %v1162, 0.4
  %v1212 = vadd.f32 %v1208, %v1210
  %v1213 = vadd.f32 %v1209, %v1211
  %v1214 = vtanh.pop %v1212
  %v1215 = vtanh.pop %v1213
  %v1216 = vmul.f32 %v497, %v1214
  %v1217 = vmul.f32 %v502, %v1215
  %v1218 = vmul.f32 %v1169, 0.4
  %v1219 = vmul.f32 %v1170, 0.4
  %v1220 = vadd.f32 %v1216, %v1218
  %v1221 = vadd.f32 %v1217, %v1219
  %v1222 = vtanh.pop %v1220
  %v1223 = vtanh.pop %v1221
  %v1224 = vmul.f32 %v512, %v1222
  %v1225 = vmul.f32 %v517, %v1223
  %v1226 = vmul.f32 %v1177, 0.4
  %v1227 = vmul.f32 %v1178, 0.4
  %v1228 = vadd.f32 %v1224, %v1226
  %v1229 = vadd.f32 %v1225, %v1227
  %v1230 = vtanh.pop %v1228
  %v1231 = vtanh.pop %v1229
  %v1232 = vmul.f32 %v527, %v1230
  %v1233 = vmul.f32 %v532, %v1231
  %v1234 = vmul.f32 %v1185, 0.4
  %v1235 = vmul.f32 %v1186, 0.4
  %v1236 = vadd.f32 %v1232, %v1234
  %v1237 = vadd.f32 %v1233, %v1235
  %v1238 = vtanh.pop %v1236
  %v1239 = vtanh.pop %v1237
  %v1240 = vld [vmem:[#allocation2 + $0xd] sm:$0x1]
  %v1241 = vlaneseq
  %v1242 = vshrl.u32 %v1241, 7
  %v1243 = vsub.s32 0, %v1242
  %v1244 = vrot.slane %v1240, %v1243
  %v1245 = vmul.f32 %v452, %v1244
  %v1246 = vmul.f32 %v457, %v1244
  %v1247 = vmul.f32 %v1198, 0.4
  %v1248 = vmul.f32 %v1199, 0.4
  %v1249 = vadd.f32 %v1245, %v1247
  %v1250 = vadd.f32 %v1246, %v1248
  %v1251 = vtanh.pop %v1249
  %v1252 = vtanh.pop %v1250
  %v1253 = vmul.f32 %v467, %v1251
  %v1254 = vmul.f32 %v472, %v1252
  %v1255 = vmul.f32 %v1206, 0.4
  %v1256 = vmul.f32 %v1207, 0.4
  %v1257 = vadd.f32 %v1253, %v1255
  %v1258 = vadd.f32 %v1254, %v1256
  %v1259 = vtanh.pop %v1257
  %v1260 = vtanh.pop %v1258
  %v1261 = vmul.f32 %v482, %v1259
  %v1262 = vmul.f32 %v487, %v1260
  %v1263 = vmul.f32 %v1214, 0.4
  %v1264 = vmul.f32 %v1215, 0.4
  %v1265 = vadd.f32 %v1261, %v1263
  %v1266 = vadd.f32 %v1262, %v1264
  %v1267 = vtanh.pop %v1265
  %v1268 = vtanh.pop %v1266
  %v1269 = vmul.f32 %v497, %v1267
  %v1270 = vmul.f32 %v502, %v1268
  %v1271 = vmul.f32 %v1222, 0.4
  %v1272 = vmul.f32 %v1223, 0.4
  %v1273 = vadd.f32 %v1269, %v1271
  %v1274 = vadd.f32 %v1270, %v1272
  %v1275 = vtanh.pop %v1273
  %v1276 = vtanh.pop %v1274
  %v1277 = vmul.f32 %v512, %v1275
  %v1278 = vmul.f32 %v517, %v1276
  %v1279 = vmul.f32 %v1230, 0.4
  %v1280 = vmul.f32 %v1231, 0.4
  %v1281 = vadd.f32 %v1277, %v1279
  %v1282 = vadd.f32 %v1278, %v1280
  %v1283 = vtanh.pop %v1281
  %v1284 = vtanh.pop %v1282
  %v1285 = vmul.f32 %v527, %v1283
  %v1286 = vmul.f32 %v532, %v1284
  %v1287 = vmul.f32 %v1238, 0.4
  %v1288 = vmul.f32 %v1239, 0.4
  %v1289 = vadd.f32 %v1285, %v1287
  %v1290 = vadd.f32 %v1286, %v1288
  %v1291 = vtanh.pop %v1289
  %v1292 = vtanh.pop %v1290
  %v1293 = vld [vmem:[#allocation2 + $0xe] sm:$0x1]
  %v1294 = vlaneseq
  %v1295 = vshrl.u32 %v1294, 7
  %v1296 = vsub.s32 0, %v1295
  %v1297 = vrot.slane %v1293, %v1296
  %v1298 = vmul.f32 %v452, %v1297
  %v1299 = vmul.f32 %v457, %v1297
  %v1300 = vmul.f32 %v1251, 0.4
  %v1301 = vmul.f32 %v1252, 0.4
  %v1302 = vadd.f32 %v1298, %v1300
  %v1303 = vadd.f32 %v1299, %v1301
  %v1304 = vtanh.pop %v1302
  %v1305 = vtanh.pop %v1303
  %v1306 = vmul.f32 %v467, %v1304
  %v1307 = vmul.f32 %v472, %v1305
  %v1308 = vmul.f32 %v1259, 0.4
  %v1309 = vmul.f32 %v1260, 0.4
  %v1310 = vadd.f32 %v1306, %v1308
  %v1311 = vadd.f32 %v1307, %v1309
  %v1312 = vtanh.pop %v1310
  %v1313 = vtanh.pop %v1311
  %v1314 = vmul.f32 %v482, %v1312
  %v1315 = vmul.f32 %v487, %v1313
  %v1316 = vmul.f32 %v1267, 0.4
  %v1317 = vmul.f32 %v1268, 0.4
  %v1318 = vadd.f32 %v1314, %v1316
  %v1319 = vadd.f32 %v1315, %v1317
  %v1320 = vtanh.pop %v1318
  %v1321 = vtanh.pop %v1319
  %v1322 = vmul.f32 %v497, %v1320
  %v1323 = vmul.f32 %v502, %v1321
  %v1324 = vmul.f32 %v1275, 0.4
  %v1325 = vmul.f32 %v1276, 0.4
  %v1326 = vadd.f32 %v1322, %v1324
  %v1327 = vadd.f32 %v1323, %v1325
  %v1328 = vtanh.pop %v1326
  %v1329 = vtanh.pop %v1327
  %v1330 = vmul.f32 %v512, %v1328
  %v1331 = vmul.f32 %v517, %v1329
  %v1332 = vmul.f32 %v1283, 0.4
  %v1333 = vmul.f32 %v1284, 0.4
  %v1334 = vadd.f32 %v1330, %v1332
  %v1335 = vadd.f32 %v1331, %v1333
  %v1336 = vtanh.pop %v1334
  %v1337 = vtanh.pop %v1335
  %v1338 = vmul.f32 %v527, %v1336
  %v1339 = vmul.f32 %v532, %v1337
  %v1340 = vmul.f32 %v1291, 0.4
  %v1341 = vmul.f32 %v1292, 0.4
  %v1342 = vadd.f32 %v1338, %v1340
  %v1343 = vadd.f32 %v1339, %v1341
  %v1344 = vtanh.pop %v1342
  %v1345 = vtanh.pop %v1343
  %v1346 = vld [vmem:[#allocation2 + $0xf] sm:$0x1]
  %v1347 = vlaneseq
  %v1348 = vshrl.u32 %v1347, 7
  %v1349 = vsub.s32 0, %v1348
  %v1350 = vrot.slane %v1346, %v1349
  %v1351 = vmul.f32 %v452, %v1350
  %v1352 = vmul.f32 %v457, %v1350
  %v1353 = vmul.f32 %v1304, 0.4
  %v1354 = vmul.f32 %v1305, 0.4
  %v1355 = vadd.f32 %v1351, %v1353
  %v1356 = vadd.f32 %v1352, %v1354
  %v1357 = vtanh.pop %v1355
  %v1358 = vtanh.pop %v1356
  %v1359 = vmul.f32 %v467, %v1357
  %v1360 = vmul.f32 %v472, %v1358
  %v1361 = vmul.f32 %v1312, 0.4
  %v1362 = vmul.f32 %v1313, 0.4
  %v1363 = vadd.f32 %v1359, %v1361
  %v1364 = vadd.f32 %v1360, %v1362
  %v1365 = vtanh.pop %v1363
  %v1366 = vtanh.pop %v1364
  %v1367 = vmul.f32 %v482, %v1365
  %v1368 = vmul.f32 %v487, %v1366
  %v1369 = vmul.f32 %v1320, 0.4
  %v1370 = vmul.f32 %v1321, 0.4
  %v1371 = vadd.f32 %v1367, %v1369
  %v1372 = vadd.f32 %v1368, %v1370
  %v1373 = vtanh.pop %v1371
  %v1374 = vtanh.pop %v1372
  %v1375 = vmul.f32 %v497, %v1373
  %v1376 = vmul.f32 %v502, %v1374
  %v1377 = vmul.f32 %v1328, 0.4
  %v1378 = vmul.f32 %v1329, 0.4
  %v1379 = vadd.f32 %v1375, %v1377
  %v1380 = vadd.f32 %v1376, %v1378
  %v1381 = vtanh.pop %v1379
  %v1382 = vtanh.pop %v1380
  %v1383 = vmul.f32 %v512, %v1381
  %v1384 = vmul.f32 %v517, %v1382
  %v1385 = vmul.f32 %v1336, 0.4
  %v1386 = vmul.f32 %v1337, 0.4
  %v1387 = vadd.f32 %v1383, %v1385
  %v1388 = vadd.f32 %v1384, %v1386
  %v1389 = vtanh.pop %v1387
  %v1390 = vtanh.pop %v1388
  %v1391 = vmul.f32 %v527, %v1389
  %v1392 = vmul.f32 %v532, %v1390
  %v1393 = vmul.f32 %v1344, 0.4
  %v1394 = vmul.f32 %v1345, 0.4
  %v1395 = vadd.f32 %v1391, %v1393
  %v1396 = vadd.f32 %v1392, %v1394
  %v1397 = vtanh.pop %v1395
  %v1398 = vtanh.pop %v1396
  %v1399 = vld [vmem:[#allocation2 + $0x10] sm:$0x1]
  %v1400 = vlaneseq
  %v1401 = vshrl.u32 %v1400, 7
  %v1402 = vsub.s32 0, %v1401
  %v1403 = vrot.slane %v1399, %v1402
  %v1404 = vmul.f32 %v452, %v1403
  %v1405 = vmul.f32 %v457, %v1403
  %v1406 = vmul.f32 %v1357, 0.4
  %v1407 = vmul.f32 %v1358, 0.4
  %v1408 = vadd.f32 %v1404, %v1406
  %v1409 = vadd.f32 %v1405, %v1407
  %v1410 = vtanh.pop %v1408
  %v1411 = vtanh.pop %v1409
  %v1412 = vmul.f32 %v467, %v1410
  %v1413 = vmul.f32 %v472, %v1411
  %v1414 = vmul.f32 %v1365, 0.4
  %v1415 = vmul.f32 %v1366, 0.4
  %v1416 = vadd.f32 %v1412, %v1414
  %v1417 = vadd.f32 %v1413, %v1415
  %v1418 = vtanh.pop %v1416
  %v1419 = vtanh.pop %v1417
  %v1420 = vmul.f32 %v482, %v1418
  %v1421 = vmul.f32 %v487, %v1419
  %v1422 = vmul.f32 %v1373, 0.4
  %v1423 = vmul.f32 %v1374, 0.4
  %v1424 = vadd.f32 %v1420, %v1422
  %v1425 = vadd.f32 %v1421, %v1423
  %v1426 = vtanh.pop %v1424
  %v1427 = vtanh.pop %v1425
  %v1428 = vmul.f32 %v497, %v1426
  %v1429 = vmul.f32 %v502, %v1427
  %v1430 = vmul.f32 %v1381, 0.4
  %v1431 = vmul.f32 %v1382, 0.4
  %v1432 = vadd.f32 %v1428, %v1430
  %v1433 = vadd.f32 %v1429, %v1431
  %v1434 = vtanh.pop %v1432
  %v1435 = vtanh.pop %v1433
  %v1436 = vmul.f32 %v512, %v1434
  %v1437 = vmul.f32 %v517, %v1435
  %v1438 = vmul.f32 %v1389, 0.4
  %v1439 = vmul.f32 %v1390, 0.4
  %v1440 = vadd.f32 %v1436, %v1438
  %v1441 = vadd.f32 %v1437, %v1439
  %v1442 = vtanh.pop %v1440
  %v1443 = vtanh.pop %v1441
  %v1444 = vmul.f32 %v527, %v1442
  %v1445 = vmul.f32 %v532, %v1443
  %v1446 = vmul.f32 %v1397, 0.4
  %v1447 = vmul.f32 %v1398, 0.4
  %v1448 = vadd.f32 %v1444, %v1446
  %v1449 = vadd.f32 %v1445, %v1447
  %v1450 = vtanh.pop %v1448
  %v1451 = vtanh.pop %v1449
  %v1452 = vld [vmem:[#allocation2 + $0x11] sm:$0x1]
  %v1453 = vlaneseq
  %v1454 = vshrl.u32 %v1453, 7
  %v1455 = vsub.s32 0, %v1454
  %v1456 = vrot.slane %v1452, %v1455
  %v1457 = vmul.f32 %v452, %v1456
  %v1458 = vmul.f32 %v457, %v1456
  %v1459 = vmul.f32 %v1410, 0.4
  %v1460 = vmul.f32 %v1411, 0.4
  %v1461 = vadd.f32 %v1457, %v1459
  %v1462 = vadd.f32 %v1458, %v1460
  %v1463 = vtanh.pop %v1461
  %v1464 = vtanh.pop %v1462
  %v1465 = vmul.f32 %v467, %v1463
  %v1466 = vmul.f32 %v472, %v1464
  %v1467 = vmul.f32 %v1418, 0.4
  %v1468 = vmul.f32 %v1419, 0.4
  %v1469 = vadd.f32 %v1465, %v1467
  %v1470 = vadd.f32 %v1466, %v1468
  %v1471 = vtanh.pop %v1469
  %v1472 = vtanh.pop %v1470
  %v1473 = vmul.f32 %v482, %v1471
  %v1474 = vmul.f32 %v487, %v1472
  %v1475 = vmul.f32 %v1426, 0.4
  %v1476 = vmul.f32 %v1427, 0.4
  %v1477 = vadd.f32 %v1473, %v1475
  %v1478 = vadd.f32 %v1474, %v1476
  %v1479 = vtanh.pop %v1477
  %v1480 = vtanh.pop %v1478
  %v1481 = vmul.f32 %v497, %v1479
  %v1482 = vmul.f32 %v502, %v1480
  %v1483 = vmul.f32 %v1434, 0.4
  %v1484 = vmul.f32 %v1435, 0.4
  %v1485 = vadd.f32 %v1481, %v1483
  %v1486 = vadd.f32 %v1482, %v1484
  %v1487 = vtanh.pop %v1485
  %v1488 = vtanh.pop %v1486
  %v1489 = vmul.f32 %v512, %v1487
  %v1490 = vmul.f32 %v517, %v1488
  %v1491 = vmul.f32 %v1442, 0.4
  %v1492 = vmul.f32 %v1443, 0.4
  %v1493 = vadd.f32 %v1489, %v1491
  %v1494 = vadd.f32 %v1490, %v1492
  %v1495 = vtanh.pop %v1493
  %v1496 = vtanh.pop %v1494
  %v1497 = vmul.f32 %v527, %v1495
  %v1498 = vmul.f32 %v532, %v1496
  %v1499 = vmul.f32 %v1450, 0.4
  %v1500 = vmul.f32 %v1451, 0.4
  %v1501 = vadd.f32 %v1497, %v1499
  %v1502 = vadd.f32 %v1498, %v1500
  %v1503 = vtanh.pop %v1501
  %v1504 = vtanh.pop %v1502
  %v1505 = vld [vmem:[#allocation2 + $0x12] sm:$0x1]
  %v1506 = vlaneseq
  %v1507 = vshrl.u32 %v1506, 7
  %v1508 = vsub.s32 0, %v1507
  %v1509 = vrot.slane %v1505, %v1508
  %v1510 = vmul.f32 %v452, %v1509
  %v1511 = vmul.f32 %v457, %v1509
  %v1512 = vmul.f32 %v1463, 0.4
  %v1513 = vmul.f32 %v1464, 0.4
  %v1514 = vadd.f32 %v1510, %v1512
  %v1515 = vadd.f32 %v1511, %v1513
  %v1516 = vtanh.pop %v1514
  %v1517 = vtanh.pop %v1515
  %v1518 = vmul.f32 %v467, %v1516
  %v1519 = vmul.f32 %v472, %v1517
  %v1520 = vmul.f32 %v1471, 0.4
  %v1521 = vmul.f32 %v1472, 0.4
  %v1522 = vadd.f32 %v1518, %v1520
  %v1523 = vadd.f32 %v1519, %v1521
  %v1524 = vtanh.pop %v1522
  %v1525 = vtanh.pop %v1523
  %v1526 = vmul.f32 %v482, %v1524
  %v1527 = vmul.f32 %v487, %v1525
  %v1528 = vmul.f32 %v1479, 0.4
  %v1529 = vmul.f32 %v1480, 0.4
  %v1530 = vadd.f32 %v1526, %v1528
  %v1531 = vadd.f32 %v1527, %v1529
  %v1532 = vtanh.pop %v1530
  %v1533 = vtanh.pop %v1531
  %v1534 = vmul.f32 %v497, %v1532
  %v1535 = vmul.f32 %v502, %v1533
  %v1536 = vmul.f32 %v1487, 0.4
  %v1537 = vmul.f32 %v1488, 0.4
  %v1538 = vadd.f32 %v1534, %v1536
  %v1539 = vadd.f32 %v1535, %v1537
  %v1540 = vtanh.pop %v1538
  %v1541 = vtanh.pop %v1539
  %v1542 = vmul.f32 %v512, %v1540
  %v1543 = vmul.f32 %v517, %v1541
  %v1544 = vmul.f32 %v1495, 0.4
  %v1545 = vmul.f32 %v1496, 0.4
  %v1546 = vadd.f32 %v1542, %v1544
  %v1547 = vadd.f32 %v1543, %v1545
  %v1548 = vtanh.pop %v1546
  %v1549 = vtanh.pop %v1547
  %v1550 = vmul.f32 %v527, %v1548
  %v1551 = vmul.f32 %v532, %v1549
  %v1552 = vmul.f32 %v1503, 0.4
  %v1553 = vmul.f32 %v1504, 0.4
  %v1554 = vadd.f32 %v1550, %v1552
  %v1555 = vadd.f32 %v1551, %v1553
  %v1556 = vtanh.pop %v1554
  %v1557 = vtanh.pop %v1555
  %v1558 = vld [vmem:[#allocation2 + $0x13] sm:$0x1]
  %v1559 = vlaneseq
  %v1560 = vshrl.u32 %v1559, 7
  %v1561 = vsub.s32 0, %v1560
  %v1562 = vrot.slane %v1558, %v1561
  %v1563 = vmul.f32 %v452, %v1562
  %v1564 = vmul.f32 %v457, %v1562
  %v1565 = vmul.f32 %v1516, 0.4
  %v1566 = vmul.f32 %v1517, 0.4
  %v1567 = vadd.f32 %v1563, %v1565
  %v1568 = vadd.f32 %v1564, %v1566
  %v1569 = vtanh.pop %v1567
  %v1570 = vtanh.pop %v1568
  %v1571 = vmul.f32 %v467, %v1569
  %v1572 = vmul.f32 %v472, %v1570
  %v1573 = vmul.f32 %v1524, 0.4
  %v1574 = vmul.f32 %v1525, 0.4
  %v1575 = vadd.f32 %v1571, %v1573
  %v1576 = vadd.f32 %v1572, %v1574
  %v1577 = vtanh.pop %v1575
  %v1578 = vtanh.pop %v1576
  %v1579 = vmul.f32 %v482, %v1577
  %v1580 = vmul.f32 %v487, %v1578
  %v1581 = vmul.f32 %v1532, 0.4
  %v1582 = vmul.f32 %v1533, 0.4
  %v1583 = vadd.f32 %v1579, %v1581
  %v1584 = vadd.f32 %v1580, %v1582
  %v1585 = vtanh.pop %v1583
  %v1586 = vtanh.pop %v1584
  %v1587 = vmul.f32 %v497, %v1585
  %v1588 = vmul.f32 %v502, %v1586
  %v1589 = vmul.f32 %v1540, 0.4
  %v1590 = vmul.f32 %v1541, 0.4
  %v1591 = vadd.f32 %v1587, %v1589
  %v1592 = vadd.f32 %v1588, %v1590
  %v1593 = vtanh.pop %v1591
  %v1594 = vtanh.pop %v1592
  %v1595 = vmul.f32 %v512, %v1593
  %v1596 = vmul.f32 %v517, %v1594
  %v1597 = vmul.f32 %v1548, 0.4
  %v1598 = vmul.f32 %v1549, 0.4
  %v1599 = vadd.f32 %v1595, %v1597
  %v1600 = vadd.f32 %v1596, %v1598
  %v1601 = vtanh.pop %v1599
  %v1602 = vtanh.pop %v1600
  %v1603 = vmul.f32 %v527, %v1601
  %v1604 = vmul.f32 %v532, %v1602
  %v1605 = vmul.f32 %v1556, 0.4
  %v1606 = vmul.f32 %v1557, 0.4
  %v1607 = vadd.f32 %v1603, %v1605
  %v1608 = vadd.f32 %v1604, %v1606
  %v1609 = vtanh.pop %v1607
  %v1610 = vtanh.pop %v1608
  %v1611 = vld [vmem:[#allocation2 + $0x14] sm:$0x1]
  %v1612 = vlaneseq
  %v1613 = vshrl.u32 %v1612, 7
  %v1614 = vsub.s32 0, %v1613
  %v1615 = vrot.slane %v1611, %v1614
  %v1616 = vmul.f32 %v452, %v1615
  %v1617 = vmul.f32 %v457, %v1615
  %v1618 = vmul.f32 %v1569, 0.4
  %v1619 = vmul.f32 %v1570, 0.4
  %v1620 = vadd.f32 %v1616, %v1618
  %v1621 = vadd.f32 %v1617, %v1619
  %v1622 = vtanh.pop %v1620
  %v1623 = vtanh.pop %v1621
  %v1624 = vmul.f32 %v467, %v1622
  %v1625 = vmul.f32 %v472, %v1623
  %v1626 = vmul.f32 %v1577, 0.4
  %v1627 = vmul.f32 %v1578, 0.4
  %v1628 = vadd.f32 %v1624, %v1626
  %v1629 = vadd.f32 %v1625, %v1627
  %v1630 = vtanh.pop %v1628
  %v1631 = vtanh.pop %v1629
  %v1632 = vmul.f32 %v482, %v1630
  %v1633 = vmul.f32 %v487, %v1631
  %v1634 = vmul.f32 %v1585, 0.4
  %v1635 = vmul.f32 %v1586, 0.4
  %v1636 = vadd.f32 %v1632, %v1634
  %v1637 = vadd.f32 %v1633, %v1635
  %v1638 = vtanh.pop %v1636
  %v1639 = vtanh.pop %v1637
  %v1640 = vmul.f32 %v497, %v1638
  %v1641 = vmul.f32 %v502, %v1639
  %v1642 = vmul.f32 %v1593, 0.4
  %v1643 = vmul.f32 %v1594, 0.4
  %v1644 = vadd.f32 %v1640, %v1642
  %v1645 = vadd.f32 %v1641, %v1643
  %v1646 = vtanh.pop %v1644
  %v1647 = vtanh.pop %v1645
  %v1648 = vmul.f32 %v512, %v1646
  %v1649 = vmul.f32 %v517, %v1647
  %v1650 = vmul.f32 %v1601, 0.4
  %v1651 = vmul.f32 %v1602, 0.4
  %v1652 = vadd.f32 %v1648, %v1650
  %v1653 = vadd.f32 %v1649, %v1651
  %v1654 = vtanh.pop %v1652
  %v1655 = vtanh.pop %v1653
  %v1656 = vmul.f32 %v527, %v1654
  %v1657 = vmul.f32 %v532, %v1655
  %v1658 = vmul.f32 %v1609, 0.4
  %v1659 = vmul.f32 %v1610, 0.4
  %v1660 = vadd.f32 %v1656, %v1658
  %v1661 = vadd.f32 %v1657, %v1659
  %v1662 = vtanh.pop %v1660
  %v1663 = vtanh.pop %v1661
  %v1664 = vld [vmem:[#allocation2 + $0x15] sm:$0x1]
  %v1665 = vlaneseq
  %v1666 = vshrl.u32 %v1665, 7
  %v1667 = vsub.s32 0, %v1666
  %v1668 = vrot.slane %v1664, %v1667
  %v1669 = vmul.f32 %v452, %v1668
  %v1670 = vmul.f32 %v457, %v1668
  %v1671 = vmul.f32 %v1622, 0.4
  %v1672 = vmul.f32 %v1623, 0.4
  %v1673 = vadd.f32 %v1669, %v1671
  %v1674 = vadd.f32 %v1670, %v1672
  %v1675 = vtanh.pop %v1673
  %v1676 = vtanh.pop %v1674
  %v1677 = vmul.f32 %v467, %v1675
  %v1678 = vmul.f32 %v472, %v1676
  %v1679 = vmul.f32 %v1630, 0.4
  %v1680 = vmul.f32 %v1631, 0.4
  %v1681 = vadd.f32 %v1677, %v1679
  %v1682 = vadd.f32 %v1678, %v1680
  %v1683 = vtanh.pop %v1681
  %v1684 = vtanh.pop %v1682
  %v1685 = vmul.f32 %v482, %v1683
  %v1686 = vmul.f32 %v487, %v1684
  %v1687 = vmul.f32 %v1638, 0.4
  %v1688 = vmul.f32 %v1639, 0.4
  %v1689 = vadd.f32 %v1685, %v1687
  %v1690 = vadd.f32 %v1686, %v1688
  %v1691 = vtanh.pop %v1689
  %v1692 = vtanh.pop %v1690
  %v1693 = vmul.f32 %v497, %v1691
  %v1694 = vmul.f32 %v502, %v1692
  %v1695 = vmul.f32 %v1646, 0.4
  %v1696 = vmul.f32 %v1647, 0.4
  %v1697 = vadd.f32 %v1693, %v1695
  %v1698 = vadd.f32 %v1694, %v1696
  %v1699 = vtanh.pop %v1697
  %v1700 = vtanh.pop %v1698
  %v1701 = vmul.f32 %v512, %v1699
  %v1702 = vmul.f32 %v517, %v1700
  %v1703 = vmul.f32 %v1654, 0.4
  %v1704 = vmul.f32 %v1655, 0.4
  %v1705 = vadd.f32 %v1701, %v1703
  %v1706 = vadd.f32 %v1702, %v1704
  %v1707 = vtanh.pop %v1705
  %v1708 = vtanh.pop %v1706
  %v1709 = vmul.f32 %v527, %v1707
  %v1710 = vmul.f32 %v532, %v1708
  %v1711 = vmul.f32 %v1662, 0.4
  %v1712 = vmul.f32 %v1663, 0.4
  %v1713 = vadd.f32 %v1709, %v1711
  %v1714 = vadd.f32 %v1710, %v1712
  %v1715 = vtanh.pop %v1713
  %v1716 = vtanh.pop %v1714
  %v1717 = vld [vmem:[#allocation2 + $0x16] sm:$0x1]
  %v1718 = vlaneseq
  %v1719 = vshrl.u32 %v1718, 7
  %v1720 = vsub.s32 0, %v1719
  %v1721 = vrot.slane %v1717, %v1720
  %v1722 = vmul.f32 %v452, %v1721
  %v1723 = vmul.f32 %v457, %v1721
  %v1724 = vmul.f32 %v1675, 0.4
  %v1725 = vmul.f32 %v1676, 0.4
  %v1726 = vadd.f32 %v1722, %v1724
  %v1727 = vadd.f32 %v1723, %v1725
  %v1728 = vtanh.pop %v1726
  %v1729 = vtanh.pop %v1727
  %v1730 = vmul.f32 %v467, %v1728
  %v1731 = vmul.f32 %v472, %v1729
  %v1732 = vmul.f32 %v1683, 0.4
  %v1733 = vmul.f32 %v1684, 0.4
  %v1734 = vadd.f32 %v1730, %v1732
  %v1735 = vadd.f32 %v1731, %v1733
  %v1736 = vtanh.pop %v1734
  %v1737 = vtanh.pop %v1735
  %v1738 = vmul.f32 %v482, %v1736
  %v1739 = vmul.f32 %v487, %v1737
  %v1740 = vmul.f32 %v1691, 0.4
  %v1741 = vmul.f32 %v1692, 0.4
  %v1742 = vadd.f32 %v1738, %v1740
  %v1743 = vadd.f32 %v1739, %v1741
  %v1744 = vtanh.pop %v1742
  %v1745 = vtanh.pop %v1743
  %v1746 = vmul.f32 %v497, %v1744
  %v1747 = vmul.f32 %v502, %v1745
  %v1748 = vmul.f32 %v1699, 0.4
  %v1749 = vmul.f32 %v1700, 0.4
  %v1750 = vadd.f32 %v1746, %v1748
  %v1751 = vadd.f32 %v1747, %v1749
  %v1752 = vtanh.pop %v1750
  %v1753 = vtanh.pop %v1751
  %v1754 = vmul.f32 %v512, %v1752
  %v1755 = vmul.f32 %v517, %v1753
  %v1756 = vmul.f32 %v1707, 0.4
  %v1757 = vmul.f32 %v1708, 0.4
  %v1758 = vadd.f32 %v1754, %v1756
  %v1759 = vadd.f32 %v1755, %v1757
  %v1760 = vtanh.pop %v1758
  %v1761 = vtanh.pop %v1759
  %v1762 = vmul.f32 %v527, %v1760
  %v1763 = vmul.f32 %v532, %v1761
  %v1764 = vmul.f32 %v1715, 0.4
  %v1765 = vmul.f32 %v1716, 0.4
  %v1766 = vadd.f32 %v1762, %v1764
  %v1767 = vadd.f32 %v1763, %v1765
  %v1768 = vtanh.pop %v1766
  %v1769 = vtanh.pop %v1767
  %v1770 = vld [vmem:[#allocation2 + $0x17] sm:$0x1]
  %v1771 = vlaneseq
  %v1772 = vshrl.u32 %v1771, 7
  %v1773 = vsub.s32 0, %v1772
  %v1774 = vrot.slane %v1770, %v1773
  %v1775 = vmul.f32 %v452, %v1774
  %v1776 = vmul.f32 %v457, %v1774
  %v1777 = vmul.f32 %v1728, 0.4
  %v1778 = vmul.f32 %v1729, 0.4
  %v1779 = vadd.f32 %v1775, %v1777
  %v1780 = vadd.f32 %v1776, %v1778
  %v1781 = vtanh.pop %v1779
  %v1782 = vtanh.pop %v1780
  %v1783 = vmul.f32 %v467, %v1781
  %v1784 = vmul.f32 %v472, %v1782
  %v1785 = vmul.f32 %v1736, 0.4
  %v1786 = vmul.f32 %v1737, 0.4
  %v1787 = vadd.f32 %v1783, %v1785
  %v1788 = vadd.f32 %v1784, %v1786
  %v1789 = vtanh.pop %v1787
  %v1790 = vtanh.pop %v1788
  %v1791 = vmul.f32 %v482, %v1789
  %v1792 = vmul.f32 %v487, %v1790
  %v1793 = vmul.f32 %v1744, 0.4
  %v1794 = vmul.f32 %v1745, 0.4
  %v1795 = vadd.f32 %v1791, %v1793
  %v1796 = vadd.f32 %v1792, %v1794
  %v1797 = vtanh.pop %v1795
  %v1798 = vtanh.pop %v1796
  %v1799 = vmul.f32 %v497, %v1797
  %v1800 = vmul.f32 %v502, %v1798
  %v1801 = vmul.f32 %v1752, 0.4
  %v1802 = vmul.f32 %v1753, 0.4
  %v1803 = vadd.f32 %v1799, %v1801
  %v1804 = vadd.f32 %v1800, %v1802
  %v1805 = vtanh.pop %v1803
  %v1806 = vtanh.pop %v1804
  %v1807 = vmul.f32 %v512, %v1805
  %v1808 = vmul.f32 %v517, %v1806
  %v1809 = vmul.f32 %v1760, 0.4
  %v1810 = vmul.f32 %v1761, 0.4
  %v1811 = vadd.f32 %v1807, %v1809
  %v1812 = vadd.f32 %v1808, %v1810
  %v1813 = vtanh.pop %v1811
  %v1814 = vtanh.pop %v1812
  %v1815 = vmul.f32 %v527, %v1813
  %v1816 = vmul.f32 %v532, %v1814
  %v1817 = vmul.f32 %v1768, 0.4
  %v1818 = vmul.f32 %v1769, 0.4
  %v1819 = vadd.f32 %v1815, %v1817
  %v1820 = vadd.f32 %v1816, %v1818
  %v1821 = vtanh.pop %v1819
  %v1822 = vtanh.pop %v1820
  %v1823 = vld [vmem:[#allocation2 + $0x18] sm:$0x1]
  %v1824 = vlaneseq
  %v1825 = vshrl.u32 %v1824, 7
  %v1826 = vsub.s32 0, %v1825
  %v1827 = vrot.slane %v1823, %v1826
  %v1828 = vmul.f32 %v452, %v1827
  %v1829 = vmul.f32 %v457, %v1827
  %v1830 = vmul.f32 %v1781, 0.4
  %v1831 = vmul.f32 %v1782, 0.4
  %v1832 = vadd.f32 %v1828, %v1830
  %v1833 = vadd.f32 %v1829, %v1831
  %v1834 = vtanh.pop %v1832
  %v1835 = vtanh.pop %v1833
  %v1836 = vmul.f32 %v467, %v1834
  %v1837 = vmul.f32 %v472, %v1835
  %v1838 = vmul.f32 %v1789, 0.4
  %v1839 = vmul.f32 %v1790, 0.4
  %v1840 = vadd.f32 %v1836, %v1838
  %v1841 = vadd.f32 %v1837, %v1839
  %v1842 = vtanh.pop %v1840
  %v1843 = vtanh.pop %v1841
  %v1844 = vmul.f32 %v482, %v1842
  %v1845 = vmul.f32 %v487, %v1843
  %v1846 = vmul.f32 %v1797, 0.4
  %v1847 = vmul.f32 %v1798, 0.4
  %v1848 = vadd.f32 %v1844, %v1846
  %v1849 = vadd.f32 %v1845, %v1847
  %v1850 = vtanh.pop %v1848
  %v1851 = vtanh.pop %v1849
  %v1852 = vmul.f32 %v497, %v1850
  %v1853 = vmul.f32 %v502, %v1851
  %v1854 = vmul.f32 %v1805, 0.4
  %v1855 = vmul.f32 %v1806, 0.4
  %v1856 = vadd.f32 %v1852, %v1854
  %v1857 = vadd.f32 %v1853, %v1855
  %v1858 = vtanh.pop %v1856
  %v1859 = vtanh.pop %v1857
  %v1860 = vmul.f32 %v512, %v1858
  %v1861 = vmul.f32 %v517, %v1859
  %v1862 = vmul.f32 %v1813, 0.4
  %v1863 = vmul.f32 %v1814, 0.4
  %v1864 = vadd.f32 %v1860, %v1862
  %v1865 = vadd.f32 %v1861, %v1863
  %v1866 = vtanh.pop %v1864
  %v1867 = vtanh.pop %v1865
  %v1868 = vmul.f32 %v527, %v1866
  %v1869 = vmul.f32 %v532, %v1867
  %v1870 = vmul.f32 %v1821, 0.4
  %v1871 = vmul.f32 %v1822, 0.4
  %v1872 = vadd.f32 %v1868, %v1870
  %v1873 = vadd.f32 %v1869, %v1871
  %v1874 = vtanh.pop %v1872
  %v1875 = vtanh.pop %v1873
  %v1876 = vld [vmem:[#allocation2 + $0x19] sm:$0x1]
  %v1877 = vlaneseq
  %v1878 = vshrl.u32 %v1877, 7
  %v1879 = vsub.s32 0, %v1878
  %v1880 = vrot.slane %v1876, %v1879
  %v1881 = vmul.f32 %v452, %v1880
  %v1882 = vmul.f32 %v457, %v1880
  %v1883 = vmul.f32 %v1834, 0.4
  %v1884 = vmul.f32 %v1835, 0.4
  %v1885 = vadd.f32 %v1881, %v1883
  %v1886 = vadd.f32 %v1882, %v1884
  %v1887 = vtanh.pop %v1885
  %v1888 = vtanh.pop %v1886
  %v1889 = vmul.f32 %v467, %v1887
  %v1890 = vmul.f32 %v472, %v1888
  %v1891 = vmul.f32 %v1842, 0.4
  %v1892 = vmul.f32 %v1843, 0.4
  %v1893 = vadd.f32 %v1889, %v1891
  %v1894 = vadd.f32 %v1890, %v1892
  %v1895 = vtanh.pop %v1893
  %v1896 = vtanh.pop %v1894
  %v1897 = vmul.f32 %v482, %v1895
  %v1898 = vmul.f32 %v487, %v1896
  %v1899 = vmul.f32 %v1850, 0.4
  %v1900 = vmul.f32 %v1851, 0.4
  %v1901 = vadd.f32 %v1897, %v1899
  %v1902 = vadd.f32 %v1898, %v1900
  %v1903 = vtanh.pop %v1901
  %v1904 = vtanh.pop %v1902
  %v1905 = vmul.f32 %v497, %v1903
  %v1906 = vmul.f32 %v502, %v1904
  %v1907 = vmul.f32 %v1858, 0.4
  %v1908 = vmul.f32 %v1859, 0.4
  %v1909 = vadd.f32 %v1905, %v1907
  %v1910 = vadd.f32 %v1906, %v1908
  %v1911 = vtanh.pop %v1909
  %v1912 = vtanh.pop %v1910
  %v1913 = vmul.f32 %v512, %v1911
  %v1914 = vmul.f32 %v517, %v1912
  %v1915 = vmul.f32 %v1866, 0.4
  %v1916 = vmul.f32 %v1867, 0.4
  %v1917 = vadd.f32 %v1913, %v1915
  %v1918 = vadd.f32 %v1914, %v1916
  %v1919 = vtanh.pop %v1917
  %v1920 = vtanh.pop %v1918
  %v1921 = vmul.f32 %v527, %v1919
  %v1922 = vmul.f32 %v532, %v1920
  %v1923 = vmul.f32 %v1874, 0.4
  %v1924 = vmul.f32 %v1875, 0.4
  %v1925 = vadd.f32 %v1921, %v1923
  %v1926 = vadd.f32 %v1922, %v1924
  %v1927 = vtanh.pop %v1925
  %v1928 = vtanh.pop %v1926
  %v1929 = vld [vmem:[#allocation2 + $0x1a] sm:$0x1]
  %v1930 = vlaneseq
  %v1931 = vshrl.u32 %v1930, 7
  %v1932 = vsub.s32 0, %v1931
  %v1933 = vrot.slane %v1929, %v1932
  %v1934 = vmul.f32 %v452, %v1933
  %v1935 = vmul.f32 %v457, %v1933
  %v1936 = vmul.f32 %v1887, 0.4
  %v1937 = vmul.f32 %v1888, 0.4
  %v1938 = vadd.f32 %v1934, %v1936
  %v1939 = vadd.f32 %v1935, %v1937
  %v1940 = vtanh.pop %v1938
  %v1941 = vtanh.pop %v1939
  %v1942 = vmul.f32 %v467, %v1940
  %v1943 = vmul.f32 %v472, %v1941
  %v1944 = vmul.f32 %v1895, 0.4
  %v1945 = vmul.f32 %v1896, 0.4
  %v1946 = vadd.f32 %v1942, %v1944
  %v1947 = vadd.f32 %v1943, %v1945
  %v1948 = vtanh.pop %v1946
  %v1949 = vtanh.pop %v1947
  %v1950 = vmul.f32 %v482, %v1948
  %v1951 = vmul.f32 %v487, %v1949
  %v1952 = vmul.f32 %v1903, 0.4
  %v1953 = vmul.f32 %v1904, 0.4
  %v1954 = vadd.f32 %v1950, %v1952
  %v1955 = vadd.f32 %v1951, %v1953
  %v1956 = vtanh.pop %v1954
  %v1957 = vtanh.pop %v1955
  %v1958 = vmul.f32 %v497, %v1956
  %v1959 = vmul.f32 %v502, %v1957
  %v1960 = vmul.f32 %v1911, 0.4
  %v1961 = vmul.f32 %v1912, 0.4
  %v1962 = vadd.f32 %v1958, %v1960
  %v1963 = vadd.f32 %v1959, %v1961
  %v1964 = vtanh.pop %v1962
  %v1965 = vtanh.pop %v1963
  %v1966 = vmul.f32 %v512, %v1964
  %v1967 = vmul.f32 %v517, %v1965
  %v1968 = vmul.f32 %v1919, 0.4
  %v1969 = vmul.f32 %v1920, 0.4
  %v1970 = vadd.f32 %v1966, %v1968
  %v1971 = vadd.f32 %v1967, %v1969
  %v1972 = vtanh.pop %v1970
  %v1973 = vtanh.pop %v1971
  %v1974 = vmul.f32 %v527, %v1972
  %v1975 = vmul.f32 %v532, %v1973
  %v1976 = vmul.f32 %v1927, 0.4
  %v1977 = vmul.f32 %v1928, 0.4
  %v1978 = vadd.f32 %v1974, %v1976
  %v1979 = vadd.f32 %v1975, %v1977
  %v1980 = vtanh.pop %v1978
  %v1981 = vtanh.pop %v1979
  %v1982 = vld [vmem:[#allocation2 + $0x1b] sm:$0x1]
  %v1983 = vlaneseq
  %v1984 = vshrl.u32 %v1983, 7
  %v1985 = vsub.s32 0, %v1984
  %v1986 = vrot.slane %v1982, %v1985
  %v1987 = vmul.f32 %v452, %v1986
  %v1988 = vmul.f32 %v457, %v1986
  %v1989 = vmul.f32 %v1940, 0.4
  %v1990 = vmul.f32 %v1941, 0.4
  %v1991 = vadd.f32 %v1987, %v1989
  %v1992 = vadd.f32 %v1988, %v1990
  %v1993 = vtanh.pop %v1991
  %v1994 = vtanh.pop %v1992
  %v1995 = vmul.f32 %v467, %v1993
  %v1996 = vmul.f32 %v472, %v1994
  %v1997 = vmul.f32 %v1948, 0.4
  %v1998 = vmul.f32 %v1949, 0.4
  %v1999 = vadd.f32 %v1995, %v1997
  %v2000 = vadd.f32 %v1996, %v1998
  %v2001 = vtanh.pop %v1999
  %v2002 = vtanh.pop %v2000
  %v2003 = vmul.f32 %v482, %v2001
  %v2004 = vmul.f32 %v487, %v2002
  %v2005 = vmul.f32 %v1956, 0.4
  %v2006 = vmul.f32 %v1957, 0.4
  %v2007 = vadd.f32 %v2003, %v2005
  %v2008 = vadd.f32 %v2004, %v2006
  %v2009 = vtanh.pop %v2007
  %v2010 = vtanh.pop %v2008
  %v2011 = vmul.f32 %v497, %v2009
  %v2012 = vmul.f32 %v502, %v2010
  %v2013 = vmul.f32 %v1964, 0.4
  %v2014 = vmul.f32 %v1965, 0.4
  %v2015 = vadd.f32 %v2011, %v2013
  %v2016 = vadd.f32 %v2012, %v2014
  %v2017 = vtanh.pop %v2015
  %v2018 = vtanh.pop %v2016
  %v2019 = vmul.f32 %v512, %v2017
  %v2020 = vmul.f32 %v517, %v2018
  %v2021 = vmul.f32 %v1972, 0.4
  %v2022 = vmul.f32 %v1973, 0.4
  %v2023 = vadd.f32 %v2019, %v2021
  %v2024 = vadd.f32 %v2020, %v2022
  %v2025 = vtanh.pop %v2023
  %v2026 = vtanh.pop %v2024
  %v2027 = vmul.f32 %v527, %v2025
  %v2028 = vmul.f32 %v532, %v2026
  %v2029 = vmul.f32 %v1980, 0.4
  %v2030 = vmul.f32 %v1981, 0.4
  %v2031 = vadd.f32 %v2027, %v2029
  %v2032 = vadd.f32 %v2028, %v2030
  %v2033 = vtanh.pop %v2031
  %v2034 = vtanh.pop %v2032
  %v2035 = vld [vmem:[#allocation2 + $0x1c] sm:$0x1]
  %v2036 = vlaneseq
  %v2037 = vshrl.u32 %v2036, 7
  %v2038 = vsub.s32 0, %v2037
  %v2039 = vrot.slane %v2035, %v2038
  %v2040 = vmul.f32 %v452, %v2039
  %v2041 = vmul.f32 %v457, %v2039
  %v2042 = vmul.f32 %v1993, 0.4
  %v2043 = vmul.f32 %v1994, 0.4
  %v2044 = vadd.f32 %v2040, %v2042
  %v2045 = vadd.f32 %v2041, %v2043
  %v2046 = vtanh.pop %v2044
  %v2047 = vtanh.pop %v2045
  %v2048 = vmul.f32 %v467, %v2046
  %v2049 = vmul.f32 %v472, %v2047
  %v2050 = vmul.f32 %v2001, 0.4
  %v2051 = vmul.f32 %v2002, 0.4
  %v2052 = vadd.f32 %v2048, %v2050
  %v2053 = vadd.f32 %v2049, %v2051
  %v2054 = vtanh.pop %v2052
  %v2055 = vtanh.pop %v2053
  %v2056 = vmul.f32 %v482, %v2054
  %v2057 = vmul.f32 %v487, %v2055
  %v2058 = vmul.f32 %v2009, 0.4
  %v2059 = vmul.f32 %v2010, 0.4
  %v2060 = vadd.f32 %v2056, %v2058
  %v2061 = vadd.f32 %v2057, %v2059
  %v2062 = vtanh.pop %v2060
  %v2063 = vtanh.pop %v2061
  %v2064 = vmul.f32 %v497, %v2062
  %v2065 = vmul.f32 %v502, %v2063
  %v2066 = vmul.f32 %v2017, 0.4
  %v2067 = vmul.f32 %v2018, 0.4
  %v2068 = vadd.f32 %v2064, %v2066
  %v2069 = vadd.f32 %v2065, %v2067
  %v2070 = vtanh.pop %v2068
  %v2071 = vtanh.pop %v2069
  %v2072 = vmul.f32 %v512, %v2070
  %v2073 = vmul.f32 %v517, %v2071
  %v2074 = vmul.f32 %v2025, 0.4
  %v2075 = vmul.f32 %v2026, 0.4
  %v2076 = vadd.f32 %v2072, %v2074
  %v2077 = vadd.f32 %v2073, %v2075
  %v2078 = vtanh.pop %v2076
  %v2079 = vtanh.pop %v2077
  %v2080 = vmul.f32 %v527, %v2078
  %v2081 = vmul.f32 %v532, %v2079
  %v2082 = vmul.f32 %v2033, 0.4
  %v2083 = vmul.f32 %v2034, 0.4
  %v2084 = vadd.f32 %v2080, %v2082
  %v2085 = vadd.f32 %v2081, %v2083
  %v2086 = vtanh.pop %v2084
  %v2087 = vtanh.pop %v2085
  %v2088 = vld [vmem:[#allocation2 + $0x1d] sm:$0x1]
  %v2089 = vlaneseq
  %v2090 = vshrl.u32 %v2089, 7
  %v2091 = vsub.s32 0, %v2090
  %v2092 = vrot.slane %v2088, %v2091
  %v2093 = vmul.f32 %v452, %v2092
  %v2094 = vmul.f32 %v457, %v2092
  %v2095 = vmul.f32 %v2046, 0.4
  %v2096 = vmul.f32 %v2047, 0.4
  %v2097 = vadd.f32 %v2093, %v2095
  %v2098 = vadd.f32 %v2094, %v2096
  %v2099 = vtanh.pop %v2097
  %v2100 = vtanh.pop %v2098
  %v2101 = vmul.f32 %v467, %v2099
  %v2102 = vmul.f32 %v472, %v2100
  %v2103 = vmul.f32 %v2054, 0.4
  %v2104 = vmul.f32 %v2055, 0.4
  %v2105 = vadd.f32 %v2101, %v2103
  %v2106 = vadd.f32 %v2102, %v2104
  %v2107 = vtanh.pop %v2105
  %v2108 = vtanh.pop %v2106
  %v2109 = vmul.f32 %v482, %v2107
  %v2110 = vmul.f32 %v487, %v2108
  %v2111 = vmul.f32 %v2062, 0.4
  %v2112 = vmul.f32 %v2063, 0.4
  %v2113 = vadd.f32 %v2109, %v2111
  %v2114 = vadd.f32 %v2110, %v2112
  %v2115 = vtanh.pop %v2113
  %v2116 = vtanh.pop %v2114
  %v2117 = vmul.f32 %v497, %v2115
  %v2118 = vmul.f32 %v502, %v2116
  %v2119 = vmul.f32 %v2070, 0.4
  %v2120 = vmul.f32 %v2071, 0.4
  %v2121 = vadd.f32 %v2117, %v2119
  %v2122 = vadd.f32 %v2118, %v2120
  %v2123 = vtanh.pop %v2121
  %v2124 = vtanh.pop %v2122
  %v2125 = vmul.f32 %v512, %v2123
  %v2126 = vmul.f32 %v517, %v2124
  %v2127 = vmul.f32 %v2078, 0.4
  %v2128 = vmul.f32 %v2079, 0.4
  %v2129 = vadd.f32 %v2125, %v2127
  %v2130 = vadd.f32 %v2126, %v2128
  %v2131 = vtanh.pop %v2129
  %v2132 = vtanh.pop %v2130
  %v2133 = vmul.f32 %v527, %v2131
  %v2134 = vmul.f32 %v532, %v2132
  %v2135 = vmul.f32 %v2086, 0.4
  %v2136 = vmul.f32 %v2087, 0.4
  %v2137 = vadd.f32 %v2133, %v2135
  %v2138 = vadd.f32 %v2134, %v2136
  %v2139 = vtanh.pop %v2137
  %v2140 = vtanh.pop %v2138
  %v2141 = vld [vmem:[#allocation2 + $0x1e] sm:$0x1]
  %v2142 = vlaneseq
  %v2143 = vshrl.u32 %v2142, 7
  %v2144 = vsub.s32 0, %v2143
  %v2145 = vrot.slane %v2141, %v2144
  %v2146 = vmul.f32 %v452, %v2145
  %v2147 = vmul.f32 %v457, %v2145
  %v2148 = vmul.f32 %v2099, 0.4
  %v2149 = vmul.f32 %v2100, 0.4
  %v2150 = vadd.f32 %v2146, %v2148
  %v2151 = vadd.f32 %v2147, %v2149
  %v2152 = vtanh.pop %v2150
  %v2153 = vtanh.pop %v2151
  %v2154 = vmul.f32 %v467, %v2152
  %v2155 = vmul.f32 %v472, %v2153
  %v2156 = vmul.f32 %v2107, 0.4
  %v2157 = vmul.f32 %v2108, 0.4
  %v2158 = vadd.f32 %v2154, %v2156
  %v2159 = vadd.f32 %v2155, %v2157
  %v2160 = vtanh.pop %v2158
  %v2161 = vtanh.pop %v2159
  %v2162 = vmul.f32 %v482, %v2160
  %v2163 = vmul.f32 %v487, %v2161
  %v2164 = vmul.f32 %v2115, 0.4
  %v2165 = vmul.f32 %v2116, 0.4
  %v2166 = vadd.f32 %v2162, %v2164
  %v2167 = vadd.f32 %v2163, %v2165
  %v2168 = vtanh.pop %v2166
  %v2169 = vtanh.pop %v2167
  %v2170 = vmul.f32 %v497, %v2168
  %v2171 = vmul.f32 %v502, %v2169
  %v2172 = vmul.f32 %v2123, 0.4
  %v2173 = vmul.f32 %v2124, 0.4
  %v2174 = vadd.f32 %v2170, %v2172
  %v2175 = vadd.f32 %v2171, %v2173
  %v2176 = vtanh.pop %v2174
  %v2177 = vtanh.pop %v2175
  %v2178 = vmul.f32 %v512, %v2176
  %v2179 = vmul.f32 %v517, %v2177
  %v2180 = vmul.f32 %v2131, 0.4
  %v2181 = vmul.f32 %v2132, 0.4
  %v2182 = vadd.f32 %v2178, %v2180
  %v2183 = vadd.f32 %v2179, %v2181
  %v2184 = vtanh.pop %v2182
  %v2185 = vtanh.pop %v2183
  %v2186 = vmul.f32 %v527, %v2184
  %v2187 = vmul.f32 %v532, %v2185
  %v2188 = vmul.f32 %v2139, 0.4
  %v2189 = vmul.f32 %v2140, 0.4
  %v2190 = vadd.f32 %v2186, %v2188
  %v2191 = vadd.f32 %v2187, %v2189
  %v2192 = vtanh.pop %v2190
  %v2193 = vtanh.pop %v2191
  %v2194 = vld [vmem:[#allocation2 + $0x1f] sm:$0x1]
  %v2195 = vlaneseq
  %v2196 = vshrl.u32 %v2195, 7
  %v2197 = vsub.s32 0, %v2196
  %v2198 = vrot.slane %v2194, %v2197
  %v2199 = vmul.f32 %v452, %v2198
  %v2200 = vmul.f32 %v457, %v2198
  %v2201 = vmul.f32 %v2152, 0.4
  %v2202 = vmul.f32 %v2153, 0.4
  %v2203 = vadd.f32 %v2199, %v2201
  %v2204 = vadd.f32 %v2200, %v2202
  %v2205 = vtanh.pop %v2203
  %v2206 = vtanh.pop %v2204
  %v2207 = vmul.f32 %v467, %v2205
  %v2208 = vmul.f32 %v472, %v2206
  %v2209 = vmul.f32 %v2160, 0.4
  %v2210 = vmul.f32 %v2161, 0.4
  %v2211 = vadd.f32 %v2207, %v2209
  %v2212 = vadd.f32 %v2208, %v2210
  %v2213 = vtanh.pop %v2211
  %v2214 = vtanh.pop %v2212
  %v2215 = vmul.f32 %v482, %v2213
  %v2216 = vmul.f32 %v487, %v2214
  %v2217 = vmul.f32 %v2168, 0.4
  %v2218 = vmul.f32 %v2169, 0.4
  %v2219 = vadd.f32 %v2215, %v2217
  %v2220 = vadd.f32 %v2216, %v2218
  %v2221 = vtanh.pop %v2219
  %v2222 = vtanh.pop %v2220
  %v2223 = vmul.f32 %v497, %v2221
  %v2224 = vmul.f32 %v502, %v2222
  %v2225 = vmul.f32 %v2176, 0.4
  %v2226 = vmul.f32 %v2177, 0.4
  %v2227 = vadd.f32 %v2223, %v2225
  %v2228 = vadd.f32 %v2224, %v2226
  %v2229 = vtanh.pop %v2227
  %v2230 = vtanh.pop %v2228
  %v2231 = vmul.f32 %v512, %v2229
  %v2232 = vmul.f32 %v517, %v2230
  %v2233 = vmul.f32 %v2184, 0.4
  %v2234 = vmul.f32 %v2185, 0.4
  %v2235 = vadd.f32 %v2231, %v2233
  %v2236 = vadd.f32 %v2232, %v2234
  %v2237 = vtanh.pop %v2235
  %v2238 = vtanh.pop %v2236
  %v2239 = vmul.f32 %v527, %v2237
  %v2240 = vmul.f32 %v532, %v2238
  %v2241 = vmul.f32 %v2192, 0.4
  %v2242 = vmul.f32 %v2193, 0.4
  %v2243 = vadd.f32 %v2239, %v2241
  %v2244 = vadd.f32 %v2240, %v2242
  %v2245 = vtanh.pop %v2243
  %v2246 = vtanh.pop %v2244
  %v2247 = vld [vmem:[#allocation2 + $0x20] sm:$0x1]
  %v2248 = vlaneseq
  %v2249 = vshrl.u32 %v2248, 7
  %v2250 = vsub.s32 0, %v2249
  %v2251 = vrot.slane %v2247, %v2250
  %v2252 = vmul.f32 %v452, %v2251
  %v2253 = vmul.f32 %v457, %v2251
  %v2254 = vmul.f32 %v2205, 0.4
  %v2255 = vmul.f32 %v2206, 0.4
  %v2256 = vadd.f32 %v2252, %v2254
  %v2257 = vadd.f32 %v2253, %v2255
  %v2258 = vtanh.pop %v2256
  %v2259 = vtanh.pop %v2257
  %v2260 = vmul.f32 %v467, %v2258
  %v2261 = vmul.f32 %v472, %v2259
  %v2262 = vmul.f32 %v2213, 0.4
  %v2263 = vmul.f32 %v2214, 0.4
  %v2264 = vadd.f32 %v2260, %v2262
  %v2265 = vadd.f32 %v2261, %v2263
  %v2266 = vtanh.pop %v2264
  %v2267 = vtanh.pop %v2265
  %v2268 = vmul.f32 %v482, %v2266
  %v2269 = vmul.f32 %v487, %v2267
  %v2270 = vmul.f32 %v2221, 0.4
  %v2271 = vmul.f32 %v2222, 0.4
  %v2272 = vadd.f32 %v2268, %v2270
  %v2273 = vadd.f32 %v2269, %v2271
  %v2274 = vtanh.pop %v2272
  %v2275 = vtanh.pop %v2273
  %v2276 = vmul.f32 %v497, %v2274
  %v2277 = vmul.f32 %v502, %v2275
  %v2278 = vmul.f32 %v2229, 0.4
  %v2279 = vmul.f32 %v2230, 0.4
  %v2280 = vadd.f32 %v2276, %v2278
  %v2281 = vadd.f32 %v2277, %v2279
  %v2282 = vtanh.pop %v2280
  %v2283 = vtanh.pop %v2281
  %v2284 = vmul.f32 %v512, %v2282
  %v2285 = vmul.f32 %v517, %v2283
  %v2286 = vmul.f32 %v2237, 0.4
  %v2287 = vmul.f32 %v2238, 0.4
  %v2288 = vadd.f32 %v2284, %v2286
  %v2289 = vadd.f32 %v2285, %v2287
  %v2290 = vtanh.pop %v2288
  %v2291 = vtanh.pop %v2289
  %v2292 = vmul.f32 %v527, %v2290
  %v2293 = vmul.f32 %v532, %v2291
  %v2294 = vmul.f32 %v2245, 0.4
  %v2295 = vmul.f32 %v2246, 0.4
  %v2296 = vadd.f32 %v2292, %v2294
  %v2297 = vadd.f32 %v2293, %v2295
  %v2298 = vtanh.pop %v2296
  %v2299 = vtanh.pop %v2297
  %v2300 = vld [vmem:[#allocation2 + $0x21] sm:$0x1]
  %v2301 = vlaneseq
  %v2302 = vshrl.u32 %v2301, 7
  %v2303 = vsub.s32 0, %v2302
  %v2304 = vrot.slane %v2300, %v2303
  %v2305 = vmul.f32 %v452, %v2304
  %v2306 = vmul.f32 %v457, %v2304
  %v2307 = vmul.f32 %v2258, 0.4
  %v2308 = vmul.f32 %v2259, 0.4
  %v2309 = vadd.f32 %v2305, %v2307
  %v2310 = vadd.f32 %v2306, %v2308
  %v2311 = vtanh.pop %v2309
  %v2312 = vtanh.pop %v2310
  %v2313 = vmul.f32 %v467, %v2311
  %v2314 = vmul.f32 %v472, %v2312
  %v2315 = vmul.f32 %v2266, 0.4
  %v2316 = vmul.f32 %v2267, 0.4
  %v2317 = vadd.f32 %v2313, %v2315
  %v2318 = vadd.f32 %v2314, %v2316
  %v2319 = vtanh.pop %v2317
  %v2320 = vtanh.pop %v2318
  %v2321 = vmul.f32 %v482, %v2319
  %v2322 = vmul.f32 %v487, %v2320
  %v2323 = vmul.f32 %v2274, 0.4
  %v2324 = vmul.f32 %v2275, 0.4
  %v2325 = vadd.f32 %v2321, %v2323
  %v2326 = vadd.f32 %v2322, %v2324
  %v2327 = vtanh.pop %v2325
  %v2328 = vtanh.pop %v2326
  %v2329 = vmul.f32 %v497, %v2327
  %v2330 = vmul.f32 %v502, %v2328
  %v2331 = vmul.f32 %v2282, 0.4
  %v2332 = vmul.f32 %v2283, 0.4
  %v2333 = vadd.f32 %v2329, %v2331
  %v2334 = vadd.f32 %v2330, %v2332
  %v2335 = vtanh.pop %v2333
  %v2336 = vtanh.pop %v2334
  %v2337 = vmul.f32 %v512, %v2335
  %v2338 = vmul.f32 %v517, %v2336
  %v2339 = vmul.f32 %v2290, 0.4
  %v2340 = vmul.f32 %v2291, 0.4
  %v2341 = vadd.f32 %v2337, %v2339
  %v2342 = vadd.f32 %v2338, %v2340
  %v2343 = vtanh.pop %v2341
  %v2344 = vtanh.pop %v2342
  %v2345 = vmul.f32 %v527, %v2343
  %v2346 = vmul.f32 %v532, %v2344
  %v2347 = vmul.f32 %v2298, 0.4
  %v2348 = vmul.f32 %v2299, 0.4
  %v2349 = vadd.f32 %v2345, %v2347
  %v2350 = vadd.f32 %v2346, %v2348
  %v2351 = vtanh.pop %v2349
  %v2352 = vtanh.pop %v2350
  %v2353 = vld [vmem:[#allocation2 + $0x22] sm:$0x1]
  %v2354 = vlaneseq
  %v2355 = vshrl.u32 %v2354, 7
  %v2356 = vsub.s32 0, %v2355
  %v2357 = vrot.slane %v2353, %v2356
  %v2358 = vmul.f32 %v452, %v2357
  %v2359 = vmul.f32 %v457, %v2357
  %v2360 = vmul.f32 %v2311, 0.4
  %v2361 = vmul.f32 %v2312, 0.4
  %v2362 = vadd.f32 %v2358, %v2360
  %v2363 = vadd.f32 %v2359, %v2361
  %v2364 = vtanh.pop %v2362
  %v2365 = vtanh.pop %v2363
  %v2366 = vmul.f32 %v467, %v2364
  %v2367 = vmul.f32 %v472, %v2365
  %v2368 = vmul.f32 %v2319, 0.4
  %v2369 = vmul.f32 %v2320, 0.4
  %v2370 = vadd.f32 %v2366, %v2368
  %v2371 = vadd.f32 %v2367, %v2369
  %v2372 = vtanh.pop %v2370
  %v2373 = vtanh.pop %v2371
  %v2374 = vmul.f32 %v482, %v2372
  %v2375 = vmul.f32 %v487, %v2373
  %v2376 = vmul.f32 %v2327, 0.4
  %v2377 = vmul.f32 %v2328, 0.4
  %v2378 = vadd.f32 %v2374, %v2376
  %v2379 = vadd.f32 %v2375, %v2377
  %v2380 = vtanh.pop %v2378
  %v2381 = vtanh.pop %v2379
  %v2382 = vmul.f32 %v497, %v2380
  %v2383 = vmul.f32 %v502, %v2381
  %v2384 = vmul.f32 %v2335, 0.4
  %v2385 = vmul.f32 %v2336, 0.4
  %v2386 = vadd.f32 %v2382, %v2384
  %v2387 = vadd.f32 %v2383, %v2385
  %v2388 = vtanh.pop %v2386
  %v2389 = vtanh.pop %v2387
  %v2390 = vmul.f32 %v512, %v2388
  %v2391 = vmul.f32 %v517, %v2389
  %v2392 = vmul.f32 %v2343, 0.4
  %v2393 = vmul.f32 %v2344, 0.4
  %v2394 = vadd.f32 %v2390, %v2392
  %v2395 = vadd.f32 %v2391, %v2393
  %v2396 = vtanh.pop %v2394
  %v2397 = vtanh.pop %v2395
  %v2398 = vmul.f32 %v527, %v2396
  %v2399 = vmul.f32 %v532, %v2397
  %v2400 = vmul.f32 %v2351, 0.4
  %v2401 = vmul.f32 %v2352, 0.4
  %v2402 = vadd.f32 %v2398, %v2400
  %v2403 = vadd.f32 %v2399, %v2401
  %v2404 = vtanh.pop %v2402
  %v2405 = vtanh.pop %v2403
  %v2406 = vld [vmem:[#allocation2 + $0x23] sm:$0x1]
  %v2407 = vlaneseq
  %v2408 = vshrl.u32 %v2407, 7
  %v2409 = vsub.s32 0, %v2408
  %v2410 = vrot.slane %v2406, %v2409
  %v2411 = vmul.f32 %v452, %v2410
  %v2412 = vmul.f32 %v457, %v2410
  %v2413 = vmul.f32 %v2364, 0.4
  %v2414 = vmul.f32 %v2365, 0.4
  %v2415 = vadd.f32 %v2411, %v2413
  %v2416 = vadd.f32 %v2412, %v2414
  %v2417 = vtanh.pop %v2415
  %v2418 = vtanh.pop %v2416
  %v2419 = vmul.f32 %v467, %v2417
  %v2420 = vmul.f32 %v472, %v2418
  %v2421 = vmul.f32 %v2372, 0.4
  %v2422 = vmul.f32 %v2373, 0.4
  %v2423 = vadd.f32 %v2419, %v2421
  %v2424 = vadd.f32 %v2420, %v2422
  %v2425 = vtanh.pop %v2423
  %v2426 = vtanh.pop %v2424
  %v2427 = vmul.f32 %v482, %v2425
  %v2428 = vmul.f32 %v487, %v2426
  %v2429 = vmul.f32 %v2380, 0.4
  %v2430 = vmul.f32 %v2381, 0.4
  %v2431 = vadd.f32 %v2427, %v2429
  %v2432 = vadd.f32 %v2428, %v2430
  %v2433 = vtanh.pop %v2431
  %v2434 = vtanh.pop %v2432
  %v2435 = vmul.f32 %v497, %v2433
  %v2436 = vmul.f32 %v502, %v2434
  %v2437 = vmul.f32 %v2388, 0.4
  %v2438 = vmul.f32 %v2389, 0.4
  %v2439 = vadd.f32 %v2435, %v2437
  %v2440 = vadd.f32 %v2436, %v2438
  %v2441 = vtanh.pop %v2439
  %v2442 = vtanh.pop %v2440
  %v2443 = vmul.f32 %v512, %v2441
  %v2444 = vmul.f32 %v517, %v2442
  %v2445 = vmul.f32 %v2396, 0.4
  %v2446 = vmul.f32 %v2397, 0.4
  %v2447 = vadd.f32 %v2443, %v2445
  %v2448 = vadd.f32 %v2444, %v2446
  %v2449 = vtanh.pop %v2447
  %v2450 = vtanh.pop %v2448
  %v2451 = vmul.f32 %v527, %v2449
  %v2452 = vmul.f32 %v532, %v2450
  %v2453 = vmul.f32 %v2404, 0.4
  %v2454 = vmul.f32 %v2405, 0.4
  %v2455 = vadd.f32 %v2451, %v2453
  %v2456 = vadd.f32 %v2452, %v2454
  %v2457 = vtanh.pop %v2455
  %v2458 = vtanh.pop %v2456
  %v2459 = vld [vmem:[#allocation2 + $0x24] sm:$0x1]
  %v2460 = vlaneseq
  %v2461 = vshrl.u32 %v2460, 7
  %v2462 = vsub.s32 0, %v2461
  %v2463 = vrot.slane %v2459, %v2462
  %v2464 = vmul.f32 %v452, %v2463
  %v2465 = vmul.f32 %v457, %v2463
  %v2466 = vmul.f32 %v2417, 0.4
  %v2467 = vmul.f32 %v2418, 0.4
  %v2468 = vadd.f32 %v2464, %v2466
  %v2469 = vadd.f32 %v2465, %v2467
  %v2470 = vtanh.pop %v2468
  %v2471 = vtanh.pop %v2469
  %v2472 = vmul.f32 %v467, %v2470
  %v2473 = vmul.f32 %v472, %v2471
  %v2474 = vmul.f32 %v2425, 0.4
  %v2475 = vmul.f32 %v2426, 0.4
  %v2476 = vadd.f32 %v2472, %v2474
  %v2477 = vadd.f32 %v2473, %v2475
  %v2478 = vtanh.pop %v2476
  %v2479 = vtanh.pop %v2477
  %v2480 = vmul.f32 %v482, %v2478
  %v2481 = vmul.f32 %v487, %v2479
  %v2482 = vmul.f32 %v2433, 0.4
  %v2483 = vmul.f32 %v2434, 0.4
  %v2484 = vadd.f32 %v2480, %v2482
  %v2485 = vadd.f32 %v2481, %v2483
  %v2486 = vtanh.pop %v2484
  %v2487 = vtanh.pop %v2485
  %v2488 = vmul.f32 %v497, %v2486
  %v2489 = vmul.f32 %v502, %v2487
  %v2490 = vmul.f32 %v2441, 0.4
  %v2491 = vmul.f32 %v2442, 0.4
  %v2492 = vadd.f32 %v2488, %v2490
  %v2493 = vadd.f32 %v2489, %v2491
  %v2494 = vtanh.pop %v2492
  %v2495 = vtanh.pop %v2493
  %v2496 = vmul.f32 %v512, %v2494
  %v2497 = vmul.f32 %v517, %v2495
  %v2498 = vmul.f32 %v2449, 0.4
  %v2499 = vmul.f32 %v2450, 0.4
  %v2500 = vadd.f32 %v2496, %v2498
  %v2501 = vadd.f32 %v2497, %v2499
  %v2502 = vtanh.pop %v2500
  %v2503 = vtanh.pop %v2501
  %v2504 = vmul.f32 %v527, %v2502
  %v2505 = vmul.f32 %v532, %v2503
  %v2506 = vmul.f32 %v2457, 0.4
  %v2507 = vmul.f32 %v2458, 0.4
  %v2508 = vadd.f32 %v2504, %v2506
  %v2509 = vadd.f32 %v2505, %v2507
  %v2510 = vtanh.pop %v2508
  %v2511 = vtanh.pop %v2509
  %v2512 = vld [vmem:[#allocation2 + $0x25] sm:$0x1]
  %v2513 = vlaneseq
  %v2514 = vshrl.u32 %v2513, 7
  %v2515 = vsub.s32 0, %v2514
  %v2516 = vrot.slane %v2512, %v2515
  %v2517 = vmul.f32 %v452, %v2516
  %v2518 = vmul.f32 %v457, %v2516
  %v2519 = vmul.f32 %v2470, 0.4
  %v2520 = vmul.f32 %v2471, 0.4
  %v2521 = vadd.f32 %v2517, %v2519
  %v2522 = vadd.f32 %v2518, %v2520
  %v2523 = vtanh.pop %v2521
  %v2524 = vtanh.pop %v2522
  %v2525 = vmul.f32 %v467, %v2523
  %v2526 = vmul.f32 %v472, %v2524
  %v2527 = vmul.f32 %v2478, 0.4
  %v2528 = vmul.f32 %v2479, 0.4
  %v2529 = vadd.f32 %v2525, %v2527
  %v2530 = vadd.f32 %v2526, %v2528
  %v2531 = vtanh.pop %v2529
  %v2532 = vtanh.pop %v2530
  %v2533 = vmul.f32 %v482, %v2531
  %v2534 = vmul.f32 %v487, %v2532
  %v2535 = vmul.f32 %v2486, 0.4
  %v2536 = vmul.f32 %v2487, 0.4
  %v2537 = vadd.f32 %v2533, %v2535
  %v2538 = vadd.f32 %v2534, %v2536
  %v2539 = vtanh.pop %v2537
  %v2540 = vtanh.pop %v2538
  %v2541 = vmul.f32 %v497, %v2539
  %v2542 = vmul.f32 %v502, %v2540
  %v2543 = vmul.f32 %v2494, 0.4
  %v2544 = vmul.f32 %v2495, 0.4
  %v2545 = vadd.f32 %v2541, %v2543
  %v2546 = vadd.f32 %v2542, %v2544
  %v2547 = vtanh.pop %v2545
  %v2548 = vtanh.pop %v2546
  %v2549 = vmul.f32 %v512, %v2547
  %v2550 = vmul.f32 %v517, %v2548
  %v2551 = vmul.f32 %v2502, 0.4
  %v2552 = vmul.f32 %v2503, 0.4
  %v2553 = vadd.f32 %v2549, %v2551
  %v2554 = vadd.f32 %v2550, %v2552
  %v2555 = vtanh.pop %v2553
  %v2556 = vtanh.pop %v2554
  %v2557 = vmul.f32 %v527, %v2555
  %v2558 = vmul.f32 %v532, %v2556
  %v2559 = vmul.f32 %v2510, 0.4
  %v2560 = vmul.f32 %v2511, 0.4
  %v2561 = vadd.f32 %v2557, %v2559
  %v2562 = vadd.f32 %v2558, %v2560
  %v2563 = vtanh.pop %v2561
  %v2564 = vtanh.pop %v2562
  %v2565 = vld [vmem:[#allocation2 + $0x26] sm:$0x1]
  %v2566 = vlaneseq
  %v2567 = vshrl.u32 %v2566, 7
  %v2568 = vsub.s32 0, %v2567
  %v2569 = vrot.slane %v2565, %v2568
  %v2570 = vmul.f32 %v452, %v2569
  %v2571 = vmul.f32 %v457, %v2569
  %v2572 = vmul.f32 %v2523, 0.4
  %v2573 = vmul.f32 %v2524, 0.4
  %v2574 = vadd.f32 %v2570, %v2572
  %v2575 = vadd.f32 %v2571, %v2573
  %v2576 = vtanh.pop %v2574
  %v2577 = vtanh.pop %v2575
  %v2578 = vmul.f32 %v467, %v2576
  %v2579 = vmul.f32 %v472, %v2577
  %v2580 = vmul.f32 %v2531, 0.4
  %v2581 = vmul.f32 %v2532, 0.4
  %v2582 = vadd.f32 %v2578, %v2580
  %v2583 = vadd.f32 %v2579, %v2581
  %v2584 = vtanh.pop %v2582
  %v2585 = vtanh.pop %v2583
  %v2586 = vmul.f32 %v482, %v2584
  %v2587 = vmul.f32 %v487, %v2585
  %v2588 = vmul.f32 %v2539, 0.4
  %v2589 = vmul.f32 %v2540, 0.4
  %v2590 = vadd.f32 %v2586, %v2588
  %v2591 = vadd.f32 %v2587, %v2589
  %v2592 = vtanh.pop %v2590
  %v2593 = vtanh.pop %v2591
  %v2594 = vmul.f32 %v497, %v2592
  %v2595 = vmul.f32 %v502, %v2593
  %v2596 = vmul.f32 %v2547, 0.4
  %v2597 = vmul.f32 %v2548, 0.4
  %v2598 = vadd.f32 %v2594, %v2596
  %v2599 = vadd.f32 %v2595, %v2597
  %v2600 = vtanh.pop %v2598
  %v2601 = vtanh.pop %v2599
  %v2602 = vmul.f32 %v512, %v2600
  %v2603 = vmul.f32 %v517, %v2601
  %v2604 = vmul.f32 %v2555, 0.4
  %v2605 = vmul.f32 %v2556, 0.4
  %v2606 = vadd.f32 %v2602, %v2604
  %v2607 = vadd.f32 %v2603, %v2605
  %v2608 = vtanh.pop %v2606
  %v2609 = vtanh.pop %v2607
  %v2610 = vmul.f32 %v527, %v2608
  %v2611 = vmul.f32 %v532, %v2609
  %v2612 = vmul.f32 %v2563, 0.4
  %v2613 = vmul.f32 %v2564, 0.4
  %v2614 = vadd.f32 %v2610, %v2612
  %v2615 = vadd.f32 %v2611, %v2613
  %v2616 = vtanh.pop %v2614
  %v2617 = vtanh.pop %v2615
  %v2618 = vld [vmem:[#allocation2 + $0x27] sm:$0x1]
  %v2619 = vlaneseq
  %v2620 = vshrl.u32 %v2619, 7
  %v2621 = vsub.s32 0, %v2620
  %v2622 = vrot.slane %v2618, %v2621
  %v2623 = vmul.f32 %v452, %v2622
  %v2624 = vmul.f32 %v457, %v2622
  %v2625 = vmul.f32 %v2576, 0.4
  %v2626 = vmul.f32 %v2577, 0.4
  %v2627 = vadd.f32 %v2623, %v2625
  %v2628 = vadd.f32 %v2624, %v2626
  %v2629 = vtanh.pop %v2627
  %v2630 = vtanh.pop %v2628
  %v2631 = vmul.f32 %v467, %v2629
  %v2632 = vmul.f32 %v472, %v2630
  %v2633 = vmul.f32 %v2584, 0.4
  %v2634 = vmul.f32 %v2585, 0.4
  %v2635 = vadd.f32 %v2631, %v2633
  %v2636 = vadd.f32 %v2632, %v2634
  %v2637 = vtanh.pop %v2635
  %v2638 = vtanh.pop %v2636
  %v2639 = vmul.f32 %v482, %v2637
  %v2640 = vmul.f32 %v487, %v2638
  %v2641 = vmul.f32 %v2592, 0.4
  %v2642 = vmul.f32 %v2593, 0.4
  %v2643 = vadd.f32 %v2639, %v2641
  %v2644 = vadd.f32 %v2640, %v2642
  %v2645 = vtanh.pop %v2643
  %v2646 = vtanh.pop %v2644
  %v2647 = vmul.f32 %v497, %v2645
  %v2648 = vmul.f32 %v502, %v2646
  %v2649 = vmul.f32 %v2600, 0.4
  %v2650 = vmul.f32 %v2601, 0.4
  %v2651 = vadd.f32 %v2647, %v2649
  %v2652 = vadd.f32 %v2648, %v2650
  %v2653 = vtanh.pop %v2651
  %v2654 = vtanh.pop %v2652
  %v2655 = vmul.f32 %v512, %v2653
  %v2656 = vmul.f32 %v517, %v2654
  %v2657 = vmul.f32 %v2608, 0.4
  %v2658 = vmul.f32 %v2609, 0.4
  %v2659 = vadd.f32 %v2655, %v2657
  %v2660 = vadd.f32 %v2656, %v2658
  %v2661 = vtanh.pop %v2659
  %v2662 = vtanh.pop %v2660
  %v2663 = vmul.f32 %v527, %v2661
  %v2664 = vmul.f32 %v532, %v2662
  %v2665 = vmul.f32 %v2616, 0.4
  %v2666 = vmul.f32 %v2617, 0.4
  %v2667 = vadd.f32 %v2663, %v2665
  %v2668 = vadd.f32 %v2664, %v2666
  %v2669 = vtanh.pop %v2667
  %v2670 = vtanh.pop %v2668
  %v2671 = vld [vmem:[#allocation2 + $0x28] sm:$0x1]
  %v2672 = vlaneseq
  %v2673 = vshrl.u32 %v2672, 7
  %v2674 = vsub.s32 0, %v2673
  %v2675 = vrot.slane %v2671, %v2674
  %v2676 = vmul.f32 %v452, %v2675
  %v2677 = vmul.f32 %v457, %v2675
  %v2678 = vmul.f32 %v2629, 0.4
  %v2679 = vmul.f32 %v2630, 0.4
  %v2680 = vadd.f32 %v2676, %v2678
  %v2681 = vadd.f32 %v2677, %v2679
  %v2682 = vtanh.pop %v2680
  %v2683 = vtanh.pop %v2681
  %v2684 = vmul.f32 %v467, %v2682
  %v2685 = vmul.f32 %v472, %v2683
  %v2686 = vmul.f32 %v2637, 0.4
  %v2687 = vmul.f32 %v2638, 0.4
  %v2688 = vadd.f32 %v2684, %v2686
  %v2689 = vadd.f32 %v2685, %v2687
  %v2690 = vtanh.pop %v2688
  %v2691 = vtanh.pop %v2689
  %v2692 = vmul.f32 %v482, %v2690
  %v2693 = vmul.f32 %v487, %v2691
  %v2694 = vmul.f32 %v2645, 0.4
  %v2695 = vmul.f32 %v2646, 0.4
  %v2696 = vadd.f32 %v2692, %v2694
  %v2697 = vadd.f32 %v2693, %v2695
  %v2698 = vtanh.pop %v2696
  %v2699 = vtanh.pop %v2697
  %v2700 = vmul.f32 %v497, %v2698
  %v2701 = vmul.f32 %v502, %v2699
  %v2702 = vmul.f32 %v2653, 0.4
  %v2703 = vmul.f32 %v2654, 0.4
  %v2704 = vadd.f32 %v2700, %v2702
  %v2705 = vadd.f32 %v2701, %v2703
  %v2706 = vtanh.pop %v2704
  %v2707 = vtanh.pop %v2705
  %v2708 = vmul.f32 %v512, %v2706
  %v2709 = vmul.f32 %v517, %v2707
  %v2710 = vmul.f32 %v2661, 0.4
  %v2711 = vmul.f32 %v2662, 0.4
  %v2712 = vadd.f32 %v2708, %v2710
  %v2713 = vadd.f32 %v2709, %v2711
  %v2714 = vtanh.pop %v2712
  %v2715 = vtanh.pop %v2713
  %v2716 = vmul.f32 %v527, %v2714
  %v2717 = vmul.f32 %v532, %v2715
  %v2718 = vmul.f32 %v2669, 0.4
  %v2719 = vmul.f32 %v2670, 0.4
  %v2720 = vadd.f32 %v2716, %v2718
  %v2721 = vadd.f32 %v2717, %v2719
  %v2722 = vtanh.pop %v2720
  %v2723 = vtanh.pop %v2721
  %v2724 = vld [vmem:[#allocation2 + $0x29] sm:$0x1]
  %v2725 = vlaneseq
  %v2726 = vshrl.u32 %v2725, 7
  %v2727 = vsub.s32 0, %v2726
  %v2728 = vrot.slane %v2724, %v2727
  %v2729 = vmul.f32 %v452, %v2728
  %v2730 = vmul.f32 %v457, %v2728
  %v2731 = vmul.f32 %v2682, 0.4
  %v2732 = vmul.f32 %v2683, 0.4
  %v2733 = vadd.f32 %v2729, %v2731
  %v2734 = vadd.f32 %v2730, %v2732
  %v2735 = vtanh.pop %v2733
  %v2736 = vtanh.pop %v2734
  %v2737 = vmul.f32 %v467, %v2735
  %v2738 = vmul.f32 %v472, %v2736
  %v2739 = vmul.f32 %v2690, 0.4
  %v2740 = vmul.f32 %v2691, 0.4
  %v2741 = vadd.f32 %v2737, %v2739
  %v2742 = vadd.f32 %v2738, %v2740
  %v2743 = vtanh.pop %v2741
  %v2744 = vtanh.pop %v2742
  %v2745 = vmul.f32 %v482, %v2743
  %v2746 = vmul.f32 %v487, %v2744
  %v2747 = vmul.f32 %v2698, 0.4
  %v2748 = vmul.f32 %v2699, 0.4
  %v2749 = vadd.f32 %v2745, %v2747
  %v2750 = vadd.f32 %v2746, %v2748
  %v2751 = vtanh.pop %v2749
  %v2752 = vtanh.pop %v2750
  %v2753 = vmul.f32 %v497, %v2751
  %v2754 = vmul.f32 %v502, %v2752
  %v2755 = vmul.f32 %v2706, 0.4
  %v2756 = vmul.f32 %v2707, 0.4
  %v2757 = vadd.f32 %v2753, %v2755
  %v2758 = vadd.f32 %v2754, %v2756
  %v2759 = vtanh.pop %v2757
  %v2760 = vtanh.pop %v2758
  %v2761 = vmul.f32 %v512, %v2759
  %v2762 = vmul.f32 %v517, %v2760
  %v2763 = vmul.f32 %v2714, 0.4
  %v2764 = vmul.f32 %v2715, 0.4
  %v2765 = vadd.f32 %v2761, %v2763
  %v2766 = vadd.f32 %v2762, %v2764
  %v2767 = vtanh.pop %v2765
  %v2768 = vtanh.pop %v2766
  %v2769 = vmul.f32 %v527, %v2767
  %v2770 = vmul.f32 %v532, %v2768
  %v2771 = vmul.f32 %v2722, 0.4
  %v2772 = vmul.f32 %v2723, 0.4
  %v2773 = vadd.f32 %v2769, %v2771
  %v2774 = vadd.f32 %v2770, %v2772
  %v2775 = vtanh.pop %v2773
  %v2776 = vtanh.pop %v2774
  %v2777 = vld [vmem:[#allocation2 + $0x2a] sm:$0x1]
  %v2778 = vlaneseq
  %v2779 = vshrl.u32 %v2778, 7
  %v2780 = vsub.s32 0, %v2779
  %v2781 = vrot.slane %v2777, %v2780
  %v2782 = vmul.f32 %v452, %v2781
  %v2783 = vmul.f32 %v457, %v2781
  %v2784 = vmul.f32 %v2735, 0.4
  %v2785 = vmul.f32 %v2736, 0.4
  %v2786 = vadd.f32 %v2782, %v2784
  %v2787 = vadd.f32 %v2783, %v2785
  %v2788 = vtanh.pop %v2786
  %v2789 = vtanh.pop %v2787
  %v2790 = vmul.f32 %v467, %v2788
  %v2791 = vmul.f32 %v472, %v2789
  %v2792 = vmul.f32 %v2743, 0.4
  %v2793 = vmul.f32 %v2744, 0.4
  %v2794 = vadd.f32 %v2790, %v2792
  %v2795 = vadd.f32 %v2791, %v2793
  %v2796 = vtanh.pop %v2794
  %v2797 = vtanh.pop %v2795
  %v2798 = vmul.f32 %v482, %v2796
  %v2799 = vmul.f32 %v487, %v2797
  %v2800 = vmul.f32 %v2751, 0.4
  %v2801 = vmul.f32 %v2752, 0.4
  %v2802 = vadd.f32 %v2798, %v2800
  %v2803 = vadd.f32 %v2799, %v2801
  %v2804 = vtanh.pop %v2802
  %v2805 = vtanh.pop %v2803
  %v2806 = vmul.f32 %v497, %v2804
  %v2807 = vmul.f32 %v502, %v2805
  %v2808 = vmul.f32 %v2759, 0.4
  %v2809 = vmul.f32 %v2760, 0.4
  %v2810 = vadd.f32 %v2806, %v2808
  %v2811 = vadd.f32 %v2807, %v2809
  %v2812 = vtanh.pop %v2810
  %v2813 = vtanh.pop %v2811
  %v2814 = vmul.f32 %v512, %v2812
  %v2815 = vmul.f32 %v517, %v2813
  %v2816 = vmul.f32 %v2767, 0.4
  %v2817 = vmul.f32 %v2768, 0.4
  %v2818 = vadd.f32 %v2814, %v2816
  %v2819 = vadd.f32 %v2815, %v2817
  %v2820 = vtanh.pop %v2818
  %v2821 = vtanh.pop %v2819
  %v2822 = vmul.f32 %v527, %v2820
  %v2823 = vmul.f32 %v532, %v2821
  %v2824 = vmul.f32 %v2775, 0.4
  %v2825 = vmul.f32 %v2776, 0.4
  %v2826 = vadd.f32 %v2822, %v2824
  %v2827 = vadd.f32 %v2823, %v2825
  %v2828 = vtanh.pop %v2826
  %v2829 = vtanh.pop %v2827
  %v2830 = vld [vmem:[#allocation2 + $0x2b] sm:$0x1]
  %v2831 = vlaneseq
  %v2832 = vshrl.u32 %v2831, 7
  %v2833 = vsub.s32 0, %v2832
  %v2834 = vrot.slane %v2830, %v2833
  %v2835 = vmul.f32 %v452, %v2834
  %v2836 = vmul.f32 %v457, %v2834
  %v2837 = vmul.f32 %v2788, 0.4
  %v2838 = vmul.f32 %v2789, 0.4
  %v2839 = vadd.f32 %v2835, %v2837
  %v2840 = vadd.f32 %v2836, %v2838
  %v2841 = vtanh.pop %v2839
  %v2842 = vtanh.pop %v2840
  %v2843 = vmul.f32 %v467, %v2841
  %v2844 = vmul.f32 %v472, %v2842
  %v2845 = vmul.f32 %v2796, 0.4
  %v2846 = vmul.f32 %v2797, 0.4
  %v2847 = vadd.f32 %v2843, %v2845
  %v2848 = vadd.f32 %v2844, %v2846
  %v2849 = vtanh.pop %v2847
  %v2850 = vtanh.pop %v2848
  %v2851 = vmul.f32 %v482, %v2849
  %v2852 = vmul.f32 %v487, %v2850
  %v2853 = vmul.f32 %v2804, 0.4
  %v2854 = vmul.f32 %v2805, 0.4
  %v2855 = vadd.f32 %v2851, %v2853
  %v2856 = vadd.f32 %v2852, %v2854
  %v2857 = vtanh.pop %v2855
  %v2858 = vtanh.pop %v2856
  %v2859 = vmul.f32 %v497, %v2857
  %v2860 = vmul.f32 %v502, %v2858
  %v2861 = vmul.f32 %v2812, 0.4
  %v2862 = vmul.f32 %v2813, 0.4
  %v2863 = vadd.f32 %v2859, %v2861
  %v2864 = vadd.f32 %v2860, %v2862
  %v2865 = vtanh.pop %v2863
  %v2866 = vtanh.pop %v2864
  %v2867 = vmul.f32 %v512, %v2865
  %v2868 = vmul.f32 %v517, %v2866
  %v2869 = vmul.f32 %v2820, 0.4
  %v2870 = vmul.f32 %v2821, 0.4
  %v2871 = vadd.f32 %v2867, %v2869
  %v2872 = vadd.f32 %v2868, %v2870
  %v2873 = vtanh.pop %v2871
  %v2874 = vtanh.pop %v2872
  %v2875 = vmul.f32 %v527, %v2873
  %v2876 = vmul.f32 %v532, %v2874
  %v2877 = vmul.f32 %v2828, 0.4
  %v2878 = vmul.f32 %v2829, 0.4
  %v2879 = vadd.f32 %v2875, %v2877
  %v2880 = vadd.f32 %v2876, %v2878
  %v2881 = vtanh.pop %v2879
  %v2882 = vtanh.pop %v2880
  %v2883 = vld [vmem:[#allocation2 + $0x2c] sm:$0x1]
  %v2884 = vlaneseq
  %v2885 = vshrl.u32 %v2884, 7
  %v2886 = vsub.s32 0, %v2885
  %v2887 = vrot.slane %v2883, %v2886
  %v2888 = vmul.f32 %v452, %v2887
  %v2889 = vmul.f32 %v457, %v2887
  %v2890 = vmul.f32 %v2841, 0.4
  %v2891 = vmul.f32 %v2842, 0.4
  %v2892 = vadd.f32 %v2888, %v2890
  %v2893 = vadd.f32 %v2889, %v2891
  %v2894 = vtanh.pop %v2892
  %v2895 = vtanh.pop %v2893
  %v2896 = vmul.f32 %v467, %v2894
  %v2897 = vmul.f32 %v472, %v2895
  %v2898 = vmul.f32 %v2849, 0.4
  %v2899 = vmul.f32 %v2850, 0.4
  %v2900 = vadd.f32 %v2896, %v2898
  %v2901 = vadd.f32 %v2897, %v2899
  %v2902 = vtanh.pop %v2900
  %v2903 = vtanh.pop %v2901
  %v2904 = vmul.f32 %v482, %v2902
  %v2905 = vmul.f32 %v487, %v2903
  %v2906 = vmul.f32 %v2857, 0.4
  %v2907 = vmul.f32 %v2858, 0.4
  %v2908 = vadd.f32 %v2904, %v2906
  %v2909 = vadd.f32 %v2905, %v2907
  %v2910 = vtanh.pop %v2908
  %v2911 = vtanh.pop %v2909
  %v2912 = vmul.f32 %v497, %v2910
  %v2913 = vmul.f32 %v502, %v2911
  %v2914 = vmul.f32 %v2865, 0.4
  %v2915 = vmul.f32 %v2866, 0.4
  %v2916 = vadd.f32 %v2912, %v2914
  %v2917 = vadd.f32 %v2913, %v2915
  %v2918 = vtanh.pop %v2916
  %v2919 = vtanh.pop %v2917
  %v2920 = vmul.f32 %v512, %v2918
  %v2921 = vmul.f32 %v517, %v2919
  %v2922 = vmul.f32 %v2873, 0.4
  %v2923 = vmul.f32 %v2874, 0.4
  %v2924 = vadd.f32 %v2920, %v2922
  %v2925 = vadd.f32 %v2921, %v2923
  %v2926 = vtanh.pop %v2924
  %v2927 = vtanh.pop %v2925
  %v2928 = vmul.f32 %v527, %v2926
  %v2929 = vmul.f32 %v532, %v2927
  %v2930 = vmul.f32 %v2881, 0.4
  %v2931 = vmul.f32 %v2882, 0.4
  %v2932 = vadd.f32 %v2928, %v2930
  %v2933 = vadd.f32 %v2929, %v2931
  %v2934 = vtanh.pop %v2932
  %v2935 = vtanh.pop %v2933
  %v2936 = vld [vmem:[#allocation2 + $0x2d] sm:$0x1]
  %v2937 = vlaneseq
  %v2938 = vshrl.u32 %v2937, 7
  %v2939 = vsub.s32 0, %v2938
  %v2940 = vrot.slane %v2936, %v2939
  %v2941 = vmul.f32 %v452, %v2940
  %v2942 = vmul.f32 %v457, %v2940
  %v2943 = vmul.f32 %v2894, 0.4
  %v2944 = vmul.f32 %v2895, 0.4
  %v2945 = vadd.f32 %v2941, %v2943
  %v2946 = vadd.f32 %v2942, %v2944
  %v2947 = vtanh.pop %v2945
  %v2948 = vtanh.pop %v2946
  %v2949 = vmul.f32 %v467, %v2947
  %v2950 = vmul.f32 %v472, %v2948
  %v2951 = vmul.f32 %v2902, 0.4
  %v2952 = vmul.f32 %v2903, 0.4
  %v2953 = vadd.f32 %v2949, %v2951
  %v2954 = vadd.f32 %v2950, %v2952
  %v2955 = vtanh.pop %v2953
  %v2956 = vtanh.pop %v2954
  %v2957 = vmul.f32 %v482, %v2955
  %v2958 = vmul.f32 %v487, %v2956
  %v2959 = vmul.f32 %v2910, 0.4
  %v2960 = vmul.f32 %v2911, 0.4
  %v2961 = vadd.f32 %v2957, %v2959
  %v2962 = vadd.f32 %v2958, %v2960
  %v2963 = vtanh.pop %v2961
  %v2964 = vtanh.pop %v2962
  %v2965 = vmul.f32 %v497, %v2963
  %v2966 = vmul.f32 %v502, %v2964
  %v2967 = vmul.f32 %v2918, 0.4
  %v2968 = vmul.f32 %v2919, 0.4
  %v2969 = vadd.f32 %v2965, %v2967
  %v2970 = vadd.f32 %v2966, %v2968
  %v2971 = vtanh.pop %v2969
  %v2972 = vtanh.pop %v2970
  %v2973 = vmul.f32 %v512, %v2971
  %v2974 = vmul.f32 %v517, %v2972
  %v2975 = vmul.f32 %v2926, 0.4
  %v2976 = vmul.f32 %v2927, 0.4
  %v2977 = vadd.f32 %v2973, %v2975
  %v2978 = vadd.f32 %v2974, %v2976
  %v2979 = vtanh.pop %v2977
  %v2980 = vtanh.pop %v2978
  %v2981 = vmul.f32 %v527, %v2979
  %v2982 = vmul.f32 %v532, %v2980
  %v2983 = vmul.f32 %v2934, 0.4
  %v2984 = vmul.f32 %v2935, 0.4
  %v2985 = vadd.f32 %v2981, %v2983
  %v2986 = vadd.f32 %v2982, %v2984
  %v2987 = vtanh.pop %v2985
  %v2988 = vtanh.pop %v2986
  %v2989 = vld [vmem:[#allocation2 + $0x2e] sm:$0x1]
  %v2990 = vlaneseq
  %v2991 = vshrl.u32 %v2990, 7
  %v2992 = vsub.s32 0, %v2991
  %v2993 = vrot.slane %v2989, %v2992
  %v2994 = vmul.f32 %v452, %v2993
  %v2995 = vmul.f32 %v457, %v2993
  %v2996 = vmul.f32 %v2947, 0.4
  %v2997 = vmul.f32 %v2948, 0.4
  %v2998 = vadd.f32 %v2994, %v2996
  %v2999 = vadd.f32 %v2995, %v2997
  %v3000 = vtanh.pop %v2998
  %v3001 = vtanh.pop %v2999
  %v3002 = vmul.f32 %v467, %v3000
  %v3003 = vmul.f32 %v472, %v3001
  %v3004 = vmul.f32 %v2955, 0.4
  %v3005 = vmul.f32 %v2956, 0.4
  %v3006 = vadd.f32 %v3002, %v3004
  %v3007 = vadd.f32 %v3003, %v3005
  %v3008 = vtanh.pop %v3006
  %v3009 = vtanh.pop %v3007
  %v3010 = vmul.f32 %v482, %v3008
  %v3011 = vmul.f32 %v487, %v3009
  %v3012 = vmul.f32 %v2963, 0.4
  %v3013 = vmul.f32 %v2964, 0.4
  %v3014 = vadd.f32 %v3010, %v3012
  %v3015 = vadd.f32 %v3011, %v3013
  %v3016 = vtanh.pop %v3014
  %v3017 = vtanh.pop %v3015
  %v3018 = vmul.f32 %v497, %v3016
  %v3019 = vmul.f32 %v502, %v3017
  %v3020 = vmul.f32 %v2971, 0.4
  %v3021 = vmul.f32 %v2972, 0.4
  %v3022 = vadd.f32 %v3018, %v3020
  %v3023 = vadd.f32 %v3019, %v3021
  %v3024 = vtanh.pop %v3022
  %v3025 = vtanh.pop %v3023
  %v3026 = vmul.f32 %v512, %v3024
  %v3027 = vmul.f32 %v517, %v3025
  %v3028 = vmul.f32 %v2979, 0.4
  %v3029 = vmul.f32 %v2980, 0.4
  %v3030 = vadd.f32 %v3026, %v3028
  %v3031 = vadd.f32 %v3027, %v3029
  %v3032 = vtanh.pop %v3030
  %v3033 = vtanh.pop %v3031
  %v3034 = vmul.f32 %v527, %v3032
  %v3035 = vmul.f32 %v532, %v3033
  %v3036 = vmul.f32 %v2987, 0.4
  %v3037 = vmul.f32 %v2988, 0.4
  %v3038 = vadd.f32 %v3034, %v3036
  %v3039 = vadd.f32 %v3035, %v3037
  %v3040 = vtanh.pop %v3038
  %v3041 = vtanh.pop %v3039
  %v3042 = vld [vmem:[#allocation2 + $0x2f] sm:$0x1]
  %v3043 = vlaneseq
  %v3044 = vshrl.u32 %v3043, 7
  %v3045 = vsub.s32 0, %v3044
  %v3046 = vrot.slane %v3042, %v3045
  %v3047 = vmul.f32 %v452, %v3046
  %v3048 = vmul.f32 %v457, %v3046
  %v3049 = vmul.f32 %v3000, 0.4
  %v3050 = vmul.f32 %v3001, 0.4
  %v3051 = vadd.f32 %v3047, %v3049
  %v3052 = vadd.f32 %v3048, %v3050
  %v3053 = vtanh.pop %v3051
  %v3054 = vtanh.pop %v3052
  %v3055 = vmul.f32 %v467, %v3053
  %v3056 = vmul.f32 %v472, %v3054
  %v3057 = vmul.f32 %v3008, 0.4
  %v3058 = vmul.f32 %v3009, 0.4
  %v3059 = vadd.f32 %v3055, %v3057
  %v3060 = vadd.f32 %v3056, %v3058
  %v3061 = vtanh.pop %v3059
  %v3062 = vtanh.pop %v3060
  %v3063 = vmul.f32 %v482, %v3061
  %v3064 = vmul.f32 %v487, %v3062
  %v3065 = vmul.f32 %v3016, 0.4
  %v3066 = vmul.f32 %v3017, 0.4
  %v3067 = vadd.f32 %v3063, %v3065
  %v3068 = vadd.f32 %v3064, %v3066
  %v3069 = vtanh.pop %v3067
  %v3070 = vtanh.pop %v3068
  %v3071 = vmul.f32 %v497, %v3069
  %v3072 = vmul.f32 %v502, %v3070
  %v3073 = vmul.f32 %v3024, 0.4
  %v3074 = vmul.f32 %v3025, 0.4
  %v3075 = vadd.f32 %v3071, %v3073
  %v3076 = vadd.f32 %v3072, %v3074
  %v3077 = vtanh.pop %v3075
  %v3078 = vtanh.pop %v3076
  %v3079 = vmul.f32 %v512, %v3077
  %v3080 = vmul.f32 %v517, %v3078
  %v3081 = vmul.f32 %v3032, 0.4
  %v3082 = vmul.f32 %v3033, 0.4
  %v3083 = vadd.f32 %v3079, %v3081
  %v3084 = vadd.f32 %v3080, %v3082
  %v3085 = vtanh.pop %v3083
  %v3086 = vtanh.pop %v3084
  %v3087 = vmul.f32 %v527, %v3085
  %v3088 = vmul.f32 %v532, %v3086
  %v3089 = vmul.f32 %v3040, 0.4
  %v3090 = vmul.f32 %v3041, 0.4
  %v3091 = vadd.f32 %v3087, %v3089
  %v3092 = vadd.f32 %v3088, %v3090
  %v3093 = vtanh.pop %v3091
  %v3094 = vtanh.pop %v3092
  %v3095 = vld [vmem:[#allocation2 + $0x30] sm:$0x1]
  %v3096 = vlaneseq
  %v3097 = vshrl.u32 %v3096, 7
  %v3098 = vsub.s32 0, %v3097
  %v3099 = vrot.slane %v3095, %v3098
  %v3100 = vmul.f32 %v452, %v3099
  %v3101 = vmul.f32 %v457, %v3099
  %v3102 = vmul.f32 %v3053, 0.4
  %v3103 = vmul.f32 %v3054, 0.4
  %v3104 = vadd.f32 %v3100, %v3102
  %v3105 = vadd.f32 %v3101, %v3103
  %v3106 = vtanh.pop %v3104
  %v3107 = vtanh.pop %v3105
  %v3108 = vmul.f32 %v467, %v3106
  %v3109 = vmul.f32 %v472, %v3107
  %v3110 = vmul.f32 %v3061, 0.4
  %v3111 = vmul.f32 %v3062, 0.4
  %v3112 = vadd.f32 %v3108, %v3110
  %v3113 = vadd.f32 %v3109, %v3111
  %v3114 = vtanh.pop %v3112
  %v3115 = vtanh.pop %v3113
  %v3116 = vmul.f32 %v482, %v3114
  %v3117 = vmul.f32 %v487, %v3115
  %v3118 = vmul.f32 %v3069, 0.4
  %v3119 = vmul.f32 %v3070, 0.4
  %v3120 = vadd.f32 %v3116, %v3118
  %v3121 = vadd.f32 %v3117, %v3119
  %v3122 = vtanh.pop %v3120
  %v3123 = vtanh.pop %v3121
  %v3124 = vmul.f32 %v497, %v3122
  %v3125 = vmul.f32 %v502, %v3123
  %v3126 = vmul.f32 %v3077, 0.4
  %v3127 = vmul.f32 %v3078, 0.4
  %v3128 = vadd.f32 %v3124, %v3126
  %v3129 = vadd.f32 %v3125, %v3127
  %v3130 = vtanh.pop %v3128
  %v3131 = vtanh.pop %v3129
  %v3132 = vmul.f32 %v512, %v3130
  %v3133 = vmul.f32 %v517, %v3131
  %v3134 = vmul.f32 %v3085, 0.4
  %v3135 = vmul.f32 %v3086, 0.4
  %v3136 = vadd.f32 %v3132, %v3134
  %v3137 = vadd.f32 %v3133, %v3135
  %v3138 = vtanh.pop %v3136
  %v3139 = vtanh.pop %v3137
  %v3140 = vmul.f32 %v527, %v3138
  %v3141 = vmul.f32 %v532, %v3139
  %v3142 = vmul.f32 %v3093, 0.4
  %v3143 = vmul.f32 %v3094, 0.4
  %v3144 = vadd.f32 %v3140, %v3142
  %v3145 = vadd.f32 %v3141, %v3143
  %v3146 = vtanh.pop %v3144
  %v3147 = vtanh.pop %v3145
  %3148 = vst [vmem:[%s9] sm:$0xff] %v3106
  %3149 = vst [vmem:[%s9 + $0x8] sm:$0x3] %v3107
  %s3150 = scalar_lea.vmem %s9, 16
  %3151 = vst [vmem:[%s3150] sm:$0xff] %v3114
  %3152 = vst [vmem:[%s3150 + $0x8] sm:$0x3] %v3115
  %s3153 = scalar_lea.vmem %s9, 32
  %3154 = vst [vmem:[%s3153] sm:$0xff] %v3122
  %3155 = vst [vmem:[%s3153 + $0x8] sm:$0x3] %v3123
  %s3156 = scalar_lea.vmem %s9, 48
  %3157 = vst [vmem:[%s3156] sm:$0xff] %v3130
  %3158 = vst [vmem:[%s3156 + $0x8] sm:$0x3] %v3131
  %s3159 = scalar_lea.vmem %s9, 64
  %3160 = vst [vmem:[%s3159] sm:$0xff] %v3138
  %3161 = vst [vmem:[%s3159 + $0x8] sm:$0x3] %v3139
  %s3162 = scalar_lea.vmem %s9, 80
  %3163 = vst [vmem:[%s3162] sm:$0xff] %v3146
  %3164 = vst [vmem:[%s3162 + $0x8] sm:$0x3] %v3147
  %v3165 = vld [vmem:[%s5] sm:$0xff]
  %vm3166 = vcmask 80896
  %v3168 = vsel %vm3166, %v3165, 0
  %vm3170 = vcmask 1041408
  %v3172 = vsel %vm3170, %v3147, 0
  %3174 = vmatprep.subr.mxu0 0.0
  %3175 = vmatpush1.msra.mxu0 %v3146
  %3176 = vmatprep.subr.mxu0 0.0
  %3177 = vmatpush1.msra.mxu0 %v3172
  %3178 = vmatprep.subr.mxu0 0.0
  %3179 = vmatpush1.msra.mxu0 0.0
  %3180 = vmatprep.subr.mxu0 0.0
  %3181 = vmatpush1.msra.mxu0 0.0
  %3182 = vmatprep.subr.mxu0 0.0
  %3183 = vmatpush1.msra.mxu0 0.0
  %3184 = vmatprep.subr.mxu0 0.0
  %3185 = vmatpush1.msra.mxu0 0.0
  %3186 = vmatprep.subr.mxu0 0.0
  %3187 = vmatpush1.msra.mxu0 0.0
  %3188 = vmatprep.subr.mxu0 0.0
  %3189 = vmatpush1.msra.mxu0 0.0
  %3190 = vmatprep.subr.mxu0 0.0
  %3191 = vmatpush1.msra.mxu0 0.0
  %3192 = vmatprep.subr.mxu0 0.0
  %3193 = vmatpush1.msra.mxu0 0.0
  %3194 = vmatprep.subr.mxu0 0.0
  %3195 = vmatpush1.msra.mxu0 0.0
  %3196 = vmatprep.subr.mxu0 0.0
  %3197 = vmatpush1.msra.mxu0 0.0
  %3198 = vmatprep.subr.mxu0 0.0
  %3199 = vmatpush1.msra.mxu0 0.0
  %3200 = vmatprep.subr.mxu0 0.0
  %3201 = vmatpush1.msra.mxu0 0.0
  %3202 = vmatprep.subr.mxu0 0.0
  %3203 = vmatpush1.msra.mxu0 0.0
  %3204 = vmatprep.subr.mxu0 0.0
  %3205 = vmatpush1.msra.mxu0 0.0
  %3206 = vmatprep.subr.mxu0 0.0
  %3207 = vmatpush1.msra.mxu0 0.0
  %3208 = vmatprep.subr.mxu0 0.0
  %3209 = vmatpush1.msra.mxu0 0.0
  %3210 = vmatprep.subr.mxu0 0.0
  %3211 = vmatpush1.msra.mxu0 0.0
  %3212 = vmatprep.subr.mxu0 0.0
  %3213 = vmatpush1.msra.mxu0 0.0
  %3214 = vmatprep.subr.mxu0 0.0
  %3215 = vmatpush1.msra.mxu0 0.0
  %3216 = vmatprep.subr.mxu0 0.0
  %3217 = vmatpush1.msra.mxu0 0.0
  %3218 = vmatprep.subr.mxu0 0.0
  %3219 = vmatpush1.msra.mxu0 0.0
  %3220 = vmatprep.subr.mxu0 0.0
  %3221 = vmatpush1.msra.mxu0 0.0
  %3222 = vmatprep.subr.mxu0 0.0
  %3223 = vmatpush1.msra.mxu0 0.0
  %3224 = vmatprep.subr.mxu0 0.0
  %3225 = vmatpush1.msra.mxu0 0.0
  %3226 = vmatprep.subr.mxu0 0.0
  %3227 = vmatpush1.msra.mxu0 0.0
  %3228 = vmatprep.subr.mxu0 0.0
  %3229 = vmatpush1.msra.mxu0 0.0
  %3230 = vmatprep.subr.mxu0 0.0
  %3231 = vmatpush1.msra.mxu0 0.0
  %3232 = vmatprep.subr.mxu0 0.0
  %3233 = vmatpush1.msra.mxu0 0.0
  %3234 = vmatprep.subr.mxu0 0.0
  %3235 = vmatpush1.msra.mxu0 0.0
  %3236 = vmatprep.subr.mxu0 0.0
  %3237 = vmatpush1.msra.mxu0 0.0
  %3238 = vmatprep.mubr.f32.mxu0 0.0
  %3239 = vmatmul.mubr.f32.gmra.mrb[0].mxu0 %v3168
  %v3240 = vpop.f32.mrb[0].mxu0
  %v3241 = vadd.f32 0.0, %v3240
  %v3242 = vpop.f32.mrb[0].mxu0
  %3243 = vdwg.mxu0
  %v3244 = vmax.f32 %v3241, 0.0
  %v3245 = vld [vmem:[%s6] sm:$0xff]
  %v3246 = vld [vmem:[%s6 + $0x8] sm:$0x3]
  %v3247 = vld [vmem:[%s7] sm:$0xff]
  %v3248 = vld [vmem:[%s7 + $0x8] sm:$0x3]
  %3250 = vset.pattern.permute.xlu0 0
  %3251 = vperm.xlu0 %3250, %v3247
  %v3252 = vpop.permute.xlu0 %3251
  %3255 = vset.pattern.permute.xlu0 0
  %3256 = vperm.xlu0 %3255, %v3248
  %v3257 = vpop.permute.xlu0 %3256
  %vm3259 = vcmask 64512
  %v3261 = vsel %vm3259, %v3245, 0
  %v3264 = vsel %vm3259, %v3246, 0
  %3266 = vmatprep.subr.mxu0 0.0
  %3267 = vmatpush1.msra.mxu0 %v3244
  %3268 = vmatprep.subr.mxu0 0.0
  %3269 = vmatpush1.msra.mxu0 0.0
  %3270 = vmatprep.subr.mxu0 0.0
  %3271 = vmatpush1.msra.mxu0 0.0
  %3272 = vmatprep.subr.mxu0 0.0
  %3273 = vmatpush1.msra.mxu0 0.0
  %3274 = vmatprep.subr.mxu0 0.0
  %3275 = vmatpush1.msra.mxu0 0.0
  %3276 = vmatprep.subr.mxu0 0.0
  %3277 = vmatpush1.msra.mxu0 0.0
  %3278 = vmatprep.subr.mxu0 0.0
  %3279 = vmatpush1.msra.mxu0 0.0
  %3280 = vmatprep.subr.mxu0 0.0
  %3281 = vmatpush1.msra.mxu0 0.0
  %3282 = vmatprep.subr.mxu0 0.0
  %3283 = vmatpush1.msra.mxu0 0.0
  %3284 = vmatprep.subr.mxu0 0.0
  %3285 = vmatpush1.msra.mxu0 0.0
  %3286 = vmatprep.subr.mxu0 0.0
  %3287 = vmatpush1.msra.mxu0 0.0
  %3288 = vmatprep.subr.mxu0 0.0
  %3289 = vmatpush1.msra.mxu0 0.0
  %3290 = vmatprep.subr.mxu0 0.0
  %3291 = vmatpush1.msra.mxu0 0.0
  %3292 = vmatprep.subr.mxu0 0.0
  %3293 = vmatpush1.msra.mxu0 0.0
  %3294 = vmatprep.subr.mxu0 0.0
  %3295 = vmatpush1.msra.mxu0 0.0
  %3296 = vmatprep.subr.mxu0 0.0
  %3297 = vmatpush1.msra.mxu0 0.0
  %3298 = vmatprep.subr.mxu0 0.0
  %3299 = vmatpush1.msra.mxu0 0.0
  %3300 = vmatprep.subr.mxu0 0.0
  %3301 = vmatpush1.msra.mxu0 0.0
  %3302 = vmatprep.subr.mxu0 0.0
  %3303 = vmatpush1.msra.mxu0 0.0
  %3304 = vmatprep.subr.mxu0 0.0
  %3305 = vmatpush1.msra.mxu0 0.0
  %3306 = vmatprep.subr.mxu0 0.0
  %3307 = vmatpush1.msra.mxu0 0.0
  %3308 = vmatprep.subr.mxu0 0.0
  %3309 = vmatpush1.msra.mxu0 0.0
  %3310 = vmatprep.subr.mxu0 0.0
  %3311 = vmatpush1.msra.mxu0 0.0
  %3312 = vmatprep.subr.mxu0 0.0
  %3313 = vmatpush1.msra.mxu0 0.0
  %3314 = vmatprep.subr.mxu0 0.0
  %3315 = vmatpush1.msra.mxu0 0.0
  %3316 = vmatprep.subr.mxu0 0.0
  %3317 = vmatpush1.msra.mxu0 0.0
  %3318 = vmatprep.subr.mxu0 0.0
  %3319 = vmatpush1.msra.mxu0 0.0
  %3320 = vmatprep.subr.mxu0 0.0
  %3321 = vmatpush1.msra.mxu0 0.0
  %3322 = vmatprep.subr.mxu0 0.0
  %3323 = vmatpush1.msra.mxu0 0.0
  %3324 = vmatprep.subr.mxu0 0.0
  %3325 = vmatpush1.msra.mxu0 0.0
  %3326 = vmatprep.subr.mxu0 0.0
  %3327 = vmatpush1.msra.mxu0 0.0
  %3328 = vmatprep.subr.mxu0 0.0
  %3329 = vmatpush1.msra.mxu0 0.0
  %3330 = vmatprep.mubr.f32.mxu0 0.0
  %3331 = vmatmul.mubr.f32.gmra.mrb[0].mxu0 %v3261
  %v3332 = vpop.f32.mrb[0].mxu0
  %v3333 = vadd.f32 %v3252, %v3332
  %v3334 = vpop.f32.mrb[0].mxu0
  %3335 = vmatprep.mubr.f32.mxu0 0.0
  %3336 = vmatmul.mubr.f32.gmra.mrb[0].mxu0 %v3264
  %v3337 = vpop.f32.mrb[0].mxu0
  %v3338 = vadd.f32 %v3257, %v3337
  %v3339 = vpop.f32.mrb[0].mxu0
  %3340 = vdwg.mxu0
  %3341 = vst [vmem:[%s8] sm:$0xff] %v3333
  %3342 = vst [vmem:[%s8 + $0x8] sm:$0x3] %v3338
  // Predicated region
  $region34: #{qimage_dfr_system.1} parent=0 // pred_check
    _
  $region35: #{qimage_dfr_system.1} parent=0 // pred_check_branch
    %3344 = sbr.rel (0) target = $region37
  $region36: #{qimage_dfr_system.1} parent=0 // pred_region
    _
  $region37: #{qimage_dfr_system.1} parent=0 // pred_fallthru
    _
  // Predicated region
  $region38: #{qimage_dfr_system.1} parent=0 // pred_check
    _
  $region39: #{qimage_dfr_system.1} parent=0 // pred_check_branch
    %3346 = sbr.rel (0) target = $region41
  $region40: #{qimage_dfr_system.1} parent=0 // pred_region
    _
  $region41: #{qimage_dfr_system.1} parent=0 // pred_fallthru
    _
  // Predicated region
  $region42: #{qimage_dfr_system.1} parent=0 // pred_check
    _
  $region43: #{qimage_dfr_system.1} parent=0 // pred_check_branch
    %3348 = sbr.rel (0) target = $region45
  $region44: #{qimage_dfr_system.1} parent=0 // pred_region
    _
  $region45: #{qimage_dfr_system.1} parent=0 // pred_fallthru
    _
  // Predicated region
  $region46: #{qimage_dfr_system.1} parent=0 // pred_check
    _
  $region47: #{qimage_dfr_system.1} parent=0 // pred_check_branch
    %3350 = sbr.rel (0) target = $region49
  $region48: #{qimage_dfr_system.1} parent=0 // pred_region
    _
  $region49: #{qimage_dfr_system.1} parent=0 // pred_fallthru
    _

</llo_original>
